<compile_context>
chip_gen: v7x
topology: tpu7x:2x2x1
jax: 0.10.0
libtpu: 0.0.40
codegen_flags: <defaults>
</compile_context>

<pallas_src>
import math
import functools

import jax
import jax.numpy as jnp
from jax.experimental import pallas as pl

EMBED_DIM = 32          # embedding_dim (divisible by nhead=4)
INPUT_LEN = 16          # max_len of positional encoding
NUM_HEADS = 4
FF_DIM = 2048           # nn.TransformerEncoderLayer default dim_feedforward
IN_FEATURES = 51
LN_EPS = 1e-5


# --------------------------- fused Pallas kernel -----------------------------

def _fused_kernel(x_ref, w_emb_ref, pe_bias_ref,
                  wqkv_ref, bqkv_ref, wo_ref,
                  w1_ref, b1_ref, w2_ref, misc_ref,
                  o_ref, *, batch, seq, num_layers, num_heads, head_dim, eps):
    f32 = jnp.float32
    bf16 = jnp.bfloat16
    D = num_heads * head_dim

    # ---- embedding linear + (bias + positional encoding) ----
    x = x_ref[...].astype(bf16)                                     # (N, Fp)
    h = jnp.dot(x, w_emb_ref[...], preferred_element_type=f32)      # (N, D)
    h = h + pe_bias_ref[...]                                        # (N, D) f32

    def layer_norm(y, g, b):
        mean = jnp.mean(y, axis=-1, keepdims=True)
        var = jnp.mean(jnp.square(y - mean), axis=-1, keepdims=True)
        return (y - mean) * jax.lax.rsqrt(var + eps) * g + b

    for li in range(num_layers):
        # ---------------- self-attention block (post-norm) ----------------
        hb = h.astype(bf16)
        # Fused QKV projection: one lane-dense (N, D) @ (D, 3D) matmul.
        qkv = jnp.dot(hb, wqkv_ref[li],
                      preferred_element_type=f32) + bqkv_ref[li]    # (N, 3D) f32

        # Tiny per-(batch, head) attention on static sub-blocks.
        batch_outs = []
        for b in range(batch):
            r0 = b * seq
            head_outs = []
            for hh in range(num_heads):
                c = hh * head_dim
                q = qkv[r0:r0 + seq, c:c + head_dim]                 # (T, Dh)
                k = qkv[r0:r0 + seq, D + c:D + c + head_dim]         # (T, Dh)
                v = qkv[r0:r0 + seq, 2 * D + c:2 * D + c + head_dim]  # (T, Dh)
                # scores = q @ k^T (1/sqrt(Dh) already folded into Wq, bq)
                s = jax.lax.dot_general(q, k, (((1,), (1,)), ((), ())),
                                        preferred_element_type=f32)  # (T, T)
                m = jnp.max(s, axis=-1, keepdims=True)
                p = jnp.exp(s - m)
                p = p * pl.reciprocal(jnp.sum(p, axis=-1, keepdims=True),
                                      approx=True)
                head_outs.append(jnp.dot(p, v,
                                         preferred_element_type=f32))  # (T, Dh)
            batch_outs.append(jnp.concatenate(head_outs, axis=-1))     # (T, D)
        attn = jnp.concatenate(batch_outs, axis=0)                     # (N, D)

        # Output projection: one (N, D) @ (D, D) matmul.  misc[li,0] = b_out.
        attn = jnp.dot(attn.astype(bf16), wo_ref[li],
                       preferred_element_type=f32) + misc_ref[li, 0]
        h = layer_norm(h + attn, misc_ref[li, 2], misc_ref[li, 3])

        # ---------------- feed-forward block ----------------
        hb = h.astype(bf16)
        f = jnp.dot(hb, w1_ref[li], preferred_element_type=f32) + b1_ref[li]
        f = jnp.maximum(f, 0.0).astype(bf16)                           # (N, FF)
        # FF2: w2 stored lane-dense as (D, FF); contract the FF dim.
        f = jax.lax.dot_general(f, w2_ref[li], (((1,), (1,)), ((), ())),
                                preferred_element_type=f32) + misc_ref[li, 1]
        h = layer_norm(h + f, misc_ref[li, 4], misc_ref[li, 5])

    o_ref[...] = h.astype(o_ref.dtype)


# --------------------------- parameters --------------------------------------

def make_positional_encoding(max_len, d_model):
    position = jnp.arange(max_len, dtype=jnp.float32)[:, None]
    div_term = jnp.exp(jnp.arange(0, d_model, 2, dtype=jnp.float32)
                       * (-math.log(10000.0) / d_model))
    pe = jnp.zeros((max_len, d_model), dtype=jnp.float32)
    pe = pe.at[:, 0::2].set(jnp.sin(position * div_term))
    pe = pe.at[:, 1::2].set(jnp.cos(position * div_term))
    return pe


def init_params(key, d_model=EMBED_DIM, input_len=INPUT_LEN,
                ff=FF_DIM, num_layers=2):
    def nrm(k, shape, scale=0.02):
        return scale * jax.random.normal(k, shape, dtype=jnp.float32)

    keys = jax.random.split(key, 2 + num_layers)
    params = {
        "w_emb": nrm(keys[0], (IN_FEATURES, d_model)),
        "b_emb": nrm(keys[1], (d_model,)),
        "pe": make_positional_encoding(input_len, d_model),
        "layers": [],
    }
    for li in range(num_layers):
        lk = jax.random.split(keys[2 + li], 8)
        params["layers"].append({
            # in_proj (q|k|v concatenated along output dim), stored as (D, 3D)
            "w_in": nrm(lk[0], (d_model, 3 * d_model)),
            "b_in": nrm(lk[1], (3 * d_model,)),
            "w_out": nrm(lk[2], (d_model, d_model)),
            "b_out": nrm(lk[3], (d_model,)),
            "w1": nrm(lk[4], (d_model, ff)),
            "b1": nrm(lk[5], (ff,)),
            "w2": nrm(lk[6], (ff, d_model)),
            "b2": nrm(lk[7], (d_model,)),
            "g1": jnp.ones((d_model,), jnp.float32),
            "be1": jnp.zeros((d_model,), jnp.float32),
            "g2": jnp.ones((d_model,), jnp.float32),
            "be2": jnp.zeros((d_model,), jnp.float32),
        })
    return params


# --------------------------- forward pass -------------------------------------

def global_pose_embedder_forward(x, params, num_heads=NUM_HEADS):
    # TimeDistributed(nn.Linear(51, D)): flatten trailing dims to features.
    if x.ndim <= 2:
        x = x[..., None]
    B, T = x.shape[0], x.shape[1]
    x2 = x.reshape(B, T, -1).astype(jnp.float32)
    F_in = x2.shape[-1]

    D = params["w_emb"].shape[1]
    H = num_heads
    assert D % H == 0
    Dh = D // H
    layers = params["layers"]
    L = len(layers)
    N = B * T
    bf16 = jnp.bfloat16

    # Pad input features to an MXU-friendly multiple of 64 (zero rows in w_emb).
    Fp = max(64, ((F_in + 63) // 64) * 64)
    x_flat = x2.reshape(N, F_in)
    if Fp != F_in:
        x_flat = jnp.pad(x_flat, ((0, 0), (0, Fp - F_in)))
        w_emb = jnp.pad(params["w_emb"], ((0, Fp - F_in), (0, 0)))
    else:
        w_emb = params["w_emb"]
    w_emb = w_emb.astype(bf16)

    # Fold embedding bias + positional encoding into one (N, D) constant table.
    pe_bias = jnp.tile(params["pe"][:T] + params["b_emb"][None, :], (B, 1))

    scale = 1.0 / math.sqrt(Dh)

    def stack(fn):
        return jnp.stack([fn(l) for l in layers], axis=0)

    # Fused QKV weights/bias with 1/sqrt(Dh) folded into the Q slice.
    def qkv_w(l):
        w = l["w_in"]                                        # (D, 3D)
        return jnp.concatenate([w[:, :D] * scale, w[:, D:]], axis=1)

    def qkv_b(l):
        b = l["b_in"]                                        # (3D,)
        return jnp.concatenate([b[:D] * scale, b[D:]])[None, :]

    w_qkv = stack(qkv_w).astype(bf16)                        # (L, D, 3D)
    b_qkv = stack(qkv_b)                                     # (L, 1, 3D) f32
    w_out = stack(lambda l: l["w_out"]).astype(bf16)         # (L, D, D)
    w1 = stack(lambda l: l["w1"]).astype(bf16)               # (L, D, FF)
    b1 = stack(lambda l: l["b1"][None, :])                   # (L, 1, FF) f32
    w2 = stack(lambda l: l["w2"].T).astype(bf16)             # (L, D, FF)  lane-dense
    # All (D,)-sized per-layer vectors packed into one table:
    # rows = [b_out, b2, g1, be1, g2, be2]
    misc = stack(lambda l: jnp.stack(
        [l["b_out"], l["b2"], l["g1"], l["be1"], l["g2"], l["be2"]],
        axis=0)[:, None, :])                                 # (L, 6, 1, D) f32

    kernel = functools.partial(
        _fused_kernel, batch=B, seq=T, num_layers=L,
        num_heads=H, head_dim=Dh, eps=LN_EPS)

    out = pl.pallas_call(
        kernel,
        out_shape=jax.ShapeDtypeStruct((N, D), jnp.float32),
        # No grid: single invocation, every operand resident in VMEM
        # (~0.6 MiB total) — no per-step pipeline overhead or serial batch loop.
    )(x_flat, w_emb, pe_bias, w_qkv, b_qkv, w_out, w1, b1, w2, misc)

    return out.reshape(B, T, D)


# --------------------------- main ---------------------------------------------

if __name__ == "__main__":
    key = jax.random.PRNGKey(0)
    k_in, k_par = jax.random.split(key)

    B, T = 2, 8
    x = jax.random.normal(k_in, (B, T, IN_FEATURES), dtype=jnp.float32)
    params = init_params(k_par)

    fwd = jax.jit(global_pose_embedder_forward)
    out = fwd(x, params)
    jax.block_until_ready(out)

    assert out.shape == (B, T, EMBED_DIM), out.shape
    assert out.dtype == jnp.float32
    assert bool(jnp.all(jnp.isfinite(out)))
    print("KERNEL_OK")
</pallas_src>

<mosaic_0001>
module attributes {stable_mosaic.version = 11 : i64} {
  func.func @_fused_kernel(%arg0: memref<16x64xf32, #tpu.memory_space<vmem>>, %arg1: memref<64x32xbf16, #tpu.memory_space<vmem>>, %arg2: memref<16x32xf32, #tpu.memory_space<vmem>>, %arg3: memref<2x32x96xbf16, #tpu.memory_space<vmem>>, %arg4: memref<2x1x96xf32, #tpu.memory_space<vmem>>, %arg5: memref<2x32x32xbf16, #tpu.memory_space<vmem>>, %arg6: memref<2x32x2048xbf16, #tpu.memory_space<vmem>>, %arg7: memref<2x1x2048xf32, #tpu.memory_space<vmem>>, %arg8: memref<2x32x2048xbf16, #tpu.memory_space<vmem>>, %arg9: memref<2x6x1x32xf32, #tpu.memory_space<vmem>>, %arg10: memref<16x32xf32, #tpu.memory_space<vmem>>) attributes {dimension_semantics = [], scalar_prefetch = 0 : i64, scratch_operands = 0 : i64, tpu.core_type = #tpu.core_type<tc>} {
    %c0 = arith.constant 0 : index
    %c0_0 = arith.constant 0 : index
    %0 = vector.load %arg0[%c0, %c0_0] : memref<16x64xf32, #tpu.memory_space<vmem>>, vector<16x64xf32>
    %1 = arith.truncf %0 : vector<16x64xf32> to vector<16x64xbf16>
    %c0_1 = arith.constant 0 : index
    %c0_2 = arith.constant 0 : index
    %2 = vector.load %arg1[%c0_1, %c0_2] : memref<64x32xbf16, #tpu.memory_space<vmem>>, vector<64x32xbf16>
    %cst = arith.constant dense<0.000000e+00> : vector<16x32xf32>
    %3 = tpu.matmul %1, %2, %cst {dimension_numbers = #tpu.dot_dimension_numbers<[1], [0], [0], [1], [0, 0, 1, 1], [], []>} : vector<16x64xbf16>, vector<64x32xbf16>, vector<16x32xf32> -> vector<16x32xf32>
    %c0_3 = arith.constant 0 : index
    %c0_4 = arith.constant 0 : index
    %4 = vector.load %arg2[%c0_3, %c0_4] : memref<16x32xf32, #tpu.memory_space<vmem>>, vector<16x32xf32>
    %5 = arith.addf %3, %4 : vector<16x32xf32>
    %6 = arith.truncf %5 : vector<16x32xf32> to vector<16x32xbf16>
    %c0_5 = arith.constant 0 : index
    %c0_6 = arith.constant 0 : index
    %c0_7 = arith.constant 0 : index
    %7 = vector.load %arg3[%c0_5, %c0_6, %c0_7] : memref<2x32x96xbf16, #tpu.memory_space<vmem>>, vector<1x32x96xbf16>
    %8 = vector.shape_cast %7 : vector<1x32x96xbf16> to vector<32x96xbf16>
    %cst_8 = arith.constant dense<0.000000e+00> : vector<16x96xf32>
    %9 = tpu.matmul %6, %8, %cst_8 {dimension_numbers = #tpu.dot_dimension_numbers<[1], [0], [0], [1], [0, 0, 1, 1], [], []>} : vector<16x32xbf16>, vector<32x96xbf16>, vector<16x96xf32> -> vector<16x96xf32>
    %c0_9 = arith.constant 0 : index
    %c0_10 = arith.constant 0 : index
    %c0_11 = arith.constant 0 : index
    %10 = vector.load %arg4[%c0_9, %c0_10, %c0_11] : memref<2x1x96xf32, #tpu.memory_space<vmem>>, vector<1x1x96xf32>
    %11 = vector.shape_cast %10 : vector<1x1x96xf32> to vector<1x96xf32>
    %12 = vector.broadcast %11 : vector<1x96xf32> to vector<16x96xf32>
    %13 = arith.addf %9, %12 : vector<16x96xf32>
    %14 = vector.extract_strided_slice %13 {offsets = [0, 0], sizes = [8, 8], strides = [1, 1]} : vector<16x96xf32> to vector<8x8xf32>
    %15 = vector.extract_strided_slice %13 {offsets = [0, 32], sizes = [8, 8], strides = [1, 1]} : vector<16x96xf32> to vector<8x8xf32>
    %16 = vector.extract_strided_slice %13 {offsets = [0, 64], sizes = [8, 8], strides = [1, 1]} : vector<16x96xf32> to vector<8x8xf32>
    %cst_12 = arith.constant dense<0.000000e+00> : vector<8x8xf32>
    %17 = tpu.matmul %14, %15, %cst_12 {dimension_numbers = #tpu.dot_dimension_numbers<[1], [1], [0], [0], [0, 0, 1, 0], [], []>} : vector<8x8xf32>, vector<8x8xf32>, vector<8x8xf32> -> vector<8x8xf32>
    %cst_13 = arith.constant dense<0xFF800000> : vector<8xf32>
    %18 = vector.multi_reduction <maximumf>, %17, %cst_13 [1] : vector<8x8xf32> to vector<8xf32>
    %19 = vector.shape_cast %18 : vector<8xf32> to vector<8x1xf32>
    %20 = vector.broadcast %19 : vector<8x1xf32> to vector<8x8xf32>
    %21 = arith.subf %17, %20 : vector<8x8xf32>
    %22 = math.exp %21 : vector<8x8xf32>
    %cst_14 = arith.constant dense<0.000000e+00> : vector<8xf32>
    %23 = vector.multi_reduction <add>, %22, %cst_14 [1] : vector<8x8xf32> to vector<8xf32>
    %24 = vector.shape_cast %23 : vector<8xf32> to vector<8x1xf32>
    %25 = tpu.reciprocal %24 {approx = true} : vector<8x1xf32> -> vector<8x1xf32>
    %26 = vector.broadcast %25 : vector<8x1xf32> to vector<8x8xf32>
    %27 = arith.mulf %22, %26 : vector<8x8xf32>
    %cst_15 = arith.constant dense<0.000000e+00> : vector<8x8xf32>
    %28 = tpu.matmul %27, %16, %cst_15 {dimension_numbers = #tpu.dot_dimension_numbers<[1], [0], [0], [1], [0, 0, 1, 1], [], []>} : vector<8x8xf32>, vector<8x8xf32>, vector<8x8xf32> -> vector<8x8xf32>
    %29 = vector.extract_strided_slice %13 {offsets = [0, 8], sizes = [8, 8], strides = [1, 1]} : vector<16x96xf32> to vector<8x8xf32>
    %30 = vector.extract_strided_slice %13 {offsets = [0, 40], sizes = [8, 8], strides = [1, 1]} : vector<16x96xf32> to vector<8x8xf32>
    %31 = vector.extract_strided_slice %13 {offsets = [0, 72], sizes = [8, 8], strides = [1, 1]} : vector<16x96xf32> to vector<8x8xf32>
    %cst_16 = arith.constant dense<0.000000e+00> : vector<8x8xf32>
    %32 = tpu.matmul %29, %30, %cst_16 {dimension_numbers = #tpu.dot_dimension_numbers<[1], [1], [0], [0], [0, 0, 1, 0], [], []>} : vector<8x8xf32>, vector<8x8xf32>, vector<8x8xf32> -> vector<8x8xf32>
    %cst_17 = arith.constant dense<0xFF800000> : vector<8xf32>
    %33 = vector.multi_reduction <maximumf>, %32, %cst_17 [1] : vector<8x8xf32> to vector<8xf32>
    %34 = vector.shape_cast %33 : vector<8xf32> to vector<8x1xf32>
    %35 = vector.broadcast %34 : vector<8x1xf32> to vector<8x8xf32>
    %36 = arith.subf %32, %35 : vector<8x8xf32>
    %37 = math.exp %36 : vector<8x8xf32>
    %cst_18 = arith.constant dense<0.000000e+00> : vector<8xf32>
    %38 = vector.multi_reduction <add>, %37, %cst_18 [1] : vector<8x8xf32> to vector<8xf32>
    %39 = vector.shape_cast %38 : vector<8xf32> to vector<8x1xf32>
    %40 = tpu.reciprocal %39 {approx = true} : vector<8x1xf32> -> vector<8x1xf32>
    %41 = vector.broadcast %40 : vector<8x1xf32> to vector<8x8xf32>
    %42 = arith.mulf %37, %41 : vector<8x8xf32>
    %cst_19 = arith.constant dense<0.000000e+00> : vector<8x8xf32>
    %43 = tpu.matmul %42, %31, %cst_19 {dimension_numbers = #tpu.dot_dimension_numbers<[1], [0], [0], [1], [0, 0, 1, 1], [], []>} : vector<8x8xf32>, vector<8x8xf32>, vector<8x8xf32> -> vector<8x8xf32>
    %44 = vector.extract_strided_slice %13 {offsets = [0, 16], sizes = [8, 8], strides = [1, 1]} : vector<16x96xf32> to vector<8x8xf32>
    %45 = vector.extract_strided_slice %13 {offsets = [0, 48], sizes = [8, 8], strides = [1, 1]} : vector<16x96xf32> to vector<8x8xf32>
    %46 = vector.extract_strided_slice %13 {offsets = [0, 80], sizes = [8, 8], strides = [1, 1]} : vector<16x96xf32> to vector<8x8xf32>
    %cst_20 = arith.constant dense<0.000000e+00> : vector<8x8xf32>
    %47 = tpu.matmul %44, %45, %cst_20 {dimension_numbers = #tpu.dot_dimension_numbers<[1], [1], [0], [0], [0, 0, 1, 0], [], []>} : vector<8x8xf32>, vector<8x8xf32>, vector<8x8xf32> -> vector<8x8xf32>
    %cst_21 = arith.constant dense<0xFF800000> : vector<8xf32>
    %48 = vector.multi_reduction <maximumf>, %47, %cst_21 [1] : vector<8x8xf32> to vector<8xf32>
    %49 = vector.shape_cast %48 : vector<8xf32> to vector<8x1xf32>
    %50 = vector.broadcast %49 : vector<8x1xf32> to vector<8x8xf32>
    %51 = arith.subf %47, %50 : vector<8x8xf32>
    %52 = math.exp %51 : vector<8x8xf32>
    %cst_22 = arith.constant dense<0.000000e+00> : vector<8xf32>
    %53 = vector.multi_reduction <add>, %52, %cst_22 [1] : vector<8x8xf32> to vector<8xf32>
    %54 = vector.shape_cast %53 : vector<8xf32> to vector<8x1xf32>
    %55 = tpu.reciprocal %54 {approx = true} : vector<8x1xf32> -> vector<8x1xf32>
    %56 = vector.broadcast %55 : vector<8x1xf32> to vector<8x8xf32>
    %57 = arith.mulf %52, %56 : vector<8x8xf32>
    %cst_23 = arith.constant dense<0.000000e+00> : vector<8x8xf32>
    %58 = tpu.matmul %57, %46, %cst_23 {dimension_numbers = #tpu.dot_dimension_numbers<[1], [0], [0], [1], [0, 0, 1, 1], [], []>} : vector<8x8xf32>, vector<8x8xf32>, vector<8x8xf32> -> vector<8x8xf32>
    %59 = vector.extract_strided_slice %13 {offsets = [0, 24], sizes = [8, 8], strides = [1, 1]} : vector<16x96xf32> to vector<8x8xf32>
    %60 = vector.extract_strided_slice %13 {offsets = [0, 56], sizes = [8, 8], strides = [1, 1]} : vector<16x96xf32> to vector<8x8xf32>
    %61 = vector.extract_strided_slice %13 {offsets = [0, 88], sizes = [8, 8], strides = [1, 1]} : vector<16x96xf32> to vector<8x8xf32>
    %cst_24 = arith.constant dense<0.000000e+00> : vector<8x8xf32>
    %62 = tpu.matmul %59, %60, %cst_24 {dimension_numbers = #tpu.dot_dimension_numbers<[1], [1], [0], [0], [0, 0, 1, 0], [], []>} : vector<8x8xf32>, vector<8x8xf32>, vector<8x8xf32> -> vector<8x8xf32>
    %cst_25 = arith.constant dense<0xFF800000> : vector<8xf32>
    %63 = vector.multi_reduction <maximumf>, %62, %cst_25 [1] : vector<8x8xf32> to vector<8xf32>
    %64 = vector.shape_cast %63 : vector<8xf32> to vector<8x1xf32>
    %65 = vector.broadcast %64 : vector<8x1xf32> to vector<8x8xf32>
    %66 = arith.subf %62, %65 : vector<8x8xf32>
    %67 = math.exp %66 : vector<8x8xf32>
    %cst_26 = arith.constant dense<0.000000e+00> : vector<8xf32>
    %68 = vector.multi_reduction <add>, %67, %cst_26 [1] : vector<8x8xf32> to vector<8xf32>
    %69 = vector.shape_cast %68 : vector<8xf32> to vector<8x1xf32>
    %70 = tpu.reciprocal %69 {approx = true} : vector<8x1xf32> -> vector<8x1xf32>
    %71 = vector.broadcast %70 : vector<8x1xf32> to vector<8x8xf32>
    %72 = arith.mulf %67, %71 : vector<8x8xf32>
    %cst_27 = arith.constant dense<0.000000e+00> : vector<8x8xf32>
    %73 = tpu.matmul %72, %61, %cst_27 {dimension_numbers = #tpu.dot_dimension_numbers<[1], [0], [0], [1], [0, 0, 1, 1], [], []>} : vector<8x8xf32>, vector<8x8xf32>, vector<8x8xf32> -> vector<8x8xf32>
    %74 = tpu.concatenate %28, %43, %58, %73 in 1 : vector<8x8xf32>, vector<8x8xf32>, vector<8x8xf32>, vector<8x8xf32> -> vector<8x32xf32>
    %75 = vector.extract_strided_slice %13 {offsets = [8, 0], sizes = [8, 8], strides = [1, 1]} : vector<16x96xf32> to vector<8x8xf32>
    %76 = vector.extract_strided_slice %13 {offsets = [8, 32], sizes = [8, 8], strides = [1, 1]} : vector<16x96xf32> to vector<8x8xf32>
    %77 = vector.extract_strided_slice %13 {offsets = [8, 64], sizes = [8, 8], strides = [1, 1]} : vector<16x96xf32> to vector<8x8xf32>
    %cst_28 = arith.constant dense<0.000000e+00> : vector<8x8xf32>
    %78 = tpu.matmul %75, %76, %cst_28 {dimension_numbers = #tpu.dot_dimension_numbers<[1], [1], [0], [0], [0, 0, 1, 0], [], []>} : vector<8x8xf32>, vector<8x8xf32>, vector<8x8xf32> -> vector<8x8xf32>
    %cst_29 = arith.constant dense<0xFF800000> : vector<8xf32>
    %79 = vector.multi_reduction <maximumf>, %78, %cst_29 [1] : vector<8x8xf32> to vector<8xf32>
    %80 = vector.shape_cast %79 : vector<8xf32> to vector<8x1xf32>
    %81 = vector.broadcast %80 : vector<8x1xf32> to vector<8x8xf32>
    %82 = arith.subf %78, %81 : vector<8x8xf32>
    %83 = math.exp %82 : vector<8x8xf32>
    %cst_30 = arith.constant dense<0.000000e+00> : vector<8xf32>
    %84 = vector.multi_reduction <add>, %83, %cst_30 [1] : vector<8x8xf32> to vector<8xf32>
    %85 = vector.shape_cast %84 : vector<8xf32> to vector<8x1xf32>
    %86 = tpu.reciprocal %85 {approx = true} : vector<8x1xf32> -> vector<8x1xf32>
    %87 = vector.broadcast %86 : vector<8x1xf32> to vector<8x8xf32>
    %88 = arith.mulf %83, %87 : vector<8x8xf32>
    %cst_31 = arith.constant dense<0.000000e+00> : vector<8x8xf32>
    %89 = tpu.matmul %88, %77, %cst_31 {dimension_numbers = #tpu.dot_dimension_numbers<[1], [0], [0], [1], [0, 0, 1, 1], [], []>} : vector<8x8xf32>, vector<8x8xf32>, vector<8x8xf32> -> vector<8x8xf32>
    %90 = vector.extract_strided_slice %13 {offsets = [8, 8], sizes = [8, 8], strides = [1, 1]} : vector<16x96xf32> to vector<8x8xf32>
    %91 = vector.extract_strided_slice %13 {offsets = [8, 40], sizes = [8, 8], strides = [1, 1]} : vector<16x96xf32> to vector<8x8xf32>
    %92 = vector.extract_strided_slice %13 {offsets = [8, 72], sizes = [8, 8], strides = [1, 1]} : vector<16x96xf32> to vector<8x8xf32>
    %cst_32 = arith.constant dense<0.000000e+00> : vector<8x8xf32>
    %93 = tpu.matmul %90, %91, %cst_32 {dimension_numbers = #tpu.dot_dimension_numbers<[1], [1], [0], [0], [0, 0, 1, 0], [], []>} : vector<8x8xf32>, vector<8x8xf32>, vector<8x8xf32> -> vector<8x8xf32>
    %cst_33 = arith.constant dense<0xFF800000> : vector<8xf32>
    %94 = vector.multi_reduction <maximumf>, %93, %cst_33 [1] : vector<8x8xf32> to vector<8xf32>
    %95 = vector.shape_cast %94 : vector<8xf32> to vector<8x1xf32>
    %96 = vector.broadcast %95 : vector<8x1xf32> to vector<8x8xf32>
    %97 = arith.subf %93, %96 : vector<8x8xf32>
    %98 = math.exp %97 : vector<8x8xf32>
    %cst_34 = arith.constant dense<0.000000e+00> : vector<8xf32>
    %99 = vector.multi_reduction <add>, %98, %cst_34 [1] : vector<8x8xf32> to vector<8xf32>
    %100 = vector.shape_cast %99 : vector<8xf32> to vector<8x1xf32>
    %101 = tpu.reciprocal %100 {approx = true} : vector<8x1xf32> -> vector<8x1xf32>
    %102 = vector.broadcast %101 : vector<8x1xf32> to vector<8x8xf32>
    %103 = arith.mulf %98, %102 : vector<8x8xf32>
    %cst_35 = arith.constant dense<0.000000e+00> : vector<8x8xf32>
    %104 = tpu.matmul %103, %92, %cst_35 {dimension_numbers = #tpu.dot_dimension_numbers<[1], [0], [0], [1], [0, 0, 1, 1], [], []>} : vector<8x8xf32>, vector<8x8xf32>, vector<8x8xf32> -> vector<8x8xf32>
    %105 = vector.extract_strided_slice %13 {offsets = [8, 16], sizes = [8, 8], strides = [1, 1]} : vector<16x96xf32> to vector<8x8xf32>
    %106 = vector.extract_strided_slice %13 {offsets = [8, 48], sizes = [8, 8], strides = [1, 1]} : vector<16x96xf32> to vector<8x8xf32>
    %107 = vector.extract_strided_slice %13 {offsets = [8, 80], sizes = [8, 8], strides = [1, 1]} : vector<16x96xf32> to vector<8x8xf32>
    %cst_36 = arith.constant dense<0.000000e+00> : vector<8x8xf32>
    %108 = tpu.matmul %105, %106, %cst_36 {dimension_numbers = #tpu.dot_dimension_numbers<[1], [1], [0], [0], [0, 0, 1, 0], [], []>} : vector<8x8xf32>, vector<8x8xf32>, vector<8x8xf32> -> vector<8x8xf32>
    %cst_37 = arith.constant dense<0xFF800000> : vector<8xf32>
    %109 = vector.multi_reduction <maximumf>, %108, %cst_37 [1] : vector<8x8xf32> to vector<8xf32>
    %110 = vector.shape_cast %109 : vector<8xf32> to vector<8x1xf32>
    %111 = vector.broadcast %110 : vector<8x1xf32> to vector<8x8xf32>
    %112 = arith.subf %108, %111 : vector<8x8xf32>
    %113 = math.exp %112 : vector<8x8xf32>
    %cst_38 = arith.constant dense<0.000000e+00> : vector<8xf32>
    %114 = vector.multi_reduction <add>, %113, %cst_38 [1] : vector<8x8xf32> to vector<8xf32>
    %115 = vector.shape_cast %114 : vector<8xf32> to vector<8x1xf32>
    %116 = tpu.reciprocal %115 {approx = true} : vector<8x1xf32> -> vector<8x1xf32>
    %117 = vector.broadcast %116 : vector<8x1xf32> to vector<8x8xf32>
    %118 = arith.mulf %113, %117 : vector<8x8xf32>
    %cst_39 = arith.constant dense<0.000000e+00> : vector<8x8xf32>
    %119 = tpu.matmul %118, %107, %cst_39 {dimension_numbers = #tpu.dot_dimension_numbers<[1], [0], [0], [1], [0, 0, 1, 1], [], []>} : vector<8x8xf32>, vector<8x8xf32>, vector<8x8xf32> -> vector<8x8xf32>
    %120 = vector.extract_strided_slice %13 {offsets = [8, 24], sizes = [8, 8], strides = [1, 1]} : vector<16x96xf32> to vector<8x8xf32>
    %121 = vector.extract_strided_slice %13 {offsets = [8, 56], sizes = [8, 8], strides = [1, 1]} : vector<16x96xf32> to vector<8x8xf32>
    %122 = vector.extract_strided_slice %13 {offsets = [8, 88], sizes = [8, 8], strides = [1, 1]} : vector<16x96xf32> to vector<8x8xf32>
    %cst_40 = arith.constant dense<0.000000e+00> : vector<8x8xf32>
    %123 = tpu.matmul %120, %121, %cst_40 {dimension_numbers = #tpu.dot_dimension_numbers<[1], [1], [0], [0], [0, 0, 1, 0], [], []>} : vector<8x8xf32>, vector<8x8xf32>, vector<8x8xf32> -> vector<8x8xf32>
    %cst_41 = arith.constant dense<0xFF800000> : vector<8xf32>
    %124 = vector.multi_reduction <maximumf>, %123, %cst_41 [1] : vector<8x8xf32> to vector<8xf32>
    %125 = vector.shape_cast %124 : vector<8xf32> to vector<8x1xf32>
    %126 = vector.broadcast %125 : vector<8x1xf32> to vector<8x8xf32>
    %127 = arith.subf %123, %126 : vector<8x8xf32>
    %128 = math.exp %127 : vector<8x8xf32>
    %cst_42 = arith.constant dense<0.000000e+00> : vector<8xf32>
    %129 = vector.multi_reduction <add>, %128, %cst_42 [1] : vector<8x8xf32> to vector<8xf32>
    %130 = vector.shape_cast %129 : vector<8xf32> to vector<8x1xf32>
    %131 = tpu.reciprocal %130 {approx = true} : vector<8x1xf32> -> vector<8x1xf32>
    %132 = vector.broadcast %131 : vector<8x1xf32> to vector<8x8xf32>
    %133 = arith.mulf %128, %132 : vector<8x8xf32>
    %cst_43 = arith.constant dense<0.000000e+00> : vector<8x8xf32>
    %134 = tpu.matmul %133, %122, %cst_43 {dimension_numbers = #tpu.dot_dimension_numbers<[1], [0], [0], [1], [0, 0, 1, 1], [], []>} : vector<8x8xf32>, vector<8x8xf32>, vector<8x8xf32> -> vector<8x8xf32>
    %135 = tpu.concatenate %89, %104, %119, %134 in 1 : vector<8x8xf32>, vector<8x8xf32>, vector<8x8xf32>, vector<8x8xf32> -> vector<8x32xf32>
    %136 = tpu.concatenate %74, %135 in 0 : vector<8x32xf32>, vector<8x32xf32> -> vector<16x32xf32>
    %137 = arith.truncf %136 : vector<16x32xf32> to vector<16x32xbf16>
    %c0_44 = arith.constant 0 : index
    %c0_45 = arith.constant 0 : index
    %c0_46 = arith.constant 0 : index
    %138 = vector.load %arg5[%c0_44, %c0_45, %c0_46] : memref<2x32x32xbf16, #tpu.memory_space<vmem>>, vector<1x32x32xbf16>
    %139 = vector.shape_cast %138 : vector<1x32x32xbf16> to vector<32x32xbf16>
    %cst_47 = arith.constant dense<0.000000e+00> : vector<16x32xf32>
    %140 = tpu.matmul %137, %139, %cst_47 {dimension_numbers = #tpu.dot_dimension_numbers<[1], [0], [0], [1], [0, 0, 1, 1], [], []>} : vector<16x32xbf16>, vector<32x32xbf16>, vector<16x32xf32> -> vector<16x32xf32>
    %c0_48 = arith.constant 0 : index
    %c0_49 = arith.constant 0 : index
    %c0_50 = arith.constant 0 : index
    %c0_51 = arith.constant 0 : index
    %141 = vector.load %arg9[%c0_48, %c0_49, %c0_50, %c0_51] : memref<2x6x1x32xf32, #tpu.memory_space<vmem>>, vector<1x1x1x32xf32>
    %142 = vector.shape_cast %141 : vector<1x1x1x32xf32> to vector<1x32xf32>
    %143 = vector.broadcast %142 : vector<1x32xf32> to vector<16x32xf32>
    %144 = arith.addf %140, %143 : vector<16x32xf32>
    %145 = arith.addf %5, %144 : vector<16x32xf32>
    %c0_52 = arith.constant 0 : index
    %c2 = arith.constant 2 : index
    %c0_53 = arith.constant 0 : index
    %c0_54 = arith.constant 0 : index
    %146 = vector.load %arg9[%c0_52, %c2, %c0_53, %c0_54] : memref<2x6x1x32xf32, #tpu.memory_space<vmem>>, vector<1x1x1x32xf32>
    %147 = vector.shape_cast %146 : vector<1x1x1x32xf32> to vector<1x32xf32>
    %c0_55 = arith.constant 0 : index
    %c3 = arith.constant 3 : index
    %c0_56 = arith.constant 0 : index
    %c0_57 = arith.constant 0 : index
    %148 = vector.load %arg9[%c0_55, %c3, %c0_56, %c0_57] : memref<2x6x1x32xf32, #tpu.memory_space<vmem>>, vector<1x1x1x32xf32>
    %149 = vector.shape_cast %148 : vector<1x1x1x32xf32> to vector<1x32xf32>
    %cst_58 = arith.constant dense<0.000000e+00> : vector<16xf32>
    %150 = vector.multi_reduction <add>, %145, %cst_58 [1] : vector<16x32xf32> to vector<16xf32>
    %151 = vector.shape_cast %150 : vector<16xf32> to vector<16x1xf32>
    %cst_59 = arith.constant 3.200000e+01 : f32
    %152 = vector.broadcast %cst_59 : f32 to vector<16x1xf32>
    %153 = arith.divf %151, %152 : vector<16x1xf32>
    %154 = vector.broadcast %153 : vector<16x1xf32> to vector<16x32xf32>
    %155 = arith.subf %145, %154 : vector<16x32xf32>
    %156 = arith.mulf %155, %155 : vector<16x32xf32>
    %cst_60 = arith.constant dense<0.000000e+00> : vector<16xf32>
    %157 = vector.multi_reduction <add>, %156, %cst_60 [1] : vector<16x32xf32> to vector<16xf32>
    %158 = vector.shape_cast %157 : vector<16xf32> to vector<16x1xf32>
    %cst_61 = arith.constant 3.200000e+01 : f32
    %159 = vector.broadcast %cst_61 : f32 to vector<16x1xf32>
    %160 = arith.divf %158, %159 : vector<16x1xf32>
    %161 = vector.broadcast %153 : vector<16x1xf32> to vector<16x32xf32>
    %162 = arith.subf %145, %161 : vector<16x32xf32>
    %cst_62 = arith.constant 9.99999974E-6 : f32
    %163 = vector.broadcast %cst_62 : f32 to vector<16x1xf32>
    %164 = arith.addf %160, %163 : vector<16x1xf32>
    %165 = math.rsqrt %164 : vector<16x1xf32>
    %166 = vector.broadcast %165 : vector<16x1xf32> to vector<16x32xf32>
    %167 = arith.mulf %162, %166 : vector<16x32xf32>
    %168 = vector.broadcast %147 : vector<1x32xf32> to vector<16x32xf32>
    %169 = arith.mulf %167, %168 : vector<16x32xf32>
    %170 = vector.broadcast %149 : vector<1x32xf32> to vector<16x32xf32>
    %171 = arith.addf %169, %170 : vector<16x32xf32>
    %172 = arith.truncf %171 : vector<16x32xf32> to vector<16x32xbf16>
    %c0_63 = arith.constant 0 : index
    %c0_64 = arith.constant 0 : index
    %c0_65 = arith.constant 0 : index
    %173 = vector.load %arg6[%c0_63, %c0_64, %c0_65] : memref<2x32x2048xbf16, #tpu.memory_space<vmem>>, vector<1x32x2048xbf16>
    %174 = vector.shape_cast %173 : vector<1x32x2048xbf16> to vector<32x2048xbf16>
    %cst_66 = arith.constant dense<0.000000e+00> : vector<16x2048xf32>
    %175 = tpu.matmul %172, %174, %cst_66 {dimension_numbers = #tpu.dot_dimension_numbers<[1], [0], [0], [1], [0, 0, 1, 1], [], []>} : vector<16x32xbf16>, vector<32x2048xbf16>, vector<16x2048xf32> -> vector<16x2048xf32>
    %c0_67 = arith.constant 0 : index
    %c0_68 = arith.constant 0 : index
    %c0_69 = arith.constant 0 : index
    %176 = vector.load %arg7[%c0_67, %c0_68, %c0_69] : memref<2x1x2048xf32, #tpu.memory_space<vmem>>, vector<1x1x2048xf32>
    %177 = vector.shape_cast %176 : vector<1x1x2048xf32> to vector<1x2048xf32>
    %178 = vector.broadcast %177 : vector<1x2048xf32> to vector<16x2048xf32>
    %179 = arith.addf %175, %178 : vector<16x2048xf32>
    %cst_70 = arith.constant 0.000000e+00 : f32
    %180 = vector.broadcast %cst_70 : f32 to vector<16x2048xf32>
    %181 = arith.maximumf %179, %180 : vector<16x2048xf32>
    %182 = arith.truncf %181 : vector<16x2048xf32> to vector<16x2048xbf16>
    %c0_71 = arith.constant 0 : index
    %c0_72 = arith.constant 0 : index
    %c0_73 = arith.constant 0 : index
    %183 = vector.load %arg8[%c0_71, %c0_72, %c0_73] : memref<2x32x2048xbf16, #tpu.memory_space<vmem>>, vector<1x32x2048xbf16>
    %184 = vector.shape_cast %183 : vector<1x32x2048xbf16> to vector<32x2048xbf16>
    %cst_74 = arith.constant dense<0.000000e+00> : vector<16x32xf32>
    %185 = tpu.matmul %182, %184, %cst_74 {dimension_numbers = #tpu.dot_dimension_numbers<[1], [1], [0], [0], [0, 0, 1, 0], [], []>} : vector<16x2048xbf16>, vector<32x2048xbf16>, vector<16x32xf32> -> vector<16x32xf32>
    %c0_75 = arith.constant 0 : index
    %c1 = arith.constant 1 : index
    %c0_76 = arith.constant 0 : index
    %c0_77 = arith.constant 0 : index
    %186 = vector.load %arg9[%c0_75, %c1, %c0_76, %c0_77] : memref<2x6x1x32xf32, #tpu.memory_space<vmem>>, vector<1x1x1x32xf32>
    %187 = vector.shape_cast %186 : vector<1x1x1x32xf32> to vector<1x32xf32>
    %188 = vector.broadcast %187 : vector<1x32xf32> to vector<16x32xf32>
    %189 = arith.addf %185, %188 : vector<16x32xf32>
    %190 = arith.addf %171, %189 : vector<16x32xf32>
    %c0_78 = arith.constant 0 : index
    %c4 = arith.constant 4 : index
    %c0_79 = arith.constant 0 : index
    %c0_80 = arith.constant 0 : index
    %191 = vector.load %arg9[%c0_78, %c4, %c0_79, %c0_80] : memref<2x6x1x32xf32, #tpu.memory_space<vmem>>, vector<1x1x1x32xf32>
    %192 = vector.shape_cast %191 : vector<1x1x1x32xf32> to vector<1x32xf32>
    %c0_81 = arith.constant 0 : index
    %c5 = arith.constant 5 : index
    %c0_82 = arith.constant 0 : index
    %c0_83 = arith.constant 0 : index
    %193 = vector.load %arg9[%c0_81, %c5, %c0_82, %c0_83] : memref<2x6x1x32xf32, #tpu.memory_space<vmem>>, vector<1x1x1x32xf32>
    %194 = vector.shape_cast %193 : vector<1x1x1x32xf32> to vector<1x32xf32>
    %cst_84 = arith.constant dense<0.000000e+00> : vector<16xf32>
    %195 = vector.multi_reduction <add>, %190, %cst_84 [1] : vector<16x32xf32> to vector<16xf32>
    %196 = vector.shape_cast %195 : vector<16xf32> to vector<16x1xf32>
    %cst_85 = arith.constant 3.200000e+01 : f32
    %197 = vector.broadcast %cst_85 : f32 to vector<16x1xf32>
    %198 = arith.divf %196, %197 : vector<16x1xf32>
    %199 = vector.broadcast %198 : vector<16x1xf32> to vector<16x32xf32>
    %200 = arith.subf %190, %199 : vector<16x32xf32>
    %201 = arith.mulf %200, %200 : vector<16x32xf32>
    %cst_86 = arith.constant dense<0.000000e+00> : vector<16xf32>
    %202 = vector.multi_reduction <add>, %201, %cst_86 [1] : vector<16x32xf32> to vector<16xf32>
    %203 = vector.shape_cast %202 : vector<16xf32> to vector<16x1xf32>
    %cst_87 = arith.constant 3.200000e+01 : f32
    %204 = vector.broadcast %cst_87 : f32 to vector<16x1xf32>
    %205 = arith.divf %203, %204 : vector<16x1xf32>
    %206 = vector.broadcast %198 : vector<16x1xf32> to vector<16x32xf32>
    %207 = arith.subf %190, %206 : vector<16x32xf32>
    %cst_88 = arith.constant 9.99999974E-6 : f32
    %208 = vector.broadcast %cst_88 : f32 to vector<16x1xf32>
    %209 = arith.addf %205, %208 : vector<16x1xf32>
    %210 = math.rsqrt %209 : vector<16x1xf32>
    %211 = vector.broadcast %210 : vector<16x1xf32> to vector<16x32xf32>
    %212 = arith.mulf %207, %211 : vector<16x32xf32>
    %213 = vector.broadcast %192 : vector<1x32xf32> to vector<16x32xf32>
    %214 = arith.mulf %212, %213 : vector<16x32xf32>
    %215 = vector.broadcast %194 : vector<1x32xf32> to vector<16x32xf32>
    %216 = arith.addf %214, %215 : vector<16x32xf32>
    %217 = arith.truncf %216 : vector<16x32xf32> to vector<16x32xbf16>
    %c1_89 = arith.constant 1 : index
    %c0_90 = arith.constant 0 : index
    %c0_91 = arith.constant 0 : index
    %218 = vector.load %arg3[%c1_89, %c0_90, %c0_91] : memref<2x32x96xbf16, #tpu.memory_space<vmem>>, vector<1x32x96xbf16>
    %219 = vector.shape_cast %218 : vector<1x32x96xbf16> to vector<32x96xbf16>
    %cst_92 = arith.constant dense<0.000000e+00> : vector<16x96xf32>
    %220 = tpu.matmul %217, %219, %cst_92 {dimension_numbers = #tpu.dot_dimension_numbers<[1], [0], [0], [1], [0, 0, 1, 1], [], []>} : vector<16x32xbf16>, vector<32x96xbf16>, vector<16x96xf32> -> vector<16x96xf32>
    %c1_93 = arith.constant 1 : index
    %c0_94 = arith.constant 0 : index
    %c0_95 = arith.constant 0 : index
    %221 = vector.load %arg4[%c1_93, %c0_94, %c0_95] : memref<2x1x96xf32, #tpu.memory_space<vmem>>, vector<1x1x96xf32>
    %222 = vector.shape_cast %221 : vector<1x1x96xf32> to vector<1x96xf32>
    %223 = vector.broadcast %222 : vector<1x96xf32> to vector<16x96xf32>
    %224 = arith.addf %220, %223 : vector<16x96xf32>
    %225 = vector.extract_strided_slice %224 {offsets = [0, 0], sizes = [8, 8], strides = [1, 1]} : vector<16x96xf32> to vector<8x8xf32>
    %226 = vector.extract_strided_slice %224 {offsets = [0, 32], sizes = [8, 8], strides = [1, 1]} : vector<16x96xf32> to vector<8x8xf32>
    %227 = vector.extract_strided_slice %224 {offsets = [0, 64], sizes = [8, 8], strides = [1, 1]} : vector<16x96xf32> to vector<8x8xf32>
    %cst_96 = arith.constant dense<0.000000e+00> : vector<8x8xf32>
    %228 = tpu.matmul %225, %226, %cst_96 {dimension_numbers = #tpu.dot_dimension_numbers<[1], [1], [0], [0], [0, 0, 1, 0], [], []>} : vector<8x8xf32>, vector<8x8xf32>, vector<8x8xf32> -> vector<8x8xf32>
    %cst_97 = arith.constant dense<0xFF800000> : vector<8xf32>
    %229 = vector.multi_reduction <maximumf>, %228, %cst_97 [1] : vector<8x8xf32> to vector<8xf32>
    %230 = vector.shape_cast %229 : vector<8xf32> to vector<8x1xf32>
    %231 = vector.broadcast %230 : vector<8x1xf32> to vector<8x8xf32>
    %232 = arith.subf %228, %231 : vector<8x8xf32>
    %233 = math.exp %232 : vector<8x8xf32>
    %cst_98 = arith.constant dense<0.000000e+00> : vector<8xf32>
    %234 = vector.multi_reduction <add>, %233, %cst_98 [1] : vector<8x8xf32> to vector<8xf32>
    %235 = vector.shape_cast %234 : vector<8xf32> to vector<8x1xf32>
    %236 = tpu.reciprocal %235 {approx = true} : vector<8x1xf32> -> vector<8x1xf32>
    %237 = vector.broadcast %236 : vector<8x1xf32> to vector<8x8xf32>
    %238 = arith.mulf %233, %237 : vector<8x8xf32>
    %cst_99 = arith.constant dense<0.000000e+00> : vector<8x8xf32>
    %239 = tpu.matmul %238, %227, %cst_99 {dimension_numbers = #tpu.dot_dimension_numbers<[1], [0], [0], [1], [0, 0, 1, 1], [], []>} : vector<8x8xf32>, vector<8x8xf32>, vector<8x8xf32> -> vector<8x8xf32>
    %240 = vector.extract_strided_slice %224 {offsets = [0, 8], sizes = [8, 8], strides = [1, 1]} : vector<16x96xf32> to vector<8x8xf32>
    %241 = vector.extract_strided_slice %224 {offsets = [0, 40], sizes = [8, 8], strides = [1, 1]} : vector<16x96xf32> to vector<8x8xf32>
    %242 = vector.extract_strided_slice %224 {offsets = [0, 72], sizes = [8, 8], strides = [1, 1]} : vector<16x96xf32> to vector<8x8xf32>
    %cst_100 = arith.constant dense<0.000000e+00> : vector<8x8xf32>
    %243 = tpu.matmul %240, %241, %cst_100 {dimension_numbers = #tpu.dot_dimension_numbers<[1], [1], [0], [0], [0, 0, 1, 0], [], []>} : vector<8x8xf32>, vector<8x8xf32>, vector<8x8xf32> -> vector<8x8xf32>
    %cst_101 = arith.constant dense<0xFF800000> : vector<8xf32>
    %244 = vector.multi_reduction <maximumf>, %243, %cst_101 [1] : vector<8x8xf32> to vector<8xf32>
    %245 = vector.shape_cast %244 : vector<8xf32> to vector<8x1xf32>
    %246 = vector.broadcast %245 : vector<8x1xf32> to vector<8x8xf32>
    %247 = arith.subf %243, %246 : vector<8x8xf32>
    %248 = math.exp %247 : vector<8x8xf32>
    %cst_102 = arith.constant dense<0.000000e+00> : vector<8xf32>
    %249 = vector.multi_reduction <add>, %248, %cst_102 [1] : vector<8x8xf32> to vector<8xf32>
    %250 = vector.shape_cast %249 : vector<8xf32> to vector<8x1xf32>
    %251 = tpu.reciprocal %250 {approx = true} : vector<8x1xf32> -> vector<8x1xf32>
    %252 = vector.broadcast %251 : vector<8x1xf32> to vector<8x8xf32>
    %253 = arith.mulf %248, %252 : vector<8x8xf32>
    %cst_103 = arith.constant dense<0.000000e+00> : vector<8x8xf32>
    %254 = tpu.matmul %253, %242, %cst_103 {dimension_numbers = #tpu.dot_dimension_numbers<[1], [0], [0], [1], [0, 0, 1, 1], [], []>} : vector<8x8xf32>, vector<8x8xf32>, vector<8x8xf32> -> vector<8x8xf32>
    %255 = vector.extract_strided_slice %224 {offsets = [0, 16], sizes = [8, 8], strides = [1, 1]} : vector<16x96xf32> to vector<8x8xf32>
    %256 = vector.extract_strided_slice %224 {offsets = [0, 48], sizes = [8, 8], strides = [1, 1]} : vector<16x96xf32> to vector<8x8xf32>
    %257 = vector.extract_strided_slice %224 {offsets = [0, 80], sizes = [8, 8], strides = [1, 1]} : vector<16x96xf32> to vector<8x8xf32>
    %cst_104 = arith.constant dense<0.000000e+00> : vector<8x8xf32>
    %258 = tpu.matmul %255, %256, %cst_104 {dimension_numbers = #tpu.dot_dimension_numbers<[1], [1], [0], [0], [0, 0, 1, 0], [], []>} : vector<8x8xf32>, vector<8x8xf32>, vector<8x8xf32> -> vector<8x8xf32>
    %cst_105 = arith.constant dense<0xFF800000> : vector<8xf32>
    %259 = vector.multi_reduction <maximumf>, %258, %cst_105 [1] : vector<8x8xf32> to vector<8xf32>
    %260 = vector.shape_cast %259 : vector<8xf32> to vector<8x1xf32>
    %261 = vector.broadcast %260 : vector<8x1xf32> to vector<8x8xf32>
    %262 = arith.subf %258, %261 : vector<8x8xf32>
    %263 = math.exp %262 : vector<8x8xf32>
    %cst_106 = arith.constant dense<0.000000e+00> : vector<8xf32>
    %264 = vector.multi_reduction <add>, %263, %cst_106 [1] : vector<8x8xf32> to vector<8xf32>
    %265 = vector.shape_cast %264 : vector<8xf32> to vector<8x1xf32>
    %266 = tpu.reciprocal %265 {approx = true} : vector<8x1xf32> -> vector<8x1xf32>
    %267 = vector.broadcast %266 : vector<8x1xf32> to vector<8x8xf32>
    %268 = arith.mulf %263, %267 : vector<8x8xf32>
    %cst_107 = arith.constant dense<0.000000e+00> : vector<8x8xf32>
    %269 = tpu.matmul %268, %257, %cst_107 {dimension_numbers = #tpu.dot_dimension_numbers<[1], [0], [0], [1], [0, 0, 1, 1], [], []>} : vector<8x8xf32>, vector<8x8xf32>, vector<8x8xf32> -> vector<8x8xf32>
    %270 = vector.extract_strided_slice %224 {offsets = [0, 24], sizes = [8, 8], strides = [1, 1]} : vector<16x96xf32> to vector<8x8xf32>
    %271 = vector.extract_strided_slice %224 {offsets = [0, 56], sizes = [8, 8], strides = [1, 1]} : vector<16x96xf32> to vector<8x8xf32>
    %272 = vector.extract_strided_slice %224 {offsets = [0, 88], sizes = [8, 8], strides = [1, 1]} : vector<16x96xf32> to vector<8x8xf32>
    %cst_108 = arith.constant dense<0.000000e+00> : vector<8x8xf32>
    %273 = tpu.matmul %270, %271, %cst_108 {dimension_numbers = #tpu.dot_dimension_numbers<[1], [1], [0], [0], [0, 0, 1, 0], [], []>} : vector<8x8xf32>, vector<8x8xf32>, vector<8x8xf32> -> vector<8x8xf32>
    %cst_109 = arith.constant dense<0xFF800000> : vector<8xf32>
    %274 = vector.multi_reduction <maximumf>, %273, %cst_109 [1] : vector<8x8xf32> to vector<8xf32>
    %275 = vector.shape_cast %274 : vector<8xf32> to vector<8x1xf32>
    %276 = vector.broadcast %275 : vector<8x1xf32> to vector<8x8xf32>
    %277 = arith.subf %273, %276 : vector<8x8xf32>
    %278 = math.exp %277 : vector<8x8xf32>
    %cst_110 = arith.constant dense<0.000000e+00> : vector<8xf32>
    %279 = vector.multi_reduction <add>, %278, %cst_110 [1] : vector<8x8xf32> to vector<8xf32>
    %280 = vector.shape_cast %279 : vector<8xf32> to vector<8x1xf32>
    %281 = tpu.reciprocal %280 {approx = true} : vector<8x1xf32> -> vector<8x1xf32>
    %282 = vector.broadcast %281 : vector<8x1xf32> to vector<8x8xf32>
    %283 = arith.mulf %278, %282 : vector<8x8xf32>
    %cst_111 = arith.constant dense<0.000000e+00> : vector<8x8xf32>
    %284 = tpu.matmul %283, %272, %cst_111 {dimension_numbers = #tpu.dot_dimension_numbers<[1], [0], [0], [1], [0, 0, 1, 1], [], []>} : vector<8x8xf32>, vector<8x8xf32>, vector<8x8xf32> -> vector<8x8xf32>
    %285 = tpu.concatenate %239, %254, %269, %284 in 1 : vector<8x8xf32>, vector<8x8xf32>, vector<8x8xf32>, vector<8x8xf32> -> vector<8x32xf32>
    %286 = vector.extract_strided_slice %224 {offsets = [8, 0], sizes = [8, 8], strides = [1, 1]} : vector<16x96xf32> to vector<8x8xf32>
    %287 = vector.extract_strided_slice %224 {offsets = [8, 32], sizes = [8, 8], strides = [1, 1]} : vector<16x96xf32> to vector<8x8xf32>
    %288 = vector.extract_strided_slice %224 {offsets = [8, 64], sizes = [8, 8], strides = [1, 1]} : vector<16x96xf32> to vector<8x8xf32>
    %cst_112 = arith.constant dense<0.000000e+00> : vector<8x8xf32>
    %289 = tpu.matmul %286, %287, %cst_112 {dimension_numbers = #tpu.dot_dimension_numbers<[1], [1], [0], [0], [0, 0, 1, 0], [], []>} : vector<8x8xf32>, vector<8x8xf32>, vector<8x8xf32> -> vector<8x8xf32>
    %cst_113 = arith.constant dense<0xFF800000> : vector<8xf32>
    %290 = vector.multi_reduction <maximumf>, %289, %cst_113 [1] : vector<8x8xf32> to vector<8xf32>
    %291 = vector.shape_cast %290 : vector<8xf32> to vector<8x1xf32>
    %292 = vector.broadcast %291 : vector<8x1xf32> to vector<8x8xf32>
    %293 = arith.subf %289, %292 : vector<8x8xf32>
    %294 = math.exp %293 : vector<8x8xf32>
    %cst_114 = arith.constant dense<0.000000e+00> : vector<8xf32>
    %295 = vector.multi_reduction <add>, %294, %cst_114 [1] : vector<8x8xf32> to vector<8xf32>
    %296 = vector.shape_cast %295 : vector<8xf32> to vector<8x1xf32>
    %297 = tpu.reciprocal %296 {approx = true} : vector<8x1xf32> -> vector<8x1xf32>
    %298 = vector.broadcast %297 : vector<8x1xf32> to vector<8x8xf32>
    %299 = arith.mulf %294, %298 : vector<8x8xf32>
    %cst_115 = arith.constant dense<0.000000e+00> : vector<8x8xf32>
    %300 = tpu.matmul %299, %288, %cst_115 {dimension_numbers = #tpu.dot_dimension_numbers<[1], [0], [0], [1], [0, 0, 1, 1], [], []>} : vector<8x8xf32>, vector<8x8xf32>, vector<8x8xf32> -> vector<8x8xf32>
    %301 = vector.extract_strided_slice %224 {offsets = [8, 8], sizes = [8, 8], strides = [1, 1]} : vector<16x96xf32> to vector<8x8xf32>
    %302 = vector.extract_strided_slice %224 {offsets = [8, 40], sizes = [8, 8], strides = [1, 1]} : vector<16x96xf32> to vector<8x8xf32>
    %303 = vector.extract_strided_slice %224 {offsets = [8, 72], sizes = [8, 8], strides = [1, 1]} : vector<16x96xf32> to vector<8x8xf32>
    %cst_116 = arith.constant dense<0.000000e+00> : vector<8x8xf32>
    %304 = tpu.matmul %301, %302, %cst_116 {dimension_numbers = #tpu.dot_dimension_numbers<[1], [1], [0], [0], [0, 0, 1, 0], [], []>} : vector<8x8xf32>, vector<8x8xf32>, vector<8x8xf32> -> vector<8x8xf32>
    %cst_117 = arith.constant dense<0xFF800000> : vector<8xf32>
    %305 = vector.multi_reduction <maximumf>, %304, %cst_117 [1] : vector<8x8xf32> to vector<8xf32>
    %306 = vector.shape_cast %305 : vector<8xf32> to vector<8x1xf32>
    %307 = vector.broadcast %306 : vector<8x1xf32> to vector<8x8xf32>
    %308 = arith.subf %304, %307 : vector<8x8xf32>
    %309 = math.exp %308 : vector<8x8xf32>
    %cst_118 = arith.constant dense<0.000000e+00> : vector<8xf32>
    %310 = vector.multi_reduction <add>, %309, %cst_118 [1] : vector<8x8xf32> to vector<8xf32>
    %311 = vector.shape_cast %310 : vector<8xf32> to vector<8x1xf32>
    %312 = tpu.reciprocal %311 {approx = true} : vector<8x1xf32> -> vector<8x1xf32>
    %313 = vector.broadcast %312 : vector<8x1xf32> to vector<8x8xf32>
    %314 = arith.mulf %309, %313 : vector<8x8xf32>
    %cst_119 = arith.constant dense<0.000000e+00> : vector<8x8xf32>
    %315 = tpu.matmul %314, %303, %cst_119 {dimension_numbers = #tpu.dot_dimension_numbers<[1], [0], [0], [1], [0, 0, 1, 1], [], []>} : vector<8x8xf32>, vector<8x8xf32>, vector<8x8xf32> -> vector<8x8xf32>
    %316 = vector.extract_strided_slice %224 {offsets = [8, 16], sizes = [8, 8], strides = [1, 1]} : vector<16x96xf32> to vector<8x8xf32>
    %317 = vector.extract_strided_slice %224 {offsets = [8, 48], sizes = [8, 8], strides = [1, 1]} : vector<16x96xf32> to vector<8x8xf32>
    %318 = vector.extract_strided_slice %224 {offsets = [8, 80], sizes = [8, 8], strides = [1, 1]} : vector<16x96xf32> to vector<8x8xf32>
    %cst_120 = arith.constant dense<0.000000e+00> : vector<8x8xf32>
    %319 = tpu.matmul %316, %317, %cst_120 {dimension_numbers = #tpu.dot_dimension_numbers<[1], [1], [0], [0], [0, 0, 1, 0], [], []>} : vector<8x8xf32>, vector<8x8xf32>, vector<8x8xf32> -> vector<8x8xf32>
    %cst_121 = arith.constant dense<0xFF800000> : vector<8xf32>
    %320 = vector.multi_reduction <maximumf>, %319, %cst_121 [1] : vector<8x8xf32> to vector<8xf32>
    %321 = vector.shape_cast %320 : vector<8xf32> to vector<8x1xf32>
    %322 = vector.broadcast %321 : vector<8x1xf32> to vector<8x8xf32>
    %323 = arith.subf %319, %322 : vector<8x8xf32>
    %324 = math.exp %323 : vector<8x8xf32>
    %cst_122 = arith.constant dense<0.000000e+00> : vector<8xf32>
    %325 = vector.multi_reduction <add>, %324, %cst_122 [1] : vector<8x8xf32> to vector<8xf32>
    %326 = vector.shape_cast %325 : vector<8xf32> to vector<8x1xf32>
    %327 = tpu.reciprocal %326 {approx = true} : vector<8x1xf32> -> vector<8x1xf32>
    %328 = vector.broadcast %327 : vector<8x1xf32> to vector<8x8xf32>
    %329 = arith.mulf %324, %328 : vector<8x8xf32>
    %cst_123 = arith.constant dense<0.000000e+00> : vector<8x8xf32>
    %330 = tpu.matmul %329, %318, %cst_123 {dimension_numbers = #tpu.dot_dimension_numbers<[1], [0], [0], [1], [0, 0, 1, 1], [], []>} : vector<8x8xf32>, vector<8x8xf32>, vector<8x8xf32> -> vector<8x8xf32>
    %331 = vector.extract_strided_slice %224 {offsets = [8, 24], sizes = [8, 8], strides = [1, 1]} : vector<16x96xf32> to vector<8x8xf32>
    %332 = vector.extract_strided_slice %224 {offsets = [8, 56], sizes = [8, 8], strides = [1, 1]} : vector<16x96xf32> to vector<8x8xf32>
    %333 = vector.extract_strided_slice %224 {offsets = [8, 88], sizes = [8, 8], strides = [1, 1]} : vector<16x96xf32> to vector<8x8xf32>
    %cst_124 = arith.constant dense<0.000000e+00> : vector<8x8xf32>
    %334 = tpu.matmul %331, %332, %cst_124 {dimension_numbers = #tpu.dot_dimension_numbers<[1], [1], [0], [0], [0, 0, 1, 0], [], []>} : vector<8x8xf32>, vector<8x8xf32>, vector<8x8xf32> -> vector<8x8xf32>
    %cst_125 = arith.constant dense<0xFF800000> : vector<8xf32>
    %335 = vector.multi_reduction <maximumf>, %334, %cst_125 [1] : vector<8x8xf32> to vector<8xf32>
    %336 = vector.shape_cast %335 : vector<8xf32> to vector<8x1xf32>
    %337 = vector.broadcast %336 : vector<8x1xf32> to vector<8x8xf32>
    %338 = arith.subf %334, %337 : vector<8x8xf32>
    %339 = math.exp %338 : vector<8x8xf32>
    %cst_126 = arith.constant dense<0.000000e+00> : vector<8xf32>
    %340 = vector.multi_reduction <add>, %339, %cst_126 [1] : vector<8x8xf32> to vector<8xf32>
    %341 = vector.shape_cast %340 : vector<8xf32> to vector<8x1xf32>
    %342 = tpu.reciprocal %341 {approx = true} : vector<8x1xf32> -> vector<8x1xf32>
    %343 = vector.broadcast %342 : vector<8x1xf32> to vector<8x8xf32>
    %344 = arith.mulf %339, %343 : vector<8x8xf32>
    %cst_127 = arith.constant dense<0.000000e+00> : vector<8x8xf32>
    %345 = tpu.matmul %344, %333, %cst_127 {dimension_numbers = #tpu.dot_dimension_numbers<[1], [0], [0], [1], [0, 0, 1, 1], [], []>} : vector<8x8xf32>, vector<8x8xf32>, vector<8x8xf32> -> vector<8x8xf32>
    %346 = tpu.concatenate %300, %315, %330, %345 in 1 : vector<8x8xf32>, vector<8x8xf32>, vector<8x8xf32>, vector<8x8xf32> -> vector<8x32xf32>
    %347 = tpu.concatenate %285, %346 in 0 : vector<8x32xf32>, vector<8x32xf32> -> vector<16x32xf32>
    %348 = arith.truncf %347 : vector<16x32xf32> to vector<16x32xbf16>
    %c1_128 = arith.constant 1 : index
    %c0_129 = arith.constant 0 : index
    %c0_130 = arith.constant 0 : index
    %349 = vector.load %arg5[%c1_128, %c0_129, %c0_130] : memref<2x32x32xbf16, #tpu.memory_space<vmem>>, vector<1x32x32xbf16>
    %350 = vector.shape_cast %349 : vector<1x32x32xbf16> to vector<32x32xbf16>
    %cst_131 = arith.constant dense<0.000000e+00> : vector<16x32xf32>
    %351 = tpu.matmul %348, %350, %cst_131 {dimension_numbers = #tpu.dot_dimension_numbers<[1], [0], [0], [1], [0, 0, 1, 1], [], []>} : vector<16x32xbf16>, vector<32x32xbf16>, vector<16x32xf32> -> vector<16x32xf32>
    %c1_132 = arith.constant 1 : index
    %c0_133 = arith.constant 0 : index
    %c0_134 = arith.constant 0 : index
    %c0_135 = arith.constant 0 : index
    %352 = vector.load %arg9[%c1_132, %c0_133, %c0_134, %c0_135] : memref<2x6x1x32xf32, #tpu.memory_space<vmem>>, vector<1x1x1x32xf32>
    %353 = vector.shape_cast %352 : vector<1x1x1x32xf32> to vector<1x32xf32>
    %354 = vector.broadcast %353 : vector<1x32xf32> to vector<16x32xf32>
    %355 = arith.addf %351, %354 : vector<16x32xf32>
    %356 = arith.addf %216, %355 : vector<16x32xf32>
    %c1_136 = arith.constant 1 : index
    %c2_137 = arith.constant 2 : index
    %c0_138 = arith.constant 0 : index
    %c0_139 = arith.constant 0 : index
    %357 = vector.load %arg9[%c1_136, %c2_137, %c0_138, %c0_139] : memref<2x6x1x32xf32, #tpu.memory_space<vmem>>, vector<1x1x1x32xf32>
    %358 = vector.shape_cast %357 : vector<1x1x1x32xf32> to vector<1x32xf32>
    %c1_140 = arith.constant 1 : index
    %c3_141 = arith.constant 3 : index
    %c0_142 = arith.constant 0 : index
    %c0_143 = arith.constant 0 : index
    %359 = vector.load %arg9[%c1_140, %c3_141, %c0_142, %c0_143] : memref<2x6x1x32xf32, #tpu.memory_space<vmem>>, vector<1x1x1x32xf32>
    %360 = vector.shape_cast %359 : vector<1x1x1x32xf32> to vector<1x32xf32>
    %cst_144 = arith.constant dense<0.000000e+00> : vector<16xf32>
    %361 = vector.multi_reduction <add>, %356, %cst_144 [1] : vector<16x32xf32> to vector<16xf32>
    %362 = vector.shape_cast %361 : vector<16xf32> to vector<16x1xf32>
    %cst_145 = arith.constant 3.200000e+01 : f32
    %363 = vector.broadcast %cst_145 : f32 to vector<16x1xf32>
    %364 = arith.divf %362, %363 : vector<16x1xf32>
    %365 = vector.broadcast %364 : vector<16x1xf32> to vector<16x32xf32>
    %366 = arith.subf %356, %365 : vector<16x32xf32>
    %367 = arith.mulf %366, %366 : vector<16x32xf32>
    %cst_146 = arith.constant dense<0.000000e+00> : vector<16xf32>
    %368 = vector.multi_reduction <add>, %367, %cst_146 [1] : vector<16x32xf32> to vector<16xf32>
    %369 = vector.shape_cast %368 : vector<16xf32> to vector<16x1xf32>
    %cst_147 = arith.constant 3.200000e+01 : f32
    %370 = vector.broadcast %cst_147 : f32 to vector<16x1xf32>
    %371 = arith.divf %369, %370 : vector<16x1xf32>
    %372 = vector.broadcast %364 : vector<16x1xf32> to vector<16x32xf32>
    %373 = arith.subf %356, %372 : vector<16x32xf32>
    %cst_148 = arith.constant 9.99999974E-6 : f32
    %374 = vector.broadcast %cst_148 : f32 to vector<16x1xf32>
    %375 = arith.addf %371, %374 : vector<16x1xf32>
    %376 = math.rsqrt %375 : vector<16x1xf32>
    %377 = vector.broadcast %376 : vector<16x1xf32> to vector<16x32xf32>
    %378 = arith.mulf %373, %377 : vector<16x32xf32>
    %379 = vector.broadcast %358 : vector<1x32xf32> to vector<16x32xf32>
    %380 = arith.mulf %378, %379 : vector<16x32xf32>
    %381 = vector.broadcast %360 : vector<1x32xf32> to vector<16x32xf32>
    %382 = arith.addf %380, %381 : vector<16x32xf32>
    %383 = arith.truncf %382 : vector<16x32xf32> to vector<16x32xbf16>
    %c1_149 = arith.constant 1 : index
    %c0_150 = arith.constant 0 : index
    %c0_151 = arith.constant 0 : index
    %384 = vector.load %arg6[%c1_149, %c0_150, %c0_151] : memref<2x32x2048xbf16, #tpu.memory_space<vmem>>, vector<1x32x2048xbf16>
    %385 = vector.shape_cast %384 : vector<1x32x2048xbf16> to vector<32x2048xbf16>
    %cst_152 = arith.constant dense<0.000000e+00> : vector<16x2048xf32>
    %386 = tpu.matmul %383, %385, %cst_152 {dimension_numbers = #tpu.dot_dimension_numbers<[1], [0], [0], [1], [0, 0, 1, 1], [], []>} : vector<16x32xbf16>, vector<32x2048xbf16>, vector<16x2048xf32> -> vector<16x2048xf32>
    %c1_153 = arith.constant 1 : index
    %c0_154 = arith.constant 0 : index
    %c0_155 = arith.constant 0 : index
    %387 = vector.load %arg7[%c1_153, %c0_154, %c0_155] : memref<2x1x2048xf32, #tpu.memory_space<vmem>>, vector<1x1x2048xf32>
    %388 = vector.shape_cast %387 : vector<1x1x2048xf32> to vector<1x2048xf32>
    %389 = vector.broadcast %388 : vector<1x2048xf32> to vector<16x2048xf32>
    %390 = arith.addf %386, %389 : vector<16x2048xf32>
    %cst_156 = arith.constant 0.000000e+00 : f32
    %391 = vector.broadcast %cst_156 : f32 to vector<16x2048xf32>
    %392 = arith.maximumf %390, %391 : vector<16x2048xf32>
    %393 = arith.truncf %392 : vector<16x2048xf32> to vector<16x2048xbf16>
    %c1_157 = arith.constant 1 : index
    %c0_158 = arith.constant 0 : index
    %c0_159 = arith.constant 0 : index
    %394 = vector.load %arg8[%c1_157, %c0_158, %c0_159] : memref<2x32x2048xbf16, #tpu.memory_space<vmem>>, vector<1x32x2048xbf16>
    %395 = vector.shape_cast %394 : vector<1x32x2048xbf16> to vector<32x2048xbf16>
    %cst_160 = arith.constant dense<0.000000e+00> : vector<16x32xf32>
    %396 = tpu.matmul %393, %395, %cst_160 {dimension_numbers = #tpu.dot_dimension_numbers<[1], [1], [0], [0], [0, 0, 1, 0], [], []>} : vector<16x2048xbf16>, vector<32x2048xbf16>, vector<16x32xf32> -> vector<16x32xf32>
    %c1_161 = arith.constant 1 : index
    %c1_162 = arith.constant 1 : index
    %c0_163 = arith.constant 0 : index
    %c0_164 = arith.constant 0 : index
    %397 = vector.load %arg9[%c1_161, %c1_162, %c0_163, %c0_164] : memref<2x6x1x32xf32, #tpu.memory_space<vmem>>, vector<1x1x1x32xf32>
    %398 = vector.shape_cast %397 : vector<1x1x1x32xf32> to vector<1x32xf32>
    %399 = vector.broadcast %398 : vector<1x32xf32> to vector<16x32xf32>
    %400 = arith.addf %396, %399 : vector<16x32xf32>
    %401 = arith.addf %382, %400 : vector<16x32xf32>
    %c1_165 = arith.constant 1 : index
    %c4_166 = arith.constant 4 : index
    %c0_167 = arith.constant 0 : index
    %c0_168 = arith.constant 0 : index
    %402 = vector.load %arg9[%c1_165, %c4_166, %c0_167, %c0_168] : memref<2x6x1x32xf32, #tpu.memory_space<vmem>>, vector<1x1x1x32xf32>
    %403 = vector.shape_cast %402 : vector<1x1x1x32xf32> to vector<1x32xf32>
    %c1_169 = arith.constant 1 : index
    %c5_170 = arith.constant 5 : index
    %c0_171 = arith.constant 0 : index
    %c0_172 = arith.constant 0 : index
    %404 = vector.load %arg9[%c1_169, %c5_170, %c0_171, %c0_172] : memref<2x6x1x32xf32, #tpu.memory_space<vmem>>, vector<1x1x1x32xf32>
    %405 = vector.shape_cast %404 : vector<1x1x1x32xf32> to vector<1x32xf32>
    %cst_173 = arith.constant dense<0.000000e+00> : vector<16xf32>
    %406 = vector.multi_reduction <add>, %401, %cst_173 [1] : vector<16x32xf32> to vector<16xf32>
    %407 = vector.shape_cast %406 : vector<16xf32> to vector<16x1xf32>
    %cst_174 = arith.constant 3.200000e+01 : f32
    %408 = vector.broadcast %cst_174 : f32 to vector<16x1xf32>
    %409 = arith.divf %407, %408 : vector<16x1xf32>
    %410 = vector.broadcast %409 : vector<16x1xf32> to vector<16x32xf32>
    %411 = arith.subf %401, %410 : vector<16x32xf32>
    %412 = arith.mulf %411, %411 : vector<16x32xf32>
    %cst_175 = arith.constant dense<0.000000e+00> : vector<16xf32>
    %413 = vector.multi_reduction <add>, %412, %cst_175 [1] : vector<16x32xf32> to vector<16xf32>
    %414 = vector.shape_cast %413 : vector<16xf32> to vector<16x1xf32>
    %cst_176 = arith.constant 3.200000e+01 : f32
    %415 = vector.broadcast %cst_176 : f32 to vector<16x1xf32>
    %416 = arith.divf %414, %415 : vector<16x1xf32>
    %417 = vector.broadcast %409 : vector<16x1xf32> to vector<16x32xf32>
    %418 = arith.subf %401, %417 : vector<16x32xf32>
    %cst_177 = arith.constant 9.99999974E-6 : f32
    %419 = vector.broadcast %cst_177 : f32 to vector<16x1xf32>
    %420 = arith.addf %416, %419 : vector<16x1xf32>
    %421 = math.rsqrt %420 : vector<16x1xf32>
    %422 = vector.broadcast %421 : vector<16x1xf32> to vector<16x32xf32>
    %423 = arith.mulf %418, %422 : vector<16x32xf32>
    %424 = vector.broadcast %403 : vector<1x32xf32> to vector<16x32xf32>
    %425 = arith.mulf %423, %424 : vector<16x32xf32>
    %426 = vector.broadcast %405 : vector<1x32xf32> to vector<16x32xf32>
    %427 = arith.addf %425, %426 : vector<16x32xf32>
    %c0_178 = arith.constant 0 : index
    %c0_179 = arith.constant 0 : index
    %428 = vector.load %arg10[%c0_178, %c0_179] : memref<16x32xf32, #tpu.memory_space<vmem>>, vector<16x32xf32>
    tpu.vector_store %arg10[%c0_178, %c0_179], %427 {strides = array<i32>} : memref<16x32xf32, #tpu.memory_space<vmem>>, vector<16x32xf32>,
    return
  }
}

</mosaic_0001>

<llo_original>
// kernel: global_pose_embedder_forward.1
$region0: #{global_pose_embedder_forward.1}
  #allocation0 [shape = 'u32[]', space=smem, size = 0x4, offset = 0x4, fixed_abs, tag = 'smem constant byte address 0x4 - core index']
  #allocation1 [shape = 'u32[144,128]{1,0:T(1,128)}', space=vmem, size = 0x12000, scoped, tag = 'internal scratch']
  %s0 = inlined_call_operand.vmem [shape: f32[16,64], index: 0, kind: input, shape index: {}]
  %s1 = inlined_call_operand.vmem [shape: bf16[64,32], index: 1, kind: input, shape index: {}]
  %s2 = inlined_call_operand.vmem [shape: f32[16,32], index: 2, kind: input, shape index: {}]
  %s3 = inlined_call_operand.vmem [shape: bf16[2,32,96], index: 3, kind: input, shape index: {}]
  %s4 = inlined_call_operand.vmem [shape: f32[2,1,96], index: 4, kind: input, shape index: {}]
  %s5 = inlined_call_operand.vmem [shape: bf16[2,32,32], index: 5, kind: input, shape index: {}]
  %s6 = inlined_call_operand.vmem [shape: bf16[2,32,2048], index: 6, kind: input, shape index: {}]
  %s7 = inlined_call_operand.vmem [shape: f32[2,1,2048], index: 7, kind: input, shape index: {}]
  %s8 = inlined_call_operand.vmem [shape: bf16[2,32,2048], index: 8, kind: input, shape index: {}]
  %s9 = inlined_call_operand.vmem [shape: f32[2,6,1,32], index: 9, kind: input, shape index: {}]
  %s10 = inlined_call_operand.hbm [shape: f32[16,32], index: 10, kind: output, shape index: {}]
  %s11 = sld [smem:[#allocation0]]
  $region50: #{global_pose_embedder_forward.1} parent=0
    _
  %s13 = ssub.s32 1, %s11
  %s14 = scalar_select 0, %s13, %s11
  $region1: #{global_pose_embedder_forward.1} parent=0
    #allocation2 [shape = 'u8[8192]{0}', space=vmem, size = 0x2000, scoped, tag = 'output window, operand 0, single buffered']
    #allocation3 [shape = 's32[1]{0}', space=sflag, size = 0x4, scoped, tag = 'scoped memory for global_pose_embedder_forward.1']
    %15 = vsyncpa [#allocation3], 0
    // Predicated region
    $region2: #{global_pose_embedder_forward.1} parent=1 // pred_check
      _
    $region3: #{global_pose_embedder_forward.1} parent=1 // pred_check_branch
      %17 = sbr.rel (0) target = $region5
    $region4: #{global_pose_embedder_forward.1} parent=1 // pred_region
      _
    $region5: #{global_pose_embedder_forward.1} parent=1 // pred_fallthru
      _
    // Predicated region
    $region6: #{global_pose_embedder_forward.1} parent=1 // pred_check
      _
    $region7: #{global_pose_embedder_forward.1} parent=1 // pred_check_branch
      %19 = sbr.rel (0) target = $region9
    $region8: #{global_pose_embedder_forward.1} parent=1 // pred_region
      _
    $region9: #{global_pose_embedder_forward.1} parent=1 // pred_fallthru
      _
    // Predicated region
    $region10: #{global_pose_embedder_forward.1} parent=1 // pred_check
      _
    $region11: #{global_pose_embedder_forward.1} parent=1 // pred_check_branch
      %21 = sbr.rel (0) target = $region13
    $region12: #{global_pose_embedder_forward.1} parent=1 // pred_region
      _
    $region13: #{global_pose_embedder_forward.1} parent=1 // pred_fallthru
      _
    // Predicated region
    $region14: #{global_pose_embedder_forward.1} parent=1 // pred_check
      _
    $region15: #{global_pose_embedder_forward.1} parent=1 // pred_check_branch
      %23 = sbr.rel (0) target = $region17
    $region16: #{global_pose_embedder_forward.1} parent=1 // pred_region
      _
    $region17: #{global_pose_embedder_forward.1} parent=1 // pred_fallthru
      _
    // Predicated region
    $region18: #{global_pose_embedder_forward.1} parent=1 // pred_check
      _
    $region19: #{global_pose_embedder_forward.1} parent=1 // pred_check_branch
      %25 = sbr.rel (0) target = $region21
    $region20: #{global_pose_embedder_forward.1} parent=1 // pred_region
      _
    $region21: #{global_pose_embedder_forward.1} parent=1 // pred_fallthru
      _
    // Predicated region
    $region22: #{global_pose_embedder_forward.1} parent=1 // pred_check
      _
    $region23: #{global_pose_embedder_forward.1} parent=1 // pred_check_branch
      %27 = sbr.rel (0) target = $region25
    $region24: #{global_pose_embedder_forward.1} parent=1 // pred_region
      _
    $region25: #{global_pose_embedder_forward.1} parent=1 // pred_fallthru
      _
    // Predicated region
    $region26: #{global_pose_embedder_forward.1} parent=1 // pred_check
      _
    $region27: #{global_pose_embedder_forward.1} parent=1 // pred_check_branch
      %29 = sbr.rel (0) target = $region29
    $region28: #{global_pose_embedder_forward.1} parent=1 // pred_region
      _
    $region29: #{global_pose_embedder_forward.1} parent=1 // pred_fallthru
      _
    // Predicated region
    $region30: #{global_pose_embedder_forward.1} parent=1 // pred_check
      _
    $region31: #{global_pose_embedder_forward.1} parent=1 // pred_check_branch
      %31 = sbr.rel (0) target = $region33
    $region32: #{global_pose_embedder_forward.1} parent=1 // pred_region
      _
    $region33: #{global_pose_embedder_forward.1} parent=1 // pred_fallthru
      _
    // Predicated region
    $region34: #{global_pose_embedder_forward.1} parent=1 // pred_check
      _
    $region35: #{global_pose_embedder_forward.1} parent=1 // pred_check_branch
      %33 = sbr.rel (0) target = $region37
    $region36: #{global_pose_embedder_forward.1} parent=1 // pred_region
      _
    $region37: #{global_pose_embedder_forward.1} parent=1 // pred_fallthru
      _
    // Predicated region
    $region38: #{global_pose_embedder_forward.1} parent=1 // pred_check
      _
    $region39: #{global_pose_embedder_forward.1} parent=1 // pred_check_branch
      %35 = sbr.rel (0) target = $region41
    $region40: #{global_pose_embedder_forward.1} parent=1 // pred_region
      _
    $region41: #{global_pose_embedder_forward.1} parent=1 // pred_fallthru
      _
    %v37 = vld [vmem:[%s0] sm:$0xff]
    %v38 = vld [vmem:[%s0 + $0x8] sm:$0xff]
    %v39 = vpack.c.bf16 %v38, %v37
    %v40 = vld [vmem:[%s1] sm:$0xf]
    %v41 = vld [vmem:[%s1 + $0x4] sm:$0xf]
    %v42 = vld [vmem:[%s1 + $0x8] sm:$0xf]
    %v43 = vld [vmem:[%s1 + $0xc] sm:$0xf]
    %v44 = vld [vmem:[%s1 + $0x10] sm:$0xf]
    %v45 = vld [vmem:[%s1 + $0x14] sm:$0xf]
    %v46 = vld [vmem:[%s1 + $0x18] sm:$0xf]
    %v47 = vld [vmem:[%s1 + $0x1c] sm:$0xf]
    %v48 = vld [vmem:[%s2] sm:$0xff]
    %v49 = vld [vmem:[%s2 + $0x8] sm:$0xff]
    %v58 = vunpack.c.l.b16 %v40
    %v59 = vunpack.c.l.b16 %v41
    %v60 = vunpack.c.l.b16 %v42
    %v61 = vunpack.c.l.b16 %v43
    %v62 = vunpack.c.l.b16 %v44
    %v63 = vunpack.c.l.b16 %v45
    %v64 = vunpack.c.l.b16 %v46
    %v65 = vunpack.c.l.b16 %v47
    %v66 = vpack.c.b16 %v59, %v58
    %v67 = vpack.c.b16 %v61, %v60
    %v68 = vpack.c.b16 %v63, %v62
    %v69 = vpack.c.b16 %v65, %v64
    %vm74 = vcmask 523264
    %v76 = vsel %vm74, %v39, 0
    %78 = vmatprep.subr.bf16.mxu0 0
    %79 = vmatpush1.bf16.msra.mxu0 %v66
    %80 = vmatprep.subr.bf16.mxu0 0
    %81 = vmatpush1.bf16.msra.mxu0 %v67
    %82 = vmatprep.subr.bf16.mxu0 0
    %83 = vmatpush1.bf16.msra.mxu0 %v68
    %84 = vmatprep.subr.bf16.mxu0 0
    %85 = vmatpush1.bf16.msra.mxu0 %v69
    %86 = vmatprep.subr.bf16.mxu0 0
    %87 = vmatpush1.bf16.msra.mxu0 0
    %88 = vmatprep.subr.bf16.mxu0 0
    %89 = vmatpush1.bf16.msra.mxu0 0
    %90 = vmatprep.subr.bf16.mxu0 0
    %91 = vmatpush1.bf16.msra.mxu0 0
    %92 = vmatprep.subr.bf16.mxu0 0
    %93 = vmatpush1.bf16.msra.mxu0 0
    %94 = vmatprep.subr.bf16.mxu0 0
    %95 = vmatpush1.bf16.msra.mxu0 0
    %96 = vmatprep.subr.bf16.mxu0 0
    %97 = vmatpush1.bf16.msra.mxu0 0
    %98 = vmatprep.subr.bf16.mxu0 0
    %99 = vmatpush1.bf16.msra.mxu0 0
    %100 = vmatprep.subr.bf16.mxu0 0
    %101 = vmatpush1.bf16.msra.mxu0 0
    %102 = vmatprep.subr.bf16.mxu0 0
    %103 = vmatpush1.bf16.msra.mxu0 0
    %104 = vmatprep.subr.bf16.mxu0 0
    %105 = vmatpush1.bf16.msra.mxu0 0
    %106 = vmatprep.subr.bf16.mxu0 0
    %107 = vmatpush1.bf16.msra.mxu0 0
    %108 = vmatprep.subr.bf16.mxu0 0
    %109 = vmatpush1.bf16.msra.mxu0 0
    %110 = vmatprep.mubr.bf16.mxu0 0
    %111 = vmatmul.mubr.bf16.gmra.mrb[0].mxu0 %v76
    %v112 = vpop.f32.mrb[0].mxu0
    %v113 = vadd.f32 %v48, %v112
    %v114 = vpop.f32.mrb[0].mxu0
    %v115 = vpop.f32.mrb[0].mxu0
    %v116 = vadd.f32 %v49, %v115
    %v117 = vpop.f32.mrb[0].mxu0
    %118 = vdwg.mxu0
    %v119 = vpack.c.bf16 %v116, %v113
    %v120 = vld [vmem:[%s3] sm:$0xf]
    %v121 = vld [vmem:[%s3 + $0x4] sm:$0xf]
    %v122 = vld [vmem:[%s3 + $0x8] sm:$0xf]
    %v123 = vld [vmem:[%s3 + $0xc] sm:$0xf]
    %v124 = vld [vmem:[%s4] sm:$0x1]
    %v126 = vlaneseq
    %v127 = vshrl.u32 %v126, 7
    %v128 = vsub.s32 0, %v127
    %v129 = vrot.slane %v124, %v128
    %v135 = vunpack.c.l.b16 %v120
    %v136 = vunpack.c.l.b16 %v121
    %v137 = vunpack.c.l.b16 %v122
    %v138 = vunpack.c.l.b16 %v123
    %v139 = vpack.c.b16 %v136, %v135
    %v140 = vpack.c.b16 %v138, %v137
    %vm143 = vcmask 261120
    %v145 = vsel %vm143, %v119, 0
    %147 = vmatprep.subr.bf16.mxu0 0
    %148 = vmatpush1.bf16.msra.mxu0 %v139
    %149 = vmatprep.subr.bf16.mxu0 0
    %150 = vmatpush1.bf16.msra.mxu0 %v140
    %151 = vmatprep.subr.bf16.mxu0 0
    %152 = vmatpush1.bf16.msra.mxu0 0
    %153 = vmatprep.subr.bf16.mxu0 0
    %154 = vmatpush1.bf16.msra.mxu0 0
    %155 = vmatprep.subr.bf16.mxu0 0
    %156 = vmatpush1.bf16.msra.mxu0 0
    %157 = vmatprep.subr.bf16.mxu0 0
    %158 = vmatpush1.bf16.msra.mxu0 0
    %159 = vmatprep.subr.bf16.mxu0 0
    %160 = vmatpush1.bf16.msra.mxu0 0
    %161 = vmatprep.subr.bf16.mxu0 0
    %162 = vmatpush1.bf16.msra.mxu0 0
    %163 = vmatprep.subr.bf16.mxu0 0
    %164 = vmatpush1.bf16.msra.mxu0 0
    %165 = vmatprep.subr.bf16.mxu0 0
    %166 = vmatpush1.bf16.msra.mxu0 0
    %167 = vmatprep.subr.bf16.mxu0 0
    %168 = vmatpush1.bf16.msra.mxu0 0
    %169 = vmatprep.subr.bf16.mxu0 0
    %170 = vmatpush1.bf16.msra.mxu0 0
    %171 = vmatprep.subr.bf16.mxu0 0
    %172 = vmatpush1.bf16.msra.mxu0 0
    %173 = vmatprep.subr.bf16.mxu0 0
    %174 = vmatpush1.bf16.msra.mxu0 0
    %175 = vmatprep.subr.bf16.mxu0 0
    %176 = vmatpush1.bf16.msra.mxu0 0
    %177 = vmatprep.subr.bf16.mxu0 0
    %178 = vmatpush1.bf16.msra.mxu0 0
    %179 = vmatprep.mubr.bf16.mxu0 0
    %180 = vmatmul.mubr.bf16.gmra.mrb[0].mxu0 %v145
    %v181 = vpop.f32.mrb[0].mxu0
    %v182 = vadd.f32 %v129, %v181
    %v183 = vpop.f32.mrb[0].mxu0
    %v184 = vpop.f32.mrb[0].mxu0
    %v185 = vadd.f32 %v129, %v184
    %v186 = vpop.f32.mrb[0].mxu0
    %187 = vdwg.mxu0
    %189 = vrot.lane.b32.xlu0 %v182, 96
    %v190 = vpop.permute.xlu0 %189
    %vm191 = vcmask 64512
    %v192 = vsel %vm191, %v182, 0
    %v194 = vsel %vm191, %v190, 0
    %196 = vmatprep.subr.mxu0 0.0
    %197 = vmatpush1.xpose.msra.mxu0 %v194
    %198 = vmatprep.subr.mxu0 0.0
    %199 = vmatpush1.xpose.msra.mxu0 0.0
    %200 = vmatprep.subr.mxu0 0.0
    %201 = vmatpush1.xpose.msra.mxu0 0.0
    %202 = vmatprep.subr.mxu0 0.0
    %203 = vmatpush1.xpose.msra.mxu0 0.0
    %204 = vmatprep.subr.mxu0 0.0
    %205 = vmatpush1.xpose.msra.mxu0 0.0
    %206 = vmatprep.subr.mxu0 0.0
    %207 = vmatpush1.xpose.msra.mxu0 0.0
    %208 = vmatprep.subr.mxu0 0.0
    %209 = vmatpush1.xpose.msra.mxu0 0.0
    %210 = vmatprep.subr.mxu0 0.0
    %211 = vmatpush1.xpose.msra.mxu0 0.0
    %212 = vmatprep.subr.mxu0 0.0
    %213 = vmatpush1.xpose.msra.mxu0 0.0
    %214 = vmatprep.subr.mxu0 0.0
    %215 = vmatpush1.xpose.msra.mxu0 0.0
    %216 = vmatprep.subr.mxu0 0.0
    %217 = vmatpush1.xpose.msra.mxu0 0.0
    %218 = vmatprep.subr.mxu0 0.0
    %219 = vmatpush1.xpose.msra.mxu0 0.0
    %220 = vmatprep.subr.mxu0 0.0
    %221 = vmatpush1.xpose.msra.mxu0 0.0
    %222 = vmatprep.subr.mxu0 0.0
    %223 = vmatpush1.xpose.msra.mxu0 0.0
    %224 = vmatprep.subr.mxu0 0.0
    %225 = vmatpush1.xpose.msra.mxu0 0.0
    %226 = vmatprep.subr.mxu0 0.0
    %227 = vmatpush1.xpose.msra.mxu0 0.0
    %228 = vmatprep.subr.mxu0 0.0
    %229 = vmatpush1.xpose.msra.mxu0 0.0
    %230 = vmatprep.subr.mxu0 0.0
    %231 = vmatpush1.xpose.msra.mxu0 0.0
    %232 = vmatprep.subr.mxu0 0.0
    %233 = vmatpush1.xpose.msra.mxu0 0.0
    %234 = vmatprep.subr.mxu0 0.0
    %235 = vmatpush1.xpose.msra.mxu0 0.0
    %236 = vmatprep.subr.mxu0 0.0
    %237 = vmatpush1.xpose.msra.mxu0 0.0
    %238 = vmatprep.subr.mxu0 0.0
    %239 = vmatpush1.xpose.msra.mxu0 0.0
    %240 = vmatprep.subr.mxu0 0.0
    %241 = vmatpush1.xpose.msra.mxu0 0.0
    %242 = vmatprep.subr.mxu0 0.0
    %243 = vmatpush1.xpose.msra.mxu0 0.0
    %244 = vmatprep.subr.mxu0 0.0
    %245 = vmatpush1.xpose.msra.mxu0 0.0
    %246 = vmatprep.subr.mxu0 0.0
    %247 = vmatpush1.xpose.msra.mxu0 0.0
    %248 = vmatprep.subr.mxu0 0.0
    %249 = vmatpush1.xpose.msra.mxu0 0.0
    %250 = vmatprep.subr.mxu0 0.0
    %251 = vmatpush1.xpose.msra.mxu0 0.0
    %252 = vmatprep.subr.mxu0 0.0
    %253 = vmatpush1.xpose.msra.mxu0 0.0
    %254 = vmatprep.subr.mxu0 0.0
    %255 = vmatpush1.xpose.msra.mxu0 0.0
    %256 = vmatprep.subr.mxu0 0.0
    %257 = vmatpush1.xpose.msra.mxu0 0.0
    %258 = vmatprep.subr.mxu0 0.0
    %259 = vmatpush1.xpose.msra.mxu0 0.0
    %260 = vmatprep.mubr.f32.mxu0 0.0
    %261 = vmatmul.mubr.f32.gmra.mrb[0].mxu0 %v192
    %v262 = vpop.f32.mrb[0].mxu0
    %v263 = vadd.f32 0.0, %v262
    %v264 = vpop.f32.mrb[0].mxu0
    %265 = vdwg.mxu0
    %v266 = vsel %vm191, %v263, -inf
    %267 = vmax.xlane.f32.xlu0 %v266
    %v268 = vpop.xlane.xlu0 %267
    %v269 = vsub.f32 %v263, %v268
    %v270 = vmul.f32 %v269, 1.442695
    %v271 = vpow.pop %v270
    %v272 = vsel %vm191, %v271, 0.0
    %273 = vadd.xlane.f32.xlu0 %v272
    %v274 = vpop.xlane.xlu0 %273
    %v275 = vrcp.pop %v274
    %v276 = vmul.f32 %v271, %v275
    %277 = vrot.lane.b32.xlu0 %v182, 64
    %v278 = vpop.permute.xlu0 %277
    %v281 = vsel %vm191, %v276, 0
    %283 = vmatprep.subr.mxu0 0.0
    %284 = vmatpush1.msra.mxu0 %v278
    %285 = vmatprep.subr.mxu0 0.0
    %286 = vmatpush1.msra.mxu0 0.0
    %287 = vmatprep.subr.mxu0 0.0
    %288 = vmatpush1.msra.mxu0 0.0
    %289 = vmatprep.subr.mxu0 0.0
    %290 = vmatpush1.msra.mxu0 0.0
    %291 = vmatprep.subr.mxu0 0.0
    %292 = vmatpush1.msra.mxu0 0.0
    %293 = vmatprep.subr.mxu0 0.0
    %294 = vmatpush1.msra.mxu0 0.0
    %295 = vmatprep.subr.mxu0 0.0
    %296 = vmatpush1.msra.mxu0 0.0
    %297 = vmatprep.subr.mxu0 0.0
    %298 = vmatpush1.msra.mxu0 0.0
    %299 = vmatprep.subr.mxu0 0.0
    %300 = vmatpush1.msra.mxu0 0.0
    %301 = vmatprep.subr.mxu0 0.0
    %302 = vmatpush1.msra.mxu0 0.0
    %303 = vmatprep.subr.mxu0 0.0
    %304 = vmatpush1.msra.mxu0 0.0
    %305 = vmatprep.subr.mxu0 0.0
    %306 = vmatpush1.msra.mxu0 0.0
    %307 = vmatprep.subr.mxu0 0.0
    %308 = vmatpush1.msra.mxu0 0.0
    %309 = vmatprep.subr.mxu0 0.0
    %310 = vmatpush1.msra.mxu0 0.0
    %311 = vmatprep.subr.mxu0 0.0
    %312 = vmatpush1.msra.mxu0 0.0
    %313 = vmatprep.subr.mxu0 0.0
    %314 = vmatpush1.msra.mxu0 0.0
    %315 = vmatprep.subr.mxu0 0.0
    %316 = vmatpush1.msra.mxu0 0.0
    %317 = vmatprep.subr.mxu0 0.0
    %318 = vmatpush1.msra.mxu0 0.0
    %319 = vmatprep.subr.mxu0 0.0
    %320 = vmatpush1.msra.mxu0 0.0
    %321 = vmatprep.subr.mxu0 0.0
    %322 = vmatpush1.msra.mxu0 0.0
    %323 = vmatprep.subr.mxu0 0.0
    %324 = vmatpush1.msra.mxu0 0.0
    %325 = vmatprep.subr.mxu0 0.0
    %326 = vmatpush1.msra.mxu0 0.0
    %327 = vmatprep.subr.mxu0 0.0
    %328 = vmatpush1.msra.mxu0 0.0
    %329 = vmatprep.subr.mxu0 0.0
    %330 = vmatpush1.msra.mxu0 0.0
    %331 = vmatprep.subr.mxu0 0.0
    %332 = vmatpush1.msra.mxu0 0.0
    %333 = vmatprep.subr.mxu0 0.0
    %334 = vmatpush1.msra.mxu0 0.0
    %335 = vmatprep.subr.mxu0 0.0
    %336 = vmatpush1.msra.mxu0 0.0
    %337 = vmatprep.subr.mxu0 0.0
    %338 = vmatpush1.msra.mxu0 0.0
    %339 = vmatprep.subr.mxu0 0.0
    %340 = vmatpush1.msra.mxu0 0.0
    %341 = vmatprep.subr.mxu0 0.0
    %342 = vmatpush1.msra.mxu0 0.0
    %343 = vmatprep.subr.mxu0 0.0
    %344 = vmatpush1.msra.mxu0 0.0
    %345 = vmatprep.subr.mxu0 0.0
    %346 = vmatpush1.msra.mxu0 0.0
    %347 = vmatprep.mubr.f32.mxu0 0.0
    %348 = vmatmul.mubr.f32.gmra.mrb[0].mxu0 %v281
    %v349 = vpop.f32.mrb[0].mxu0
    %v350 = vadd.f32 0.0, %v349
    %v351 = vpop.f32.mrb[0].mxu0
    %352 = vdwg.mxu0
    %353 = vrot.lane.b32.xlu0 %v182, 120
    %v354 = vpop.permute.xlu0 %353
    %355 = vrot.lane.b32.xlu0 %v182, 88
    %v356 = vpop.permute.xlu0 %355
    %v357 = vsel %vm191, %v354, 0
    %v359 = vsel %vm191, %v356, 0
    %361 = vmatprep.subr.mxu0 0.0
    %362 = vmatpush1.xpose.msra.mxu0 %v359
    %363 = vmatprep.subr.mxu0 0.0
    %364 = vmatpush1.xpose.msra.mxu0 0.0
    %365 = vmatprep.subr.mxu0 0.0
    %366 = vmatpush1.xpose.msra.mxu0 0.0
    %367 = vmatprep.subr.mxu0 0.0
    %368 = vmatpush1.xpose.msra.mxu0 0.0
    %369 = vmatprep.subr.mxu0 0.0
    %370 = vmatpush1.xpose.msra.mxu0 0.0
    %371 = vmatprep.subr.mxu0 0.0
    %372 = vmatpush1.xpose.msra.mxu0 0.0
    %373 = vmatprep.subr.mxu0 0.0
    %374 = vmatpush1.xpose.msra.mxu0 0.0
    %375 = vmatprep.subr.mxu0 0.0
    %376 = vmatpush1.xpose.msra.mxu0 0.0
    %377 = vmatprep.subr.mxu0 0.0
    %378 = vmatpush1.xpose.msra.mxu0 0.0
    %379 = vmatprep.subr.mxu0 0.0
    %380 = vmatpush1.xpose.msra.mxu0 0.0
    %381 = vmatprep.subr.mxu0 0.0
    %382 = vmatpush1.xpose.msra.mxu0 0.0
    %383 = vmatprep.subr.mxu0 0.0
    %384 = vmatpush1.xpose.msra.mxu0 0.0
    %385 = vmatprep.subr.mxu0 0.0
    %386 = vmatpush1.xpose.msra.mxu0 0.0
    %387 = vmatprep.subr.mxu0 0.0
    %388 = vmatpush1.xpose.msra.mxu0 0.0
    %389 = vmatprep.subr.mxu0 0.0
    %390 = vmatpush1.xpose.msra.mxu0 0.0
    %391 = vmatprep.subr.mxu0 0.0
    %392 = vmatpush1.xpose.msra.mxu0 0.0
    %393 = vmatprep.subr.mxu0 0.0
    %394 = vmatpush1.xpose.msra.mxu0 0.0
    %395 = vmatprep.subr.mxu0 0.0
    %396 = vmatpush1.xpose.msra.mxu0 0.0
    %397 = vmatprep.subr.mxu0 0.0
    %398 = vmatpush1.xpose.msra.mxu0 0.0
    %399 = vmatprep.subr.mxu0 0.0
    %400 = vmatpush1.xpose.msra.mxu0 0.0
    %401 = vmatprep.subr.mxu0 0.0
    %402 = vmatpush1.xpose.msra.mxu0 0.0
    %403 = vmatprep.subr.mxu0 0.0
    %404 = vmatpush1.xpose.msra.mxu0 0.0
    %405 = vmatprep.subr.mxu0 0.0
    %406 = vmatpush1.xpose.msra.mxu0 0.0
    %407 = vmatprep.subr.mxu0 0.0
    %408 = vmatpush1.xpose.msra.mxu0 0.0
    %409 = vmatprep.subr.mxu0 0.0
    %410 = vmatpush1.xpose.msra.mxu0 0.0
    %411 = vmatprep.subr.mxu0 0.0
    %412 = vmatpush1.xpose.msra.mxu0 0.0
    %413 = vmatprep.subr.mxu0 0.0
    %414 = vmatpush1.xpose.msra.mxu0 0.0
    %415 = vmatprep.subr.mxu0 0.0
    %416 = vmatpush1.xpose.msra.mxu0 0.0
    %417 = vmatprep.subr.mxu0 0.0
    %418 = vmatpush1.xpose.msra.mxu0 0.0
    %419 = vmatprep.subr.mxu0 0.0
    %420 = vmatpush1.xpose.msra.mxu0 0.0
    %421 = vmatprep.subr.mxu0 0.0
    %422 = vmatpush1.xpose.msra.mxu0 0.0
    %423 = vmatprep.subr.mxu0 0.0
    %424 = vmatpush1.xpose.msra.mxu0 0.0
    %425 = vmatprep.mubr.f32.mxu0 0.0
    %426 = vmatmul.mubr.f32.gmra.mrb[0].mxu0 %v357
    %v427 = vpop.f32.mrb[0].mxu0
    %v428 = vadd.f32 0.0, %v427
    %v429 = vpop.f32.mrb[0].mxu0
    %430 = vdwg.mxu0
    %v431 = vsel %vm191, %v428, -inf
    %432 = vmax.xlane.f32.xlu0 %v431
    %v433 = vpop.xlane.xlu0 %432
    %v434 = vsub.f32 %v428, %v433
    %v435 = vmul.f32 %v434, 1.442695
    %v436 = vpow.pop %v435
    %v437 = vsel %vm191, %v436, 0.0
    %438 = vadd.xlane.f32.xlu0 %v437
    %v439 = vpop.xlane.xlu0 %438
    %v440 = vrcp.pop %v439
    %v441 = vmul.f32 %v436, %v440
    %442 = vrot.lane.b32.xlu0 %v182, 56
    %v443 = vpop.permute.xlu0 %442
    %v446 = vsel %vm191, %v441, 0
    %448 = vmatprep.subr.mxu0 0.0
    %449 = vmatpush1.msra.mxu0 %v443
    %450 = vmatprep.subr.mxu0 0.0
    %451 = vmatpush1.msra.mxu0 0.0
    %452 = vmatprep.subr.mxu0 0.0
    %453 = vmatpush1.msra.mxu0 0.0
    %454 = vmatprep.subr.mxu0 0.0
    %455 = vmatpush1.msra.mxu0 0.0
    %456 = vmatprep.subr.mxu0 0.0
    %457 = vmatpush1.msra.mxu0 0.0
    %458 = vmatprep.subr.mxu0 0.0
    %459 = vmatpush1.msra.mxu0 0.0
    %460 = vmatprep.subr.mxu0 0.0
    %461 = vmatpush1.msra.mxu0 0.0
    %462 = vmatprep.subr.mxu0 0.0
    %463 = vmatpush1.msra.mxu0 0.0
    %464 = vmatprep.subr.mxu0 0.0
    %465 = vmatpush1.msra.mxu0 0.0
    %466 = vmatprep.subr.mxu0 0.0
    %467 = vmatpush1.msra.mxu0 0.0
    %468 = vmatprep.subr.mxu0 0.0
    %469 = vmatpush1.msra.mxu0 0.0
    %470 = vmatprep.subr.mxu0 0.0
    %471 = vmatpush1.msra.mxu0 0.0
    %472 = vmatprep.subr.mxu0 0.0
    %473 = vmatpush1.msra.mxu0 0.0
    %474 = vmatprep.subr.mxu0 0.0
    %475 = vmatpush1.msra.mxu0 0.0
    %476 = vmatprep.subr.mxu0 0.0
    %477 = vmatpush1.msra.mxu0 0.0
    %478 = vmatprep.subr.mxu0 0.0
    %479 = vmatpush1.msra.mxu0 0.0
    %480 = vmatprep.subr.mxu0 0.0
    %481 = vmatpush1.msra.mxu0 0.0
    %482 = vmatprep.subr.mxu0 0.0
    %483 = vmatpush1.msra.mxu0 0.0
    %484 = vmatprep.subr.mxu0 0.0
    %485 = vmatpush1.msra.mxu0 0.0
    %486 = vmatprep.subr.mxu0 0.0
    %487 = vmatpush1.msra.mxu0 0.0
    %488 = vmatprep.subr.mxu0 0.0
    %489 = vmatpush1.msra.mxu0 0.0
    %490 = vmatprep.subr.mxu0 0.0
    %491 = vmatpush1.msra.mxu0 0.0
    %492 = vmatprep.subr.mxu0 0.0
    %493 = vmatpush1.msra.mxu0 0.0
    %494 = vmatprep.subr.mxu0 0.0
    %495 = vmatpush1.msra.mxu0 0.0
    %496 = vmatprep.subr.mxu0 0.0
    %497 = vmatpush1.msra.mxu0 0.0
    %498 = vmatprep.subr.mxu0 0.0
    %499 = vmatpush1.msra.mxu0 0.0
    %500 = vmatprep.subr.mxu0 0.0
    %501 = vmatpush1.msra.mxu0 0.0
    %502 = vmatprep.subr.mxu0 0.0
    %503 = vmatpush1.msra.mxu0 0.0
    %504 = vmatprep.subr.mxu0 0.0
    %505 = vmatpush1.msra.mxu0 0.0
    %506 = vmatprep.subr.mxu0 0.0
    %507 = vmatpush1.msra.mxu0 0.0
    %508 = vmatprep.subr.mxu0 0.0
    %509 = vmatpush1.msra.mxu0 0.0
    %510 = vmatprep.subr.mxu0 0.0
    %511 = vmatpush1.msra.mxu0 0.0
    %512 = vmatprep.mubr.f32.mxu0 0.0
    %513 = vmatmul.mubr.f32.gmra.mrb[0].mxu0 %v446
    %v514 = vpop.f32.mrb[0].mxu0
    %v515 = vadd.f32 0.0, %v514
    %v516 = vpop.f32.mrb[0].mxu0
    %517 = vdwg.mxu0
    %518 = vrot.lane.b32.xlu0 %v182, 112
    %v519 = vpop.permute.xlu0 %518
    %520 = vrot.lane.b32.xlu0 %v182, 80
    %v521 = vpop.permute.xlu0 %520
    %v522 = vsel %vm191, %v519, 0
    %v524 = vsel %vm191, %v521, 0
    %526 = vmatprep.subr.mxu0 0.0
    %527 = vmatpush1.xpose.msra.mxu0 %v524
    %528 = vmatprep.subr.mxu0 0.0
    %529 = vmatpush1.xpose.msra.mxu0 0.0
    %530 = vmatprep.subr.mxu0 0.0
    %531 = vmatpush1.xpose.msra.mxu0 0.0
    %532 = vmatprep.subr.mxu0 0.0
    %533 = vmatpush1.xpose.msra.mxu0 0.0
    %534 = vmatprep.subr.mxu0 0.0
    %535 = vmatpush1.xpose.msra.mxu0 0.0
    %536 = vmatprep.subr.mxu0 0.0
    %537 = vmatpush1.xpose.msra.mxu0 0.0
    %538 = vmatprep.subr.mxu0 0.0
    %539 = vmatpush1.xpose.msra.mxu0 0.0
    %540 = vmatprep.subr.mxu0 0.0
    %541 = vmatpush1.xpose.msra.mxu0 0.0
    %542 = vmatprep.subr.mxu0 0.0
    %543 = vmatpush1.xpose.msra.mxu0 0.0
    %544 = vmatprep.subr.mxu0 0.0
    %545 = vmatpush1.xpose.msra.mxu0 0.0
    %546 = vmatprep.subr.mxu0 0.0
    %547 = vmatpush1.xpose.msra.mxu0 0.0
    %548 = vmatprep.subr.mxu0 0.0
    %549 = vmatpush1.xpose.msra.mxu0 0.0
    %550 = vmatprep.subr.mxu0 0.0
    %551 = vmatpush1.xpose.msra.mxu0 0.0
    %552 = vmatprep.subr.mxu0 0.0
    %553 = vmatpush1.xpose.msra.mxu0 0.0
    %554 = vmatprep.subr.mxu0 0.0
    %555 = vmatpush1.xpose.msra.mxu0 0.0
    %556 = vmatprep.subr.mxu0 0.0
    %557 = vmatpush1.xpose.msra.mxu0 0.0
    %558 = vmatprep.subr.mxu0 0.0
    %559 = vmatpush1.xpose.msra.mxu0 0.0
    %560 = vmatprep.subr.mxu0 0.0
    %561 = vmatpush1.xpose.msra.mxu0 0.0
    %562 = vmatprep.subr.mxu0 0.0
    %563 = vmatpush1.xpose.msra.mxu0 0.0
    %564 = vmatprep.subr.mxu0 0.0
    %565 = vmatpush1.xpose.msra.mxu0 0.0
    %566 = vmatprep.subr.mxu0 0.0
    %567 = vmatpush1.xpose.msra.mxu0 0.0
    %568 = vmatprep.subr.mxu0 0.0
    %569 = vmatpush1.xpose.msra.mxu0 0.0
    %570 = vmatprep.subr.mxu0 0.0
    %571 = vmatpush1.xpose.msra.mxu0 0.0
    %572 = vmatprep.subr.mxu0 0.0
    %573 = vmatpush1.xpose.msra.mxu0 0.0
    %574 = vmatprep.subr.mxu0 0.0
    %575 = vmatpush1.xpose.msra.mxu0 0.0
    %576 = vmatprep.subr.mxu0 0.0
    %577 = vmatpush1.xpose.msra.mxu0 0.0
    %578 = vmatprep.subr.mxu0 0.0
    %579 = vmatpush1.xpose.msra.mxu0 0.0
    %580 = vmatprep.subr.mxu0 0.0
    %581 = vmatpush1.xpose.msra.mxu0 0.0
    %582 = vmatprep.subr.mxu0 0.0
    %583 = vmatpush1.xpose.msra.mxu0 0.0
    %584 = vmatprep.subr.mxu0 0.0
    %585 = vmatpush1.xpose.msra.mxu0 0.0
    %586 = vmatprep.subr.mxu0 0.0
    %587 = vmatpush1.xpose.msra.mxu0 0.0
    %588 = vmatprep.subr.mxu0 0.0
    %589 = vmatpush1.xpose.msra.mxu0 0.0
    %590 = vmatprep.mubr.f32.mxu0 0.0
    %591 = vmatmul.mubr.f32.gmra.mrb[0].mxu0 %v522
    %v592 = vpop.f32.mrb[0].mxu0
    %v593 = vadd.f32 0.0, %v592
    %v594 = vpop.f32.mrb[0].mxu0
    %595 = vdwg.mxu0
    %v596 = vsel %vm191, %v593, -inf
    %597 = vmax.xlane.f32.xlu0 %v596
    %v598 = vpop.xlane.xlu0 %597
    %v599 = vsub.f32 %v593, %v598
    %v600 = vmul.f32 %v599, 1.442695
    %v601 = vpow.pop %v600
    %v602 = vsel %vm191, %v601, 0.0
    %603 = vadd.xlane.f32.xlu0 %v602
    %v604 = vpop.xlane.xlu0 %603
    %v605 = vrcp.pop %v604
    %v606 = vmul.f32 %v601, %v605
    %607 = vrot.lane.b32.xlu0 %v182, 48
    %v608 = vpop.permute.xlu0 %607
    %v611 = vsel %vm191, %v606, 0
    %613 = vmatprep.subr.mxu0 0.0
    %614 = vmatpush1.msra.mxu0 %v608
    %615 = vmatprep.subr.mxu0 0.0
    %616 = vmatpush1.msra.mxu0 0.0
    %617 = vmatprep.subr.mxu0 0.0
    %618 = vmatpush1.msra.mxu0 0.0
    %619 = vmatprep.subr.mxu0 0.0
    %620 = vmatpush1.msra.mxu0 0.0
    %621 = vmatprep.subr.mxu0 0.0
    %622 = vmatpush1.msra.mxu0 0.0
    %623 = vmatprep.subr.mxu0 0.0
    %624 = vmatpush1.msra.mxu0 0.0
    %625 = vmatprep.subr.mxu0 0.0
    %626 = vmatpush1.msra.mxu0 0.0
    %627 = vmatprep.subr.mxu0 0.0
    %628 = vmatpush1.msra.mxu0 0.0
    %629 = vmatprep.subr.mxu0 0.0
    %630 = vmatpush1.msra.mxu0 0.0
    %631 = vmatprep.subr.mxu0 0.0
    %632 = vmatpush1.msra.mxu0 0.0
    %633 = vmatprep.subr.mxu0 0.0
    %634 = vmatpush1.msra.mxu0 0.0
    %635 = vmatprep.subr.mxu0 0.0
    %636 = vmatpush1.msra.mxu0 0.0
    %637 = vmatprep.subr.mxu0 0.0
    %638 = vmatpush1.msra.mxu0 0.0
    %639 = vmatprep.subr.mxu0 0.0
    %640 = vmatpush1.msra.mxu0 0.0
    %641 = vmatprep.subr.mxu0 0.0
    %642 = vmatpush1.msra.mxu0 0.0
    %643 = vmatprep.subr.mxu0 0.0
    %644 = vmatpush1.msra.mxu0 0.0
    %645 = vmatprep.subr.mxu0 0.0
    %646 = vmatpush1.msra.mxu0 0.0
    %647 = vmatprep.subr.mxu0 0.0
    %648 = vmatpush1.msra.mxu0 0.0
    %649 = vmatprep.subr.mxu0 0.0
    %650 = vmatpush1.msra.mxu0 0.0
    %651 = vmatprep.subr.mxu0 0.0
    %652 = vmatpush1.msra.mxu0 0.0
    %653 = vmatprep.subr.mxu0 0.0
    %654 = vmatpush1.msra.mxu0 0.0
    %655 = vmatprep.subr.mxu0 0.0
    %656 = vmatpush1.msra.mxu0 0.0
    %657 = vmatprep.subr.mxu0 0.0
    %658 = vmatpush1.msra.mxu0 0.0
    %659 = vmatprep.subr.mxu0 0.0
    %660 = vmatpush1.msra.mxu0 0.0
    %661 = vmatprep.subr.mxu0 0.0
    %662 = vmatpush1.msra.mxu0 0.0
    %663 = vmatprep.subr.mxu0 0.0
    %664 = vmatpush1.msra.mxu0 0.0
    %665 = vmatprep.subr.mxu0 0.0
    %666 = vmatpush1.msra.mxu0 0.0
    %667 = vmatprep.subr.mxu0 0.0
    %668 = vmatpush1.msra.mxu0 0.0
    %669 = vmatprep.subr.mxu0 0.0
    %670 = vmatpush1.msra.mxu0 0.0
    %671 = vmatprep.subr.mxu0 0.0
    %672 = vmatpush1.msra.mxu0 0.0
    %673 = vmatprep.subr.mxu0 0.0
    %674 = vmatpush1.msra.mxu0 0.0
    %675 = vmatprep.subr.mxu0 0.0
    %676 = vmatpush1.msra.mxu0 0.0
    %677 = vmatprep.mubr.f32.mxu0 0.0
    %678 = vmatmul.mubr.f32.gmra.mrb[0].mxu0 %v611
    %v679 = vpop.f32.mrb[0].mxu0
    %v680 = vadd.f32 0.0, %v679
    %v681 = vpop.f32.mrb[0].mxu0
    %682 = vdwg.mxu0
    %683 = vrot.lane.b32.xlu0 %v182, 104
    %v684 = vpop.permute.xlu0 %683
    %685 = vrot.lane.b32.xlu0 %v182, 72
    %v686 = vpop.permute.xlu0 %685
    %v687 = vsel %vm191, %v684, 0
    %v689 = vsel %vm191, %v686, 0
    %691 = vmatprep.subr.mxu0 0.0
    %692 = vmatpush1.xpose.msra.mxu0 %v689
    %693 = vmatprep.subr.mxu0 0.0
    %694 = vmatpush1.xpose.msra.mxu0 0.0
    %695 = vmatprep.subr.mxu0 0.0
    %696 = vmatpush1.xpose.msra.mxu0 0.0
    %697 = vmatprep.subr.mxu0 0.0
    %698 = vmatpush1.xpose.msra.mxu0 0.0
    %699 = vmatprep.subr.mxu0 0.0
    %700 = vmatpush1.xpose.msra.mxu0 0.0
    %701 = vmatprep.subr.mxu0 0.0
    %702 = vmatpush1.xpose.msra.mxu0 0.0
    %703 = vmatprep.subr.mxu0 0.0
    %704 = vmatpush1.xpose.msra.mxu0 0.0
    %705 = vmatprep.subr.mxu0 0.0
    %706 = vmatpush1.xpose.msra.mxu0 0.0
    %707 = vmatprep.subr.mxu0 0.0
    %708 = vmatpush1.xpose.msra.mxu0 0.0
    %709 = vmatprep.subr.mxu0 0.0
    %710 = vmatpush1.xpose.msra.mxu0 0.0
    %711 = vmatprep.subr.mxu0 0.0
    %712 = vmatpush1.xpose.msra.mxu0 0.0
    %713 = vmatprep.subr.mxu0 0.0
    %714 = vmatpush1.xpose.msra.mxu0 0.0
    %715 = vmatprep.subr.mxu0 0.0
    %716 = vmatpush1.xpose.msra.mxu0 0.0
    %717 = vmatprep.subr.mxu0 0.0
    %718 = vmatpush1.xpose.msra.mxu0 0.0
    %719 = vmatprep.subr.mxu0 0.0
    %720 = vmatpush1.xpose.msra.mxu0 0.0
    %721 = vmatprep.subr.mxu0 0.0
    %722 = vmatpush1.xpose.msra.mxu0 0.0
    %723 = vmatprep.subr.mxu0 0.0
    %724 = vmatpush1.xpose.msra.mxu0 0.0
    %725 = vmatprep.subr.mxu0 0.0
    %726 = vmatpush1.xpose.msra.mxu0 0.0
    %727 = vmatprep.subr.mxu0 0.0
    %728 = vmatpush1.xpose.msra.mxu0 0.0
    %729 = vmatprep.subr.mxu0 0.0
    %730 = vmatpush1.xpose.msra.mxu0 0.0
    %731 = vmatprep.subr.mxu0 0.0
    %732 = vmatpush1.xpose.msra.mxu0 0.0
    %733 = vmatprep.subr.mxu0 0.0
    %734 = vmatpush1.xpose.msra.mxu0 0.0
    %735 = vmatprep.subr.mxu0 0.0
    %736 = vmatpush1.xpose.msra.mxu0 0.0
    %737 = vmatprep.subr.mxu0 0.0
    %738 = vmatpush1.xpose.msra.mxu0 0.0
    %739 = vmatprep.subr.mxu0 0.0
    %740 = vmatpush1.xpose.msra.mxu0 0.0
    %741 = vmatprep.subr.mxu0 0.0
    %742 = vmatpush1.xpose.msra.mxu0 0.0
    %743 = vmatprep.subr.mxu0 0.0
    %744 = vmatpush1.xpose.msra.mxu0 0.0
    %745 = vmatprep.subr.mxu0 0.0
    %746 = vmatpush1.xpose.msra.mxu0 0.0
    %747 = vmatprep.subr.mxu0 0.0
    %748 = vmatpush1.xpose.msra.mxu0 0.0
    %749 = vmatprep.subr.mxu0 0.0
    %750 = vmatpush1.xpose.msra.mxu0 0.0
    %751 = vmatprep.subr.mxu0 0.0
    %752 = vmatpush1.xpose.msra.mxu0 0.0
    %753 = vmatprep.subr.mxu0 0.0
    %754 = vmatpush1.xpose.msra.mxu0 0.0
    %755 = vmatprep.mubr.f32.mxu0 0.0
    %756 = vmatmul.mubr.f32.gmra.mrb[0].mxu0 %v687
    %v757 = vpop.f32.mrb[0].mxu0
    %v758 = vadd.f32 0.0, %v757
    %v759 = vpop.f32.mrb[0].mxu0
    %760 = vdwg.mxu0
    %v761 = vsel %vm191, %v758, -inf
    %762 = vmax.xlane.f32.xlu0 %v761
    %v763 = vpop.xlane.xlu0 %762
    %v764 = vsub.f32 %v758, %v763
    %v765 = vmul.f32 %v764, 1.442695
    %v766 = vpow.pop %v765
    %v767 = vsel %vm191, %v766, 0.0
    %768 = vadd.xlane.f32.xlu0 %v767
    %v769 = vpop.xlane.xlu0 %768
    %v770 = vrcp.pop %v769
    %v771 = vmul.f32 %v766, %v770
    %772 = vrot.lane.b32.xlu0 %v182, 40
    %v773 = vpop.permute.xlu0 %772
    %v776 = vsel %vm191, %v771, 0
    %778 = vmatprep.subr.mxu0 0.0
    %779 = vmatpush1.msra.mxu0 %v773
    %780 = vmatprep.subr.mxu0 0.0
    %781 = vmatpush1.msra.mxu0 0.0
    %782 = vmatprep.subr.mxu0 0.0
    %783 = vmatpush1.msra.mxu0 0.0
    %784 = vmatprep.subr.mxu0 0.0
    %785 = vmatpush1.msra.mxu0 0.0
    %786 = vmatprep.subr.mxu0 0.0
    %787 = vmatpush1.msra.mxu0 0.0
    %788 = vmatprep.subr.mxu0 0.0
    %789 = vmatpush1.msra.mxu0 0.0
    %790 = vmatprep.subr.mxu0 0.0
    %791 = vmatpush1.msra.mxu0 0.0
    %792 = vmatprep.subr.mxu0 0.0
    %793 = vmatpush1.msra.mxu0 0.0
    %794 = vmatprep.subr.mxu0 0.0
    %795 = vmatpush1.msra.mxu0 0.0
    %796 = vmatprep.subr.mxu0 0.0
    %797 = vmatpush1.msra.mxu0 0.0
    %798 = vmatprep.subr.mxu0 0.0
    %799 = vmatpush1.msra.mxu0 0.0
    %800 = vmatprep.subr.mxu0 0.0
    %801 = vmatpush1.msra.mxu0 0.0
    %802 = vmatprep.subr.mxu0 0.0
    %803 = vmatpush1.msra.mxu0 0.0
    %804 = vmatprep.subr.mxu0 0.0
    %805 = vmatpush1.msra.mxu0 0.0
    %806 = vmatprep.subr.mxu0 0.0
    %807 = vmatpush1.msra.mxu0 0.0
    %808 = vmatprep.subr.mxu0 0.0
    %809 = vmatpush1.msra.mxu0 0.0
    %810 = vmatprep.subr.mxu0 0.0
    %811 = vmatpush1.msra.mxu0 0.0
    %812 = vmatprep.subr.mxu0 0.0
    %813 = vmatpush1.msra.mxu0 0.0
    %814 = vmatprep.subr.mxu0 0.0
    %815 = vmatpush1.msra.mxu0 0.0
    %816 = vmatprep.subr.mxu0 0.0
    %817 = vmatpush1.msra.mxu0 0.0
    %818 = vmatprep.subr.mxu0 0.0
    %819 = vmatpush1.msra.mxu0 0.0
    %820 = vmatprep.subr.mxu0 0.0
    %821 = vmatpush1.msra.mxu0 0.0
    %822 = vmatprep.subr.mxu0 0.0
    %823 = vmatpush1.msra.mxu0 0.0
    %824 = vmatprep.subr.mxu0 0.0
    %825 = vmatpush1.msra.mxu0 0.0
    %826 = vmatprep.subr.mxu0 0.0
    %827 = vmatpush1.msra.mxu0 0.0
    %828 = vmatprep.subr.mxu0 0.0
    %829 = vmatpush1.msra.mxu0 0.0
    %830 = vmatprep.subr.mxu0 0.0
    %831 = vmatpush1.msra.mxu0 0.0
    %832 = vmatprep.subr.mxu0 0.0
    %833 = vmatpush1.msra.mxu0 0.0
    %834 = vmatprep.subr.mxu0 0.0
    %835 = vmatpush1.msra.mxu0 0.0
    %836 = vmatprep.subr.mxu0 0.0
    %837 = vmatpush1.msra.mxu0 0.0
    %838 = vmatprep.subr.mxu0 0.0
    %839 = vmatpush1.msra.mxu0 0.0
    %840 = vmatprep.subr.mxu0 0.0
    %841 = vmatpush1.msra.mxu0 0.0
    %842 = vmatprep.mubr.f32.mxu0 0.0
    %843 = vmatmul.mubr.f32.gmra.mrb[0].mxu0 %v776
    %v844 = vpop.f32.mrb[0].mxu0
    %v845 = vadd.f32 0.0, %v844
    %v846 = vpop.f32.mrb[0].mxu0
    %847 = vdwg.mxu0
    %849 = vrot.lane.b32.xlu0 %v515, 8
    %v850 = vpop.permute.xlu0 %849
    %853 = vrot.lane.b32.xlu0 %v680, 16
    %v854 = vpop.permute.xlu0 %853
    %857 = vrot.lane.b32.xlu0 %v845, 24
    %v858 = vpop.permute.xlu0 %857
    %v860 = vsel %vm191, %v350, %v850
    %vm861 = vcmask 130048
    %v862 = vsel %vm861, %v860, %v854
    %vm863 = vcmask 195584
    %v864 = vsel %vm863, %v862, %v858
    %866 = vrot.lane.b32.xlu0 %v185, 96
    %v867 = vpop.permute.xlu0 %866
    %v868 = vsel %vm191, %v185, 0
    %v870 = vsel %vm191, %v867, 0
    %872 = vmatprep.subr.mxu0 0.0
    %873 = vmatpush1.xpose.msra.mxu0 %v870
    %874 = vmatprep.subr.mxu0 0.0
    %875 = vmatpush1.xpose.msra.mxu0 0.0
    %876 = vmatprep.subr.mxu0 0.0
    %877 = vmatpush1.xpose.msra.mxu0 0.0
    %878 = vmatprep.subr.mxu0 0.0
    %879 = vmatpush1.xpose.msra.mxu0 0.0
    %880 = vmatprep.subr.mxu0 0.0
    %881 = vmatpush1.xpose.msra.mxu0 0.0
    %882 = vmatprep.subr.mxu0 0.0
    %883 = vmatpush1.xpose.msra.mxu0 0.0
    %884 = vmatprep.subr.mxu0 0.0
    %885 = vmatpush1.xpose.msra.mxu0 0.0
    %886 = vmatprep.subr.mxu0 0.0
    %887 = vmatpush1.xpose.msra.mxu0 0.0
    %888 = vmatprep.subr.mxu0 0.0
    %889 = vmatpush1.xpose.msra.mxu0 0.0
    %890 = vmatprep.subr.mxu0 0.0
    %891 = vmatpush1.xpose.msra.mxu0 0.0
    %892 = vmatprep.subr.mxu0 0.0
    %893 = vmatpush1.xpose.msra.mxu0 0.0
    %894 = vmatprep.subr.mxu0 0.0
    %895 = vmatpush1.xpose.msra.mxu0 0.0
    %896 = vmatprep.subr.mxu0 0.0
    %897 = vmatpush1.xpose.msra.mxu0 0.0
    %898 = vmatprep.subr.mxu0 0.0
    %899 = vmatpush1.xpose.msra.mxu0 0.0
    %900 = vmatprep.subr.mxu0 0.0
    %901 = vmatpush1.xpose.msra.mxu0 0.0
    %902 = vmatprep.subr.mxu0 0.0
    %903 = vmatpush1.xpose.msra.mxu0 0.0
    %904 = vmatprep.subr.mxu0 0.0
    %905 = vmatpush1.xpose.msra.mxu0 0.0
    %906 = vmatprep.subr.mxu0 0.0
    %907 = vmatpush1.xpose.msra.mxu0 0.0
    %908 = vmatprep.subr.mxu0 0.0
    %909 = vmatpush1.xpose.msra.mxu0 0.0
    %910 = vmatprep.subr.mxu0 0.0
    %911 = vmatpush1.xpose.msra.mxu0 0.0
    %912 = vmatprep.subr.mxu0 0.0
    %913 = vmatpush1.xpose.msra.mxu0 0.0
    %914 = vmatprep.subr.mxu0 0.0
    %915 = vmatpush1.xpose.msra.mxu0 0.0
    %916 = vmatprep.subr.mxu0 0.0
    %917 = vmatpush1.xpose.msra.mxu0 0.0
    %918 = vmatprep.subr.mxu0 0.0
    %919 = vmatpush1.xpose.msra.mxu0 0.0
    %920 = vmatprep.subr.mxu0 0.0
    %921 = vmatpush1.xpose.msra.mxu0 0.0
    %922 = vmatprep.subr.mxu0 0.0
    %923 = vmatpush1.xpose.msra.mxu0 0.0
    %924 = vmatprep.subr.mxu0 0.0
    %925 = vmatpush1.xpose.msra.mxu0 0.0
    %926 = vmatprep.subr.mxu0 0.0
    %927 = vmatpush1.xpose.msra.mxu0 0.0
    %928 = vmatprep.subr.mxu0 0.0
    %929 = vmatpush1.xpose.msra.mxu0 0.0
    %930 = vmatprep.subr.mxu0 0.0
    %931 = vmatpush1.xpose.msra.mxu0 0.0
    %932 = vmatprep.subr.mxu0 0.0
    %933 = vmatpush1.xpose.msra.mxu0 0.0
    %934 = vmatprep.subr.mxu0 0.0
    %935 = vmatpush1.xpose.msra.mxu0 0.0
    %936 = vmatprep.mubr.f32.mxu0 0.0
    %937 = vmatmul.mubr.f32.gmra.mrb[0].mxu0 %v868
    %v938 = vpop.f32.mrb[0].mxu0
    %v939 = vadd.f32 0.0, %v938
    %v940 = vpop.f32.mrb[0].mxu0
    %941 = vdwg.mxu0
    %v942 = vsel %vm191, %v939, -inf
    %943 = vmax.xlane.f32.xlu0 %v942
    %v944 = vpop.xlane.xlu0 %943
    %v945 = vsub.f32 %v939, %v944
    %v946 = vmul.f32 %v945, 1.442695
    %v947 = vpow.pop %v946
    %v948 = vsel %vm191, %v947, 0.0
    %949 = vadd.xlane.f32.xlu0 %v948
    %v950 = vpop.xlane.xlu0 %949
    %v951 = vrcp.pop %v950
    %v952 = vmul.f32 %v947, %v951
    %953 = vrot.lane.b32.xlu0 %v185, 64
    %v954 = vpop.permute.xlu0 %953
    %v957 = vsel %vm191, %v952, 0
    %959 = vmatprep.subr.mxu0 0.0
    %960 = vmatpush1.msra.mxu0 %v954
    %961 = vmatprep.subr.mxu0 0.0
    %962 = vmatpush1.msra.mxu0 0.0
    %963 = vmatprep.subr.mxu0 0.0
    %964 = vmatpush1.msra.mxu0 0.0
    %965 = vmatprep.subr.mxu0 0.0
    %966 = vmatpush1.msra.mxu0 0.0
    %967 = vmatprep.subr.mxu0 0.0
    %968 = vmatpush1.msra.mxu0 0.0
    %969 = vmatprep.subr.mxu0 0.0
    %970 = vmatpush1.msra.mxu0 0.0
    %971 = vmatprep.subr.mxu0 0.0
    %972 = vmatpush1.msra.mxu0 0.0
    %973 = vmatprep.subr.mxu0 0.0
    %974 = vmatpush1.msra.mxu0 0.0
    %975 = vmatprep.subr.mxu0 0.0
    %976 = vmatpush1.msra.mxu0 0.0
    %977 = vmatprep.subr.mxu0 0.0
    %978 = vmatpush1.msra.mxu0 0.0
    %979 = vmatprep.subr.mxu0 0.0
    %980 = vmatpush1.msra.mxu0 0.0
    %981 = vmatprep.subr.mxu0 0.0
    %982 = vmatpush1.msra.mxu0 0.0
    %983 = vmatprep.subr.mxu0 0.0
    %984 = vmatpush1.msra.mxu0 0.0
    %985 = vmatprep.subr.mxu0 0.0
    %986 = vmatpush1.msra.mxu0 0.0
    %987 = vmatprep.subr.mxu0 0.0
    %988 = vmatpush1.msra.mxu0 0.0
    %989 = vmatprep.subr.mxu0 0.0
    %990 = vmatpush1.msra.mxu0 0.0
    %991 = vmatprep.subr.mxu0 0.0
    %992 = vmatpush1.msra.mxu0 0.0
    %993 = vmatprep.subr.mxu0 0.0
    %994 = vmatpush1.msra.mxu0 0.0
    %995 = vmatprep.subr.mxu0 0.0
    %996 = vmatpush1.msra.mxu0 0.0
    %997 = vmatprep.subr.mxu0 0.0
    %998 = vmatpush1.msra.mxu0 0.0
    %999 = vmatprep.subr.mxu0 0.0
    %1000 = vmatpush1.msra.mxu0 0.0
    %1001 = vmatprep.subr.mxu0 0.0
    %1002 = vmatpush1.msra.mxu0 0.0
    %1003 = vmatprep.subr.mxu0 0.0
    %1004 = vmatpush1.msra.mxu0 0.0
    %1005 = vmatprep.subr.mxu0 0.0
    %1006 = vmatpush1.msra.mxu0 0.0
    %1007 = vmatprep.subr.mxu0 0.0
    %1008 = vmatpush1.msra.mxu0 0.0
    %1009 = vmatprep.subr.mxu0 0.0
    %1010 = vmatpush1.msra.mxu0 0.0
    %1011 = vmatprep.subr.mxu0 0.0
    %1012 = vmatpush1.msra.mxu0 0.0
    %1013 = vmatprep.subr.mxu0 0.0
    %1014 = vmatpush1.msra.mxu0 0.0
    %1015 = vmatprep.subr.mxu0 0.0
    %1016 = vmatpush1.msra.mxu0 0.0
    %1017 = vmatprep.subr.mxu0 0.0
    %1018 = vmatpush1.msra.mxu0 0.0
    %1019 = vmatprep.subr.mxu0 0.0
    %1020 = vmatpush1.msra.mxu0 0.0
    %1021 = vmatprep.subr.mxu0 0.0
    %1022 = vmatpush1.msra.mxu0 0.0
    %1023 = vmatprep.mubr.f32.mxu0 0.0
    %1024 = vmatmul.mubr.f32.gmra.mrb[0].mxu0 %v957
    %v1025 = vpop.f32.mrb[0].mxu0
    %v1026 = vadd.f32 0.0, %v1025
    %v1027 = vpop.f32.mrb[0].mxu0
    %1028 = vdwg.mxu0
    %1029 = vrot.lane.b32.xlu0 %v185, 120
    %v1030 = vpop.permute.xlu0 %1029
    %1031 = vrot.lane.b32.xlu0 %v185, 88
    %v1032 = vpop.permute.xlu0 %1031
    %v1033 = vsel %vm191, %v1030, 0
    %v1035 = vsel %vm191, %v1032, 0
    %1037 = vmatprep.subr.mxu0 0.0
    %1038 = vmatpush1.xpose.msra.mxu0 %v1035
    %1039 = vmatprep.subr.mxu0 0.0
    %1040 = vmatpush1.xpose.msra.mxu0 0.0
    %1041 = vmatprep.subr.mxu0 0.0
    %1042 = vmatpush1.xpose.msra.mxu0 0.0
    %1043 = vmatprep.subr.mxu0 0.0
    %1044 = vmatpush1.xpose.msra.mxu0 0.0
    %1045 = vmatprep.subr.mxu0 0.0
    %1046 = vmatpush1.xpose.msra.mxu0 0.0
    %1047 = vmatprep.subr.mxu0 0.0
    %1048 = vmatpush1.xpose.msra.mxu0 0.0
    %1049 = vmatprep.subr.mxu0 0.0
    %1050 = vmatpush1.xpose.msra.mxu0 0.0
    %1051 = vmatprep.subr.mxu0 0.0
    %1052 = vmatpush1.xpose.msra.mxu0 0.0
    %1053 = vmatprep.subr.mxu0 0.0
    %1054 = vmatpush1.xpose.msra.mxu0 0.0
    %1055 = vmatprep.subr.mxu0 0.0
    %1056 = vmatpush1.xpose.msra.mxu0 0.0
    %1057 = vmatprep.subr.mxu0 0.0
    %1058 = vmatpush1.xpose.msra.mxu0 0.0
    %1059 = vmatprep.subr.mxu0 0.0
    %1060 = vmatpush1.xpose.msra.mxu0 0.0
    %1061 = vmatprep.subr.mxu0 0.0
    %1062 = vmatpush1.xpose.msra.mxu0 0.0
    %1063 = vmatprep.subr.mxu0 0.0
    %1064 = vmatpush1.xpose.msra.mxu0 0.0
    %1065 = vmatprep.subr.mxu0 0.0
    %1066 = vmatpush1.xpose.msra.mxu0 0.0
    %1067 = vmatprep.subr.mxu0 0.0
    %1068 = vmatpush1.xpose.msra.mxu0 0.0
    %1069 = vmatprep.subr.mxu0 0.0
    %1070 = vmatpush1.xpose.msra.mxu0 0.0
    %1071 = vmatprep.subr.mxu0 0.0
    %1072 = vmatpush1.xpose.msra.mxu0 0.0
    %1073 = vmatprep.subr.mxu0 0.0
    %1074 = vmatpush1.xpose.msra.mxu0 0.0
    %1075 = vmatprep.subr.mxu0 0.0
    %1076 = vmatpush1.xpose.msra.mxu0 0.0
    %1077 = vmatprep.subr.mxu0 0.0
    %1078 = vmatpush1.xpose.msra.mxu0 0.0
    %1079 = vmatprep.subr.mxu0 0.0
    %1080 = vmatpush1.xpose.msra.mxu0 0.0
    %1081 = vmatprep.subr.mxu0 0.0
    %1082 = vmatpush1.xpose.msra.mxu0 0.0
    %1083 = vmatprep.subr.mxu0 0.0
    %1084 = vmatpush1.xpose.msra.mxu0 0.0
    %1085 = vmatprep.subr.mxu0 0.0
    %1086 = vmatpush1.xpose.msra.mxu0 0.0
    %1087 = vmatprep.subr.mxu0 0.0
    %1088 = vmatpush1.xpose.msra.mxu0 0.0
    %1089 = vmatprep.subr.mxu0 0.0
    %1090 = vmatpush1.xpose.msra.mxu0 0.0
    %1091 = vmatprep.subr.mxu0 0.0
    %1092 = vmatpush1.xpose.msra.mxu0 0.0
    %1093 = vmatprep.subr.mxu0 0.0
    %1094 = vmatpush1.xpose.msra.mxu0 0.0
    %1095 = vmatprep.subr.mxu0 0.0
    %1096 = vmatpush1.xpose.msra.mxu0 0.0
    %1097 = vmatprep.subr.mxu0 0.0
    %1098 = vmatpush1.xpose.msra.mxu0 0.0
    %1099 = vmatprep.subr.mxu0 0.0
    %1100 = vmatpush1.xpose.msra.mxu0 0.0
    %1101 = vmatprep.mubr.f32.mxu0 0.0
    %1102 = vmatmul.mubr.f32.gmra.mrb[0].mxu0 %v1033
    %v1103 = vpop.f32.mrb[0].mxu0
    %v1104 = vadd.f32 0.0, %v1103
    %v1105 = vpop.f32.mrb[0].mxu0
    %1106 = vdwg.mxu0
    %v1107 = vsel %vm191, %v1104, -inf
    %1108 = vmax.xlane.f32.xlu0 %v1107
    %v1109 = vpop.xlane.xlu0 %1108
    %v1110 = vsub.f32 %v1104, %v1109
    %v1111 = vmul.f32 %v1110, 1.442695
    %v1112 = vpow.pop %v1111
    %v1113 = vsel %vm191, %v1112, 0.0
    %1114 = vadd.xlane.f32.xlu0 %v1113
    %v1115 = vpop.xlane.xlu0 %1114
    %v1116 = vrcp.pop %v1115
    %v1117 = vmul.f32 %v1112, %v1116
    %1118 = vrot.lane.b32.xlu0 %v185, 56
    %v1119 = vpop.permute.xlu0 %1118
    %v1122 = vsel %vm191, %v1117, 0
    %1124 = vmatprep.subr.mxu0 0.0
    %1125 = vmatpush1.msra.mxu0 %v1119
    %1126 = vmatprep.subr.mxu0 0.0
    %1127 = vmatpush1.msra.mxu0 0.0
    %1128 = vmatprep.subr.mxu0 0.0
    %1129 = vmatpush1.msra.mxu0 0.0
    %1130 = vmatprep.subr.mxu0 0.0
    %1131 = vmatpush1.msra.mxu0 0.0
    %1132 = vmatprep.subr.mxu0 0.0
    %1133 = vmatpush1.msra.mxu0 0.0
    %1134 = vmatprep.subr.mxu0 0.0
    %1135 = vmatpush1.msra.mxu0 0.0
    %1136 = vmatprep.subr.mxu0 0.0
    %1137 = vmatpush1.msra.mxu0 0.0
    %1138 = vmatprep.subr.mxu0 0.0
    %1139 = vmatpush1.msra.mxu0 0.0
    %1140 = vmatprep.subr.mxu0 0.0
    %1141 = vmatpush1.msra.mxu0 0.0
    %1142 = vmatprep.subr.mxu0 0.0
    %1143 = vmatpush1.msra.mxu0 0.0
    %1144 = vmatprep.subr.mxu0 0.0
    %1145 = vmatpush1.msra.mxu0 0.0
    %1146 = vmatprep.subr.mxu0 0.0
    %1147 = vmatpush1.msra.mxu0 0.0
    %1148 = vmatprep.subr.mxu0 0.0
    %1149 = vmatpush1.msra.mxu0 0.0
    %1150 = vmatprep.subr.mxu0 0.0
    %1151 = vmatpush1.msra.mxu0 0.0
    %1152 = vmatprep.subr.mxu0 0.0
    %1153 = vmatpush1.msra.mxu0 0.0
    %1154 = vmatprep.subr.mxu0 0.0
    %1155 = vmatpush1.msra.mxu0 0.0
    %1156 = vmatprep.subr.mxu0 0.0
    %1157 = vmatpush1.msra.mxu0 0.0
    %1158 = vmatprep.subr.mxu0 0.0
    %1159 = vmatpush1.msra.mxu0 0.0
    %1160 = vmatprep.subr.mxu0 0.0
    %1161 = vmatpush1.msra.mxu0 0.0
    %1162 = vmatprep.subr.mxu0 0.0
    %1163 = vmatpush1.msra.mxu0 0.0
    %1164 = vmatprep.subr.mxu0 0.0
    %1165 = vmatpush1.msra.mxu0 0.0
    %1166 = vmatprep.subr.mxu0 0.0
    %1167 = vmatpush1.msra.mxu0 0.0
    %1168 = vmatprep.subr.mxu0 0.0
    %1169 = vmatpush1.msra.mxu0 0.0
    %1170 = vmatprep.subr.mxu0 0.0
    %1171 = vmatpush1.msra.mxu0 0.0
    %1172 = vmatprep.subr.mxu0 0.0
    %1173 = vmatpush1.msra.mxu0 0.0
    %1174 = vmatprep.subr.mxu0 0.0
    %1175 = vmatpush1.msra.mxu0 0.0
    %1176 = vmatprep.subr.mxu0 0.0
    %1177 = vmatpush1.msra.mxu0 0.0
    %1178 = vmatprep.subr.mxu0 0.0
    %1179 = vmatpush1.msra.mxu0 0.0
    %1180 = vmatprep.subr.mxu0 0.0
    %1181 = vmatpush1.msra.mxu0 0.0
    %1182 = vmatprep.subr.mxu0 0.0
    %1183 = vmatpush1.msra.mxu0 0.0
    %1184 = vmatprep.subr.mxu0 0.0
    %1185 = vmatpush1.msra.mxu0 0.0
    %1186 = vmatprep.subr.mxu0 0.0
    %1187 = vmatpush1.msra.mxu0 0.0
    %1188 = vmatprep.mubr.f32.mxu0 0.0
    %1189 = vmatmul.mubr.f32.gmra.mrb[0].mxu0 %v1122
    %v1190 = vpop.f32.mrb[0].mxu0
    %v1191 = vadd.f32 0.0, %v1190
    %v1192 = vpop.f32.mrb[0].mxu0
    %1193 = vdwg.mxu0
    %1194 = vrot.lane.b32.xlu0 %v185, 112
    %v1195 = vpop.permute.xlu0 %1194
    %1196 = vrot.lane.b32.xlu0 %v185, 80
    %v1197 = vpop.permute.xlu0 %1196
    %v1198 = vsel %vm191, %v1195, 0
    %v1200 = vsel %vm191, %v1197, 0
    %1202 = vmatprep.subr.mxu0 0.0
    %1203 = vmatpush1.xpose.msra.mxu0 %v1200
    %1204 = vmatprep.subr.mxu0 0.0
    %1205 = vmatpush1.xpose.msra.mxu0 0.0
    %1206 = vmatprep.subr.mxu0 0.0
    %1207 = vmatpush1.xpose.msra.mxu0 0.0
    %1208 = vmatprep.subr.mxu0 0.0
    %1209 = vmatpush1.xpose.msra.mxu0 0.0
    %1210 = vmatprep.subr.mxu0 0.0
    %1211 = vmatpush1.xpose.msra.mxu0 0.0
    %1212 = vmatprep.subr.mxu0 0.0
    %1213 = vmatpush1.xpose.msra.mxu0 0.0
    %1214 = vmatprep.subr.mxu0 0.0
    %1215 = vmatpush1.xpose.msra.mxu0 0.0
    %1216 = vmatprep.subr.mxu0 0.0
    %1217 = vmatpush1.xpose.msra.mxu0 0.0
    %1218 = vmatprep.subr.mxu0 0.0
    %1219 = vmatpush1.xpose.msra.mxu0 0.0
    %1220 = vmatprep.subr.mxu0 0.0
    %1221 = vmatpush1.xpose.msra.mxu0 0.0
    %1222 = vmatprep.subr.mxu0 0.0
    %1223 = vmatpush1.xpose.msra.mxu0 0.0
    %1224 = vmatprep.subr.mxu0 0.0
    %1225 = vmatpush1.xpose.msra.mxu0 0.0
    %1226 = vmatprep.subr.mxu0 0.0
    %1227 = vmatpush1.xpose.msra.mxu0 0.0
    %1228 = vmatprep.subr.mxu0 0.0
    %1229 = vmatpush1.xpose.msra.mxu0 0.0
    %1230 = vmatprep.subr.mxu0 0.0
    %1231 = vmatpush1.xpose.msra.mxu0 0.0
    %1232 = vmatprep.subr.mxu0 0.0
    %1233 = vmatpush1.xpose.msra.mxu0 0.0
    %1234 = vmatprep.subr.mxu0 0.0
    %1235 = vmatpush1.xpose.msra.mxu0 0.0
    %1236 = vmatprep.subr.mxu0 0.0
    %1237 = vmatpush1.xpose.msra.mxu0 0.0
    %1238 = vmatprep.subr.mxu0 0.0
    %1239 = vmatpush1.xpose.msra.mxu0 0.0
    %1240 = vmatprep.subr.mxu0 0.0
    %1241 = vmatpush1.xpose.msra.mxu0 0.0
    %1242 = vmatprep.subr.mxu0 0.0
    %1243 = vmatpush1.xpose.msra.mxu0 0.0
    %1244 = vmatprep.subr.mxu0 0.0
    %1245 = vmatpush1.xpose.msra.mxu0 0.0
    %1246 = vmatprep.subr.mxu0 0.0
    %1247 = vmatpush1.xpose.msra.mxu0 0.0
    %1248 = vmatprep.subr.mxu0 0.0
    %1249 = vmatpush1.xpose.msra.mxu0 0.0
    %1250 = vmatprep.subr.mxu0 0.0
    %1251 = vmatpush1.xpose.msra.mxu0 0.0
    %1252 = vmatprep.subr.mxu0 0.0
    %1253 = vmatpush1.xpose.msra.mxu0 0.0
    %1254 = vmatprep.subr.mxu0 0.0
    %1255 = vmatpush1.xpose.msra.mxu0 0.0
    %1256 = vmatprep.subr.mxu0 0.0
    %1257 = vmatpush1.xpose.msra.mxu0 0.0
    %1258 = vmatprep.subr.mxu0 0.0
    %1259 = vmatpush1.xpose.msra.mxu0 0.0
    %1260 = vmatprep.subr.mxu0 0.0
    %1261 = vmatpush1.xpose.msra.mxu0 0.0
    %1262 = vmatprep.subr.mxu0 0.0
    %1263 = vmatpush1.xpose.msra.mxu0 0.0
    %1264 = vmatprep.subr.mxu0 0.0
    %1265 = vmatpush1.xpose.msra.mxu0 0.0
    %1266 = vmatprep.mubr.f32.mxu0 0.0
    %1267 = vmatmul.mubr.f32.gmra.mrb[0].mxu0 %v1198
    %v1268 = vpop.f32.mrb[0].mxu0
    %v1269 = vadd.f32 0.0, %v1268
    %v1270 = vpop.f32.mrb[0].mxu0
    %1271 = vdwg.mxu0
    %v1272 = vsel %vm191, %v1269, -inf
    %1273 = vmax.xlane.f32.xlu0 %v1272
    %v1274 = vpop.xlane.xlu0 %1273
    %v1275 = vsub.f32 %v1269, %v1274
    %v1276 = vmul.f32 %v1275, 1.442695
    %v1277 = vpow.pop %v1276
    %v1278 = vsel %vm191, %v1277, 0.0
    %1279 = vadd.xlane.f32.xlu0 %v1278
    %v1280 = vpop.xlane.xlu0 %1279
    %v1281 = vrcp.pop %v1280
    %v1282 = vmul.f32 %v1277, %v1281
    %1283 = vrot.lane.b32.xlu0 %v185, 48
    %v1284 = vpop.permute.xlu0 %1283
    %v1287 = vsel %vm191, %v1282, 0
    %1289 = vmatprep.subr.mxu0 0.0
    %1290 = vmatpush1.msra.mxu0 %v1284
    %1291 = vmatprep.subr.mxu0 0.0
    %1292 = vmatpush1.msra.mxu0 0.0
    %1293 = vmatprep.subr.mxu0 0.0
    %1294 = vmatpush1.msra.mxu0 0.0
    %1295 = vmatprep.subr.mxu0 0.0
    %1296 = vmatpush1.msra.mxu0 0.0
    %1297 = vmatprep.subr.mxu0 0.0
    %1298 = vmatpush1.msra.mxu0 0.0
    %1299 = vmatprep.subr.mxu0 0.0
    %1300 = vmatpush1.msra.mxu0 0.0
    %1301 = vmatprep.subr.mxu0 0.0
    %1302 = vmatpush1.msra.mxu0 0.0
    %1303 = vmatprep.subr.mxu0 0.0
    %1304 = vmatpush1.msra.mxu0 0.0
    %1305 = vmatprep.subr.mxu0 0.0
    %1306 = vmatpush1.msra.mxu0 0.0
    %1307 = vmatprep.subr.mxu0 0.0
    %1308 = vmatpush1.msra.mxu0 0.0
    %1309 = vmatprep.subr.mxu0 0.0
    %1310 = vmatpush1.msra.mxu0 0.0
    %1311 = vmatprep.subr.mxu0 0.0
    %1312 = vmatpush1.msra.mxu0 0.0
    %1313 = vmatprep.subr.mxu0 0.0
    %1314 = vmatpush1.msra.mxu0 0.0
    %1315 = vmatprep.subr.mxu0 0.0
    %1316 = vmatpush1.msra.mxu0 0.0
    %1317 = vmatprep.subr.mxu0 0.0
    %1318 = vmatpush1.msra.mxu0 0.0
    %1319 = vmatprep.subr.mxu0 0.0
    %1320 = vmatpush1.msra.mxu0 0.0
    %1321 = vmatprep.subr.mxu0 0.0
    %1322 = vmatpush1.msra.mxu0 0.0
    %1323 = vmatprep.subr.mxu0 0.0
    %1324 = vmatpush1.msra.mxu0 0.0
    %1325 = vmatprep.subr.mxu0 0.0
    %1326 = vmatpush1.msra.mxu0 0.0
    %1327 = vmatprep.subr.mxu0 0.0
    %1328 = vmatpush1.msra.mxu0 0.0
    %1329 = vmatprep.subr.mxu0 0.0
    %1330 = vmatpush1.msra.mxu0 0.0
    %1331 = vmatprep.subr.mxu0 0.0
    %1332 = vmatpush1.msra.mxu0 0.0
    %1333 = vmatprep.subr.mxu0 0.0
    %1334 = vmatpush1.msra.mxu0 0.0
    %1335 = vmatprep.subr.mxu0 0.0
    %1336 = vmatpush1.msra.mxu0 0.0
    %1337 = vmatprep.subr.mxu0 0.0
    %1338 = vmatpush1.msra.mxu0 0.0
    %1339 = vmatprep.subr.mxu0 0.0
    %1340 = vmatpush1.msra.mxu0 0.0
    %1341 = vmatprep.subr.mxu0 0.0
    %1342 = vmatpush1.msra.mxu0 0.0
    %1343 = vmatprep.subr.mxu0 0.0
    %1344 = vmatpush1.msra.mxu0 0.0
    %1345 = vmatprep.subr.mxu0 0.0
    %1346 = vmatpush1.msra.mxu0 0.0
    %1347 = vmatprep.subr.mxu0 0.0
    %1348 = vmatpush1.msra.mxu0 0.0
    %1349 = vmatprep.subr.mxu0 0.0
    %1350 = vmatpush1.msra.mxu0 0.0
    %1351 = vmatprep.subr.mxu0 0.0
    %1352 = vmatpush1.msra.mxu0 0.0
    %1353 = vmatprep.mubr.f32.mxu0 0.0
    %1354 = vmatmul.mubr.f32.gmra.mrb[0].mxu0 %v1287
    %v1355 = vpop.f32.mrb[0].mxu0
    %v1356 = vadd.f32 0.0, %v1355
    %v1357 = vpop.f32.mrb[0].mxu0
    %1358 = vdwg.mxu0
    %1359 = vrot.lane.b32.xlu0 %v185, 104
    %v1360 = vpop.permute.xlu0 %1359
    %1361 = vrot.lane.b32.xlu0 %v185, 72
    %v1362 = vpop.permute.xlu0 %1361
    %v1363 = vsel %vm191, %v1360, 0
    %v1365 = vsel %vm191, %v1362, 0
    %1367 = vmatprep.subr.mxu0 0.0
    %1368 = vmatpush1.xpose.msra.mxu0 %v1365
    %1369 = vmatprep.subr.mxu0 0.0
    %1370 = vmatpush1.xpose.msra.mxu0 0.0
    %1371 = vmatprep.subr.mxu0 0.0
    %1372 = vmatpush1.xpose.msra.mxu0 0.0
    %1373 = vmatprep.subr.mxu0 0.0
    %1374 = vmatpush1.xpose.msra.mxu0 0.0
    %1375 = vmatprep.subr.mxu0 0.0
    %1376 = vmatpush1.xpose.msra.mxu0 0.0
    %1377 = vmatprep.subr.mxu0 0.0
    %1378 = vmatpush1.xpose.msra.mxu0 0.0
    %1379 = vmatprep.subr.mxu0 0.0
    %1380 = vmatpush1.xpose.msra.mxu0 0.0
    %1381 = vmatprep.subr.mxu0 0.0
    %1382 = vmatpush1.xpose.msra.mxu0 0.0
    %1383 = vmatprep.subr.mxu0 0.0
    %1384 = vmatpush1.xpose.msra.mxu0 0.0
    %1385 = vmatprep.subr.mxu0 0.0
    %1386 = vmatpush1.xpose.msra.mxu0 0.0
    %1387 = vmatprep.subr.mxu0 0.0
    %1388 = vmatpush1.xpose.msra.mxu0 0.0
    %1389 = vmatprep.subr.mxu0 0.0
    %1390 = vmatpush1.xpose.msra.mxu0 0.0
    %1391 = vmatprep.subr.mxu0 0.0
    %1392 = vmatpush1.xpose.msra.mxu0 0.0
    %1393 = vmatprep.subr.mxu0 0.0
    %1394 = vmatpush1.xpose.msra.mxu0 0.0
    %1395 = vmatprep.subr.mxu0 0.0
    %1396 = vmatpush1.xpose.msra.mxu0 0.0
    %1397 = vmatprep.subr.mxu0 0.0
    %1398 = vmatpush1.xpose.msra.mxu0 0.0
    %1399 = vmatprep.subr.mxu0 0.0
    %1400 = vmatpush1.xpose.msra.mxu0 0.0
    %1401 = vmatprep.subr.mxu0 0.0
    %1402 = vmatpush1.xpose.msra.mxu0 0.0
    %1403 = vmatprep.subr.mxu0 0.0
    %1404 = vmatpush1.xpose.msra.mxu0 0.0
    %1405 = vmatprep.subr.mxu0 0.0
    %1406 = vmatpush1.xpose.msra.mxu0 0.0
    %1407 = vmatprep.subr.mxu0 0.0
    %1408 = vmatpush1.xpose.msra.mxu0 0.0
    %1409 = vmatprep.subr.mxu0 0.0
    %1410 = vmatpush1.xpose.msra.mxu0 0.0
    %1411 = vmatprep.subr.mxu0 0.0
    %1412 = vmatpush1.xpose.msra.mxu0 0.0
    %1413 = vmatprep.subr.mxu0 0.0
    %1414 = vmatpush1.xpose.msra.mxu0 0.0
    %1415 = vmatprep.subr.mxu0 0.0
    %1416 = vmatpush1.xpose.msra.mxu0 0.0
    %1417 = vmatprep.subr.mxu0 0.0
    %1418 = vmatpush1.xpose.msra.mxu0 0.0
    %1419 = vmatprep.subr.mxu0 0.0
    %1420 = vmatpush1.xpose.msra.mxu0 0.0
    %1421 = vmatprep.subr.mxu0 0.0
    %1422 = vmatpush1.xpose.msra.mxu0 0.0
    %1423 = vmatprep.subr.mxu0 0.0
    %1424 = vmatpush1.xpose.msra.mxu0 0.0
    %1425 = vmatprep.subr.mxu0 0.0
    %1426 = vmatpush1.xpose.msra.mxu0 0.0
    %1427 = vmatprep.subr.mxu0 0.0
    %1428 = vmatpush1.xpose.msra.mxu0 0.0
    %1429 = vmatprep.subr.mxu0 0.0
    %1430 = vmatpush1.xpose.msra.mxu0 0.0
    %1431 = vmatprep.mubr.f32.mxu0 0.0
    %1432 = vmatmul.mubr.f32.gmra.mrb[0].mxu0 %v1363
    %v1433 = vpop.f32.mrb[0].mxu0
    %v1434 = vadd.f32 0.0, %v1433
    %v1435 = vpop.f32.mrb[0].mxu0
    %1436 = vdwg.mxu0
    %v1437 = vsel %vm191, %v1434, -inf
    %1438 = vmax.xlane.f32.xlu0 %v1437
    %v1439 = vpop.xlane.xlu0 %1438
    %v1440 = vsub.f32 %v1434, %v1439
    %v1441 = vmul.f32 %v1440, 1.442695
    %v1442 = vpow.pop %v1441
    %v1443 = vsel %vm191, %v1442, 0.0
    %1444 = vadd.xlane.f32.xlu0 %v1443
    %v1445 = vpop.xlane.xlu0 %1444
    %v1446 = vrcp.pop %v1445
    %v1447 = vmul.f32 %v1442, %v1446
    %1448 = vrot.lane.b32.xlu0 %v185, 40
    %v1449 = vpop.permute.xlu0 %1448
    %v1452 = vsel %vm191, %v1447, 0
    %1454 = vmatprep.subr.mxu0 0.0
    %1455 = vmatpush1.msra.mxu0 %v1449
    %1456 = vmatprep.subr.mxu0 0.0
    %1457 = vmatpush1.msra.mxu0 0.0
    %1458 = vmatprep.subr.mxu0 0.0
    %1459 = vmatpush1.msra.mxu0 0.0
    %1460 = vmatprep.subr.mxu0 0.0
    %1461 = vmatpush1.msra.mxu0 0.0
    %1462 = vmatprep.subr.mxu0 0.0
    %1463 = vmatpush1.msra.mxu0 0.0
    %1464 = vmatprep.subr.mxu0 0.0
    %1465 = vmatpush1.msra.mxu0 0.0
    %1466 = vmatprep.subr.mxu0 0.0
    %1467 = vmatpush1.msra.mxu0 0.0
    %1468 = vmatprep.subr.mxu0 0.0
    %1469 = vmatpush1.msra.mxu0 0.0
    %1470 = vmatprep.subr.mxu0 0.0
    %1471 = vmatpush1.msra.mxu0 0.0
    %1472 = vmatprep.subr.mxu0 0.0
    %1473 = vmatpush1.msra.mxu0 0.0
    %1474 = vmatprep.subr.mxu0 0.0
    %1475 = vmatpush1.msra.mxu0 0.0
    %1476 = vmatprep.subr.mxu0 0.0
    %1477 = vmatpush1.msra.mxu0 0.0
    %1478 = vmatprep.subr.mxu0 0.0
    %1479 = vmatpush1.msra.mxu0 0.0
    %1480 = vmatprep.subr.mxu0 0.0
    %1481 = vmatpush1.msra.mxu0 0.0
    %1482 = vmatprep.subr.mxu0 0.0
    %1483 = vmatpush1.msra.mxu0 0.0
    %1484 = vmatprep.subr.mxu0 0.0
    %1485 = vmatpush1.msra.mxu0 0.0
    %1486 = vmatprep.subr.mxu0 0.0
    %1487 = vmatpush1.msra.mxu0 0.0
    %1488 = vmatprep.subr.mxu0 0.0
    %1489 = vmatpush1.msra.mxu0 0.0
    %1490 = vmatprep.subr.mxu0 0.0
    %1491 = vmatpush1.msra.mxu0 0.0
    %1492 = vmatprep.subr.mxu0 0.0
    %1493 = vmatpush1.msra.mxu0 0.0
    %1494 = vmatprep.subr.mxu0 0.0
    %1495 = vmatpush1.msra.mxu0 0.0
    %1496 = vmatprep.subr.mxu0 0.0
    %1497 = vmatpush1.msra.mxu0 0.0
    %1498 = vmatprep.subr.mxu0 0.0
    %1499 = vmatpush1.msra.mxu0 0.0
    %1500 = vmatprep.subr.mxu0 0.0
    %1501 = vmatpush1.msra.mxu0 0.0
    %1502 = vmatprep.subr.mxu0 0.0
    %1503 = vmatpush1.msra.mxu0 0.0
    %1504 = vmatprep.subr.mxu0 0.0
    %1505 = vmatpush1.msra.mxu0 0.0
    %1506 = vmatprep.subr.mxu0 0.0
    %1507 = vmatpush1.msra.mxu0 0.0
    %1508 = vmatprep.subr.mxu0 0.0
    %1509 = vmatpush1.msra.mxu0 0.0
    %1510 = vmatprep.subr.mxu0 0.0
    %1511 = vmatpush1.msra.mxu0 0.0
    %1512 = vmatprep.subr.mxu0 0.0
    %1513 = vmatpush1.msra.mxu0 0.0
    %1514 = vmatprep.subr.mxu0 0.0
    %1515 = vmatpush1.msra.mxu0 0.0
    %1516 = vmatprep.subr.mxu0 0.0
    %1517 = vmatpush1.msra.mxu0 0.0
    %1518 = vmatprep.mubr.f32.mxu0 0.0
    %1519 = vmatmul.mubr.f32.gmra.mrb[0].mxu0 %v1452
    %v1520 = vpop.f32.mrb[0].mxu0
    %v1521 = vadd.f32 0.0, %v1520
    %v1522 = vpop.f32.mrb[0].mxu0
    %1523 = vdwg.mxu0
    %1525 = vrot.lane.b32.xlu0 %v1191, 8
    %v1526 = vpop.permute.xlu0 %1525
    %1529 = vrot.lane.b32.xlu0 %v1356, 16
    %v1530 = vpop.permute.xlu0 %1529
    %1533 = vrot.lane.b32.xlu0 %v1521, 24
    %v1534 = vpop.permute.xlu0 %1533
    %v1536 = vsel %vm191, %v1026, %v1526
    %v1537 = vsel %vm861, %v1536, %v1530
    %v1538 = vsel %vm863, %v1537, %v1534
    %v1539 = vpack.c.bf16 %v1538, %v864
    %v1540 = vld [vmem:[%s5] sm:$0xf]
    %v1541 = vld [vmem:[%s5 + $0x4] sm:$0xf]
    %v1542 = vld [vmem:[%s5 + $0x8] sm:$0xf]
    %v1543 = vld [vmem:[%s5 + $0xc] sm:$0xf]
    %v1544 = vld [vmem:[%s9] sm:$0x1]
    %v1546 = vlaneseq
    %v1547 = vshrl.u32 %v1546, 7
    %v1548 = vsub.s32 0, %v1547
    %v1549 = vrot.slane %v1544, %v1548
    %v1555 = vunpack.c.l.b16 %v1540
    %v1556 = vunpack.c.l.b16 %v1541
    %v1557 = vunpack.c.l.b16 %v1542
    %v1558 = vunpack.c.l.b16 %v1543
    %v1559 = vpack.c.b16 %v1556, %v1555
    %v1560 = vpack.c.b16 %v1558, %v1557
    %v1564 = vsel %vm143, %v1539, 0
    %1566 = vmatprep.subr.bf16.mxu0 0
    %1567 = vmatpush1.bf16.msra.mxu0 %v1559
    %1568 = vmatprep.subr.bf16.mxu0 0
    %1569 = vmatpush1.bf16.msra.mxu0 %v1560
    %1570 = vmatprep.subr.bf16.mxu0 0
    %1571 = vmatpush1.bf16.msra.mxu0 0
    %1572 = vmatprep.subr.bf16.mxu0 0
    %1573 = vmatpush1.bf16.msra.mxu0 0
    %1574 = vmatprep.subr.bf16.mxu0 0
    %1575 = vmatpush1.bf16.msra.mxu0 0
    %1576 = vmatprep.subr.bf16.mxu0 0
    %1577 = vmatpush1.bf16.msra.mxu0 0
    %1578 = vmatprep.subr.bf16.mxu0 0
    %1579 = vmatpush1.bf16.msra.mxu0 0
    %1580 = vmatprep.subr.bf16.mxu0 0
    %1581 = vmatpush1.bf16.msra.mxu0 0
    %1582 = vmatprep.subr.bf16.mxu0 0
    %1583 = vmatpush1.bf16.msra.mxu0 0
    %1584 = vmatprep.subr.bf16.mxu0 0
    %1585 = vmatpush1.bf16.msra.mxu0 0
    %1586 = vmatprep.subr.bf16.mxu0 0
    %1587 = vmatpush1.bf16.msra.mxu0 0
    %1588 = vmatprep.subr.bf16.mxu0 0
    %1589 = vmatpush1.bf16.msra.mxu0 0
    %1590 = vmatprep.subr.bf16.mxu0 0
    %1591 = vmatpush1.bf16.msra.mxu0 0
    %1592 = vmatprep.subr.bf16.mxu0 0
    %1593 = vmatpush1.bf16.msra.mxu0 0
    %1594 = vmatprep.subr.bf16.mxu0 0
    %1595 = vmatpush1.bf16.msra.mxu0 0
    %1596 = vmatprep.subr.bf16.mxu0 0
    %1597 = vmatpush1.bf16.msra.mxu0 0
    %1598 = vmatprep.mubr.bf16.mxu0 0
    %1599 = vmatmul.mubr.bf16.gmra.mrb[0].mxu0 %v1564
    %v1600 = vpop.f32.mrb[0].mxu0
    %v1601 = vadd.f32 %v1549, %v1600
    %v1602 = vpop.f32.mrb[0].mxu0
    %v1603 = vpop.f32.mrb[0].mxu0
    %v1604 = vadd.f32 %v1549, %v1603
    %v1605 = vpop.f32.mrb[0].mxu0
    %1606 = vdwg.mxu0
    %v1607 = vadd.f32 %v113, %v1601
    %v1608 = vadd.f32 %v116, %v1604
    %s1609 = scalar_lea.vmem %s9, 2
    %v1610 = vld [vmem:[%s1609] sm:$0x1]
    %s1611 = scalar_lea.vmem %s9, 3
    %v1612 = vld [vmem:[%s1611] sm:$0x1]
    %v1613 = vsel %vm143, %v1607, 0.0
    %1614 = vadd.xlane.f32.xlu0 %v1613
    %v1615 = vpop.xlane.xlu0 %1614
    %v1616 = vsel %vm143, %v1608, 0.0
    %1617 = vadd.xlane.f32.xlu0 %v1616
    %v1618 = vpop.xlane.xlu0 %1617
    %v1619 = vrcp.pop 32.0
    %v1620 = vmul.f32 %v1615, %v1619
    %v1621 = vmul.f32 %v1618, %v1619
    %v1622 = vsub.f32 %v1607, %v1620
    %v1623 = vsub.f32 %v1608, %v1621
    %v1624 = vmul.f32 %v1622, %v1622
    %v1625 = vmul.f32 %v1623, %v1623
    %v1626 = vsel %vm143, %v1624, 0.0
    %1627 = vadd.xlane.f32.xlu0 %v1626
    %v1628 = vpop.xlane.xlu0 %1627
    %v1629 = vsel %vm143, %v1625, 0.0
    %1630 = vadd.xlane.f32.xlu0 %v1629
    %v1631 = vpop.xlane.xlu0 %1630
    %v1632 = vmul.f32 %v1628, %v1619
    %v1633 = vmul.f32 %v1631, %v1619
    %v1634 = vadd.f32 %v1632, 1e-05
    %v1635 = vadd.f32 %v1633, 1e-05
    %v1636 = vrsqrt.pop %v1634
    %v1637 = vrsqrt.pop %v1635
    %v1638 = vmul.f32 %v1622, %v1636
    %v1639 = vmul.f32 %v1623, %v1637
    %v1641 = vlaneseq
    %v1642 = vshrl.u32 %v1641, 7
    %v1643 = vsub.s32 0, %v1642
    %v1644 = vrot.slane %v1610, %v1643
    %v1646 = vmul.f32 %v1638, %v1644
    %v1647 = vmul.f32 %v1639, %v1644
    %v1649 = vlaneseq
    %v1650 = vshrl.u32 %v1649, 7
    %v1651 = vsub.s32 0, %v1650
    %v1652 = vrot.slane %v1612, %v1651
    %v1654 = vadd.f32 %v1646, %v1652
    %v1655 = vadd.f32 %v1647, %v1652
    %v1656 = vpack.c.bf16 %v1655, %v1654
    %v1657 = vld [vmem:[%s6] sm:$0xff]
    %v1658 = vld [vmem:[%s6 + $0x8] sm:$0xff]
    %v1659 = vld [vmem:[%s6 + $0x10] sm:$0xff]
    %v1660 = vld [vmem:[%s6 + $0x18] sm:$0xff]
    %v1661 = vld [vmem:[%s6 + $0x20] sm:$0xff]
    %v1662 = vld [vmem:[%s6 + $0x28] sm:$0xff]
    %v1663 = vld [vmem:[%s6 + $0x30] sm:$0xff]
    %v1664 = vld [vmem:[%s6 + $0x38] sm:$0xff]
    %v1665 = vld [vmem:[%s6 + $0x40] sm:$0xff]
    %v1666 = vld [vmem:[%s6 + $0x48] sm:$0xff]
    %v1667 = vld [vmem:[%s6 + $0x50] sm:$0xff]
    %v1668 = vld [vmem:[%s6 + $0x58] sm:$0xff]
    %v1669 = vld [vmem:[%s6 + $0x60] sm:$0xff]
    %v1670 = vld [vmem:[%s6 + $0x68] sm:$0xff]
    %v1671 = vld [vmem:[%s6 + $0x70] sm:$0xff]
    %v1672 = vld [vmem:[%s6 + $0x78] sm:$0xff]
    %v1673 = vld [vmem:[%s6 + $0x80] sm:$0xff]
    %v1674 = vld [vmem:[%s6 + $0x88] sm:$0xff]
    %v1675 = vld [vmem:[%s6 + $0x90] sm:$0xff]
    %v1676 = vld [vmem:[%s6 + $0x98] sm:$0xff]
    %v1677 = vld [vmem:[%s6 + $0xa0] sm:$0xff]
    %v1678 = vld [vmem:[%s6 + $0xa8] sm:$0xff]
    %v1679 = vld [vmem:[%s6 + $0xb0] sm:$0xff]
    %v1680 = vld [vmem:[%s6 + $0xb8] sm:$0xff]
    %v1681 = vld [vmem:[%s6 + $0xc0] sm:$0xff]
    %v1682 = vld [vmem:[%s6 + $0xc8] sm:$0xff]
    %v1683 = vld [vmem:[%s6 + $0xd0] sm:$0xff]
    %v1684 = vld [vmem:[%s6 + $0xd8] sm:$0xff]
    %v1685 = vld [vmem:[%s6 + $0xe0] sm:$0xff]
    %v1686 = vld [vmem:[%s6 + $0xe8] sm:$0xff]
    %v1687 = vld [vmem:[%s6 + $0xf0] sm:$0xff]
    %v1688 = vld [vmem:[%s6 + $0xf8] sm:$0xff]
    %v1689 = vld [vmem:[%s7] sm:$0xff]
    %v1690 = vld [vmem:[%s7 + $0x8] sm:$0xff]
    %v1693 = vlaneseq
    %v1694 = vshrl.u32 %v1693, 7
    %v1695 = vsub.s32 0, %v1694
    %v1696 = vrot.slane %v1689, %v1695
    %v1697 = vlaneseq
    %v1698 = vshrl.u32 %v1697, 7
    %v1699 = vsub.s32 1, %v1698
    %v1700 = vrot.slane %v1689, %v1699
    %v1701 = vlaneseq
    %v1702 = vshrl.u32 %v1701, 7
    %v1703 = vsub.s32 2, %v1702
    %v1704 = vrot.slane %v1689, %v1703
    %v1705 = vlaneseq
    %v1706 = vshrl.u32 %v1705, 7
    %v1707 = vsub.s32 3, %v1706
    %v1708 = vrot.slane %v1689, %v1707
    %v1709 = vlaneseq
    %v1710 = vshrl.u32 %v1709, 7
    %v1711 = vsub.s32 4, %v1710
    %v1712 = vrot.slane %v1689, %v1711
    %v1713 = vlaneseq
    %v1714 = vshrl.u32 %v1713, 7
    %v1715 = vsub.s32 5, %v1714
    %v1716 = vrot.slane %v1689, %v1715
    %v1717 = vlaneseq
    %v1718 = vshrl.u32 %v1717, 7
    %v1719 = vsub.s32 6, %v1718
    %v1720 = vrot.slane %v1689, %v1719
    %v1721 = vlaneseq
    %v1722 = vshrl.u32 %v1721, 7
    %v1723 = vsub.s32 7, %v1722
    %v1724 = vrot.slane %v1689, %v1723
    %v1725 = vlaneseq
    %v1726 = vshrl.u32 %v1725, 7
    %v1727 = vsub.s32 0, %v1726
    %v1728 = vrot.slane %v1690, %v1727
    %v1729 = vlaneseq
    %v1730 = vshrl.u32 %v1729, 7
    %v1731 = vsub.s32 1, %v1730
    %v1732 = vrot.slane %v1690, %v1731
    %v1733 = vlaneseq
    %v1734 = vshrl.u32 %v1733, 7
    %v1735 = vsub.s32 2, %v1734
    %v1736 = vrot.slane %v1690, %v1735
    %v1737 = vlaneseq
    %v1738 = vshrl.u32 %v1737, 7
    %v1739 = vsub.s32 3, %v1738
    %v1740 = vrot.slane %v1690, %v1739
    %v1741 = vlaneseq
    %v1742 = vshrl.u32 %v1741, 7
    %v1743 = vsub.s32 4, %v1742
    %v1744 = vrot.slane %v1690, %v1743
    %v1745 = vlaneseq
    %v1746 = vshrl.u32 %v1745, 7
    %v1747 = vsub.s32 5, %v1746
    %v1748 = vrot.slane %v1690, %v1747
    %v1749 = vlaneseq
    %v1750 = vshrl.u32 %v1749, 7
    %v1751 = vsub.s32 6, %v1750
    %v1752 = vrot.slane %v1690, %v1751
    %v1753 = vlaneseq
    %v1754 = vshrl.u32 %v1753, 7
    %v1755 = vsub.s32 7, %v1754
    %v1756 = vrot.slane %v1690, %v1755
    %v1805 = vunpack.c.l.b16 %v1657
    %v1806 = vunpack.c.h.b16 %v1657
    %v1807 = vunpack.c.l.b16 %v1658
    %v1808 = vunpack.c.h.b16 %v1658
    %v1809 = vunpack.c.l.b16 %v1659
    %v1810 = vunpack.c.h.b16 %v1659
    %v1811 = vunpack.c.l.b16 %v1660
    %v1812 = vunpack.c.h.b16 %v1660
    %v1813 = vunpack.c.l.b16 %v1661
    %v1814 = vunpack.c.h.b16 %v1661
    %v1815 = vunpack.c.l.b16 %v1662
    %v1816 = vunpack.c.h.b16 %v1662
    %v1817 = vunpack.c.l.b16 %v1663
    %v1818 = vunpack.c.h.b16 %v1663
    %v1819 = vunpack.c.l.b16 %v1664
    %v1820 = vunpack.c.h.b16 %v1664
    %v1821 = vunpack.c.l.b16 %v1665
    %v1822 = vunpack.c.h.b16 %v1665
    %v1823 = vunpack.c.l.b16 %v1666
    %v1824 = vunpack.c.h.b16 %v1666
    %v1825 = vunpack.c.l.b16 %v1667
    %v1826 = vunpack.c.h.b16 %v1667
    %v1827 = vunpack.c.l.b16 %v1668
    %v1828 = vunpack.c.h.b16 %v1668
    %v1829 = vunpack.c.l.b16 %v1669
    %v1830 = vunpack.c.h.b16 %v1669
    %v1831 = vunpack.c.l.b16 %v1670
    %v1832 = vunpack.c.h.b16 %v1670
    %v1833 = vunpack.c.l.b16 %v1671
    %v1834 = vunpack.c.h.b16 %v1671
    %v1835 = vunpack.c.l.b16 %v1672
    %v1836 = vunpack.c.h.b16 %v1672
    %v1837 = vunpack.c.l.b16 %v1673
    %v1838 = vunpack.c.h.b16 %v1673
    %v1839 = vunpack.c.l.b16 %v1674
    %v1840 = vunpack.c.h.b16 %v1674
    %v1841 = vunpack.c.l.b16 %v1675
    %v1842 = vunpack.c.h.b16 %v1675
    %v1843 = vunpack.c.l.b16 %v1676
    %v1844 = vunpack.c.h.b16 %v1676
    %v1845 = vunpack.c.l.b16 %v1677
    %v1846 = vunpack.c.h.b16 %v1677
    %v1847 = vunpack.c.l.b16 %v1678
    %v1848 = vunpack.c.h.b16 %v1678
    %v1849 = vunpack.c.l.b16 %v1679
    %v1850 = vunpack.c.h.b16 %v1679
    %v1851 = vunpack.c.l.b16 %v1680
    %v1852 = vunpack.c.h.b16 %v1680
    %v1853 = vunpack.c.l.b16 %v1681
    %v1854 = vunpack.c.h.b16 %v1681
    %v1855 = vunpack.c.l.b16 %v1682
    %v1856 = vunpack.c.h.b16 %v1682
    %v1857 = vunpack.c.l.b16 %v1683
    %v1858 = vunpack.c.h.b16 %v1683
    %v1859 = vunpack.c.l.b16 %v1684
    %v1860 = vunpack.c.h.b16 %v1684
    %v1861 = vunpack.c.l.b16 %v1685
    %v1862 = vunpack.c.h.b16 %v1685
    %v1863 = vunpack.c.l.b16 %v1686
    %v1864 = vunpack.c.h.b16 %v1686
    %v1865 = vunpack.c.l.b16 %v1687
    %v1866 = vunpack.c.h.b16 %v1687
    %v1867 = vunpack.c.l.b16 %v1688
    %v1868 = vunpack.c.h.b16 %v1688
    %v1869 = vpack.c.b16 %v1821, %v1805
    %v1870 = vpack.c.b16 %v1822, %v1806
    %v1871 = vpack.c.b16 %v1823, %v1807
    %v1872 = vpack.c.b16 %v1824, %v1808
    %v1873 = vpack.c.b16 %v1825, %v1809
    %v1874 = vpack.c.b16 %v1826, %v1810
    %v1875 = vpack.c.b16 %v1827, %v1811
    %v1876 = vpack.c.b16 %v1828, %v1812
    %v1877 = vpack.c.b16 %v1829, %v1813
    %v1878 = vpack.c.b16 %v1830, %v1814
    %v1879 = vpack.c.b16 %v1831, %v1815
    %v1880 = vpack.c.b16 %v1832, %v1816
    %v1881 = vpack.c.b16 %v1833, %v1817
    %v1882 = vpack.c.b16 %v1834, %v1818
    %v1883 = vpack.c.b16 %v1835, %v1819
    %v1884 = vpack.c.b16 %v1836, %v1820
    %v1885 = vpack.c.b16 %v1853, %v1837
    %v1886 = vpack.c.b16 %v1854, %v1838
    %v1887 = vpack.c.b16 %v1855, %v1839
    %v1888 = vpack.c.b16 %v1856, %v1840
    %v1889 = vpack.c.b16 %v1857, %v1841
    %v1890 = vpack.c.b16 %v1858, %v1842
    %v1891 = vpack.c.b16 %v1859, %v1843
    %v1892 = vpack.c.b16 %v1860, %v1844
    %v1893 = vpack.c.b16 %v1861, %v1845
    %v1894 = vpack.c.b16 %v1862, %v1846
    %v1895 = vpack.c.b16 %v1863, %v1847
    %v1896 = vpack.c.b16 %v1864, %v1848
    %v1897 = vpack.c.b16 %v1865, %v1849
    %v1898 = vpack.c.b16 %v1866, %v1850
    %v1899 = vpack.c.b16 %v1867, %v1851
    %v1900 = vpack.c.b16 %v1868, %v1852
    %v1934 = vsel %vm143, %v1656, 0
    %1936 = vmatprep.subr.bf16.mxu0 %v1870
    %1937 = vmatpush1.bf16.msra.mxu0 %v1869
    %1938 = vmatprep.subr.bf16.mxu0 %v1886
    %1939 = vmatpush1.bf16.msra.mxu0 %v1885
    %1940 = vmatprep.subr.bf16.mxu0 0
    %1941 = vmatpush1.bf16.msra.mxu0 0
    %1942 = vmatprep.subr.bf16.mxu0 0
    %1943 = vmatpush1.bf16.msra.mxu0 0
    %1944 = vmatprep.subr.bf16.mxu0 0
    %1945 = vmatpush1.bf16.msra.mxu0 0
    %1946 = vmatprep.subr.bf16.mxu0 0
    %1947 = vmatpush1.bf16.msra.mxu0 0
    %1948 = vmatprep.subr.bf16.mxu0 0
    %1949 = vmatpush1.bf16.msra.mxu0 0
    %1950 = vmatprep.subr.bf16.mxu0 0
    %1951 = vmatpush1.bf16.msra.mxu0 0
    %1952 = vmatprep.subr.bf16.mxu0 0
    %1953 = vmatpush1.bf16.msra.mxu0 0
    %1954 = vmatprep.subr.bf16.mxu0 0
    %1955 = vmatpush1.bf16.msra.mxu0 0
    %1956 = vmatprep.subr.bf16.mxu0 0
    %1957 = vmatpush1.bf16.msra.mxu0 0
    %1958 = vmatprep.subr.bf16.mxu0 0
    %1959 = vmatpush1.bf16.msra.mxu0 0
    %1960 = vmatprep.subr.bf16.mxu0 0
    %1961 = vmatpush1.bf16.msra.mxu0 0
    %1962 = vmatprep.subr.bf16.mxu0 0
    %1963 = vmatpush1.bf16.msra.mxu0 0
    %1964 = vmatprep.subr.bf16.mxu0 0
    %1965 = vmatpush1.bf16.msra.mxu0 0
    %1966 = vmatprep.subr.bf16.mxu0 0
    %1967 = vmatpush1.bf16.msra.mxu0 0
    %1968 = vmatprep.mubr.bf16.mxu0 0
    %1969 = vmatmul.mubr.bf16.gmra.mrb[0].mxu0 %v1934
    %v1970 = vpop.f32.mrb[0].mxu0
    %v1971 = vadd.f32 %v1696, %v1970
    %v1972 = vpop.f32.mrb[0].mxu0
    %v1973 = vadd.f32 %v1700, %v1972
    %v1974 = vpop.f32.mrb[0].mxu0
    %v1975 = vadd.f32 %v1696, %v1974
    %v1976 = vpop.f32.mrb[0].mxu0
    %v1977 = vadd.f32 %v1700, %v1976
    %1978 = vdwg.mxu0
    %1979 = vmatprep.subr.bf16.mxu0 %v1872
    %1980 = vmatpush1.bf16.msra.mxu0 %v1871
    %1981 = vmatprep.subr.bf16.mxu0 %v1888
    %1982 = vmatpush1.bf16.msra.mxu0 %v1887
    %1983 = vmatprep.subr.bf16.mxu0 0
    %1984 = vmatpush1.bf16.msra.mxu0 0
    %1985 = vmatprep.subr.bf16.mxu0 0
    %1986 = vmatpush1.bf16.msra.mxu0 0
    %1987 = vmatprep.subr.bf16.mxu0 0
    %1988 = vmatpush1.bf16.msra.mxu0 0
    %1989 = vmatprep.subr.bf16.mxu0 0
    %1990 = vmatpush1.bf16.msra.mxu0 0
    %1991 = vmatprep.subr.bf16.mxu0 0
    %1992 = vmatpush1.bf16.msra.mxu0 0
    %1993 = vmatprep.subr.bf16.mxu0 0
    %1994 = vmatpush1.bf16.msra.mxu0 0
    %1995 = vmatprep.subr.bf16.mxu0 0
    %1996 = vmatpush1.bf16.msra.mxu0 0
    %1997 = vmatprep.subr.bf16.mxu0 0
    %1998 = vmatpush1.bf16.msra.mxu0 0
    %1999 = vmatprep.subr.bf16.mxu0 0
    %2000 = vmatpush1.bf16.msra.mxu0 0
    %2001 = vmatprep.subr.bf16.mxu0 0
    %2002 = vmatpush1.bf16.msra.mxu0 0
    %2003 = vmatprep.subr.bf16.mxu0 0
    %2004 = vmatpush1.bf16.msra.mxu0 0
    %2005 = vmatprep.subr.bf16.mxu0 0
    %2006 = vmatpush1.bf16.msra.mxu0 0
    %2007 = vmatprep.subr.bf16.mxu0 0
    %2008 = vmatpush1.bf16.msra.mxu0 0
    %2009 = vmatprep.subr.bf16.mxu0 0
    %2010 = vmatpush1.bf16.msra.mxu0 0
    %2011 = vmatprep.mubr.bf16.mxu0 0
    %2012 = vmatmul.mubr.bf16.gmra.mrb[0].mxu0 %v1934
    %v2013 = vpop.f32.mrb[0].mxu0
    %v2014 = vadd.f32 %v1704, %v2013
    %v2015 = vpop.f32.mrb[0].mxu0
    %v2016 = vadd.f32 %v1708, %v2015
    %v2017 = vpop.f32.mrb[0].mxu0
    %v2018 = vadd.f32 %v1704, %v2017
    %v2019 = vpop.f32.mrb[0].mxu0
    %v2020 = vadd.f32 %v1708, %v2019
    %2021 = vdwg.mxu0
    %2022 = vmatprep.subr.bf16.mxu0 %v1874
    %2023 = vmatpush1.bf16.msra.mxu0 %v1873
    %2024 = vmatprep.subr.bf16.mxu0 %v1890
    %2025 = vmatpush1.bf16.msra.mxu0 %v1889
    %2026 = vmatprep.subr.bf16.mxu0 0
    %2027 = vmatpush1.bf16.msra.mxu0 0
    %2028 = vmatprep.subr.bf16.mxu0 0
    %2029 = vmatpush1.bf16.msra.mxu0 0
    %2030 = vmatprep.subr.bf16.mxu0 0
    %2031 = vmatpush1.bf16.msra.mxu0 0
    %2032 = vmatprep.subr.bf16.mxu0 0
    %2033 = vmatpush1.bf16.msra.mxu0 0
    %2034 = vmatprep.subr.bf16.mxu0 0
    %2035 = vmatpush1.bf16.msra.mxu0 0
    %2036 = vmatprep.subr.bf16.mxu0 0
    %2037 = vmatpush1.bf16.msra.mxu0 0
    %2038 = vmatprep.subr.bf16.mxu0 0
    %2039 = vmatpush1.bf16.msra.mxu0 0
    %2040 = vmatprep.subr.bf16.mxu0 0
    %2041 = vmatpush1.bf16.msra.mxu0 0
    %2042 = vmatprep.subr.bf16.mxu0 0
    %2043 = vmatpush1.bf16.msra.mxu0 0
    %2044 = vmatprep.subr.bf16.mxu0 0
    %2045 = vmatpush1.bf16.msra.mxu0 0
    %2046 = vmatprep.subr.bf16.mxu0 0
    %2047 = vmatpush1.bf16.msra.mxu0 0
    %2048 = vmatprep.subr.bf16.mxu0 0
    %2049 = vmatpush1.bf16.msra.mxu0 0
    %2050 = vmatprep.subr.bf16.mxu0 0
    %2051 = vmatpush1.bf16.msra.mxu0 0
    %2052 = vmatprep.subr.bf16.mxu0 0
    %2053 = vmatpush1.bf16.msra.mxu0 0
    %2054 = vmatprep.mubr.bf16.mxu0 0
    %2055 = vmatmul.mubr.bf16.gmra.mrb[0].mxu0 %v1934
    %v2056 = vpop.f32.mrb[0].mxu0
    %v2057 = vadd.f32 %v1712, %v2056
    %v2058 = vpop.f32.mrb[0].mxu0
    %v2059 = vadd.f32 %v1716, %v2058
    %v2060 = vpop.f32.mrb[0].mxu0
    %v2061 = vadd.f32 %v1712, %v2060
    %v2062 = vpop.f32.mrb[0].mxu0
    %v2063 = vadd.f32 %v1716, %v2062
    %2064 = vdwg.mxu0
    %2065 = vmatprep.subr.bf16.mxu0 %v1876
    %2066 = vmatpush1.bf16.msra.mxu0 %v1875
    %2067 = vmatprep.subr.bf16.mxu0 %v1892
    %2068 = vmatpush1.bf16.msra.mxu0 %v1891
    %2069 = vmatprep.subr.bf16.mxu0 0
    %2070 = vmatpush1.bf16.msra.mxu0 0
    %2071 = vmatprep.subr.bf16.mxu0 0
    %2072 = vmatpush1.bf16.msra.mxu0 0
    %2073 = vmatprep.subr.bf16.mxu0 0
    %2074 = vmatpush1.bf16.msra.mxu0 0
    %2075 = vmatprep.subr.bf16.mxu0 0
    %2076 = vmatpush1.bf16.msra.mxu0 0
    %2077 = vmatprep.subr.bf16.mxu0 0
    %2078 = vmatpush1.bf16.msra.mxu0 0
    %2079 = vmatprep.subr.bf16.mxu0 0
    %2080 = vmatpush1.bf16.msra.mxu0 0
    %2081 = vmatprep.subr.bf16.mxu0 0
    %2082 = vmatpush1.bf16.msra.mxu0 0
    %2083 = vmatprep.subr.bf16.mxu0 0
    %2084 = vmatpush1.bf16.msra.mxu0 0
    %2085 = vmatprep.subr.bf16.mxu0 0
    %2086 = vmatpush1.bf16.msra.mxu0 0
    %2087 = vmatprep.subr.bf16.mxu0 0
    %2088 = vmatpush1.bf16.msra.mxu0 0
    %2089 = vmatprep.subr.bf16.mxu0 0
    %2090 = vmatpush1.bf16.msra.mxu0 0
    %2091 = vmatprep.subr.bf16.mxu0 0
    %2092 = vmatpush1.bf16.msra.mxu0 0
    %2093 = vmatprep.subr.bf16.mxu0 0
    %2094 = vmatpush1.bf16.msra.mxu0 0
    %2095 = vmatprep.subr.bf16.mxu0 0
    %2096 = vmatpush1.bf16.msra.mxu0 0
    %2097 = vmatprep.mubr.bf16.mxu0 0
    %2098 = vmatmul.mubr.bf16.gmra.mrb[0].mxu0 %v1934
    %v2099 = vpop.f32.mrb[0].mxu0
    %v2100 = vadd.f32 %v1720, %v2099
    %v2101 = vpop.f32.mrb[0].mxu0
    %v2102 = vadd.f32 %v1724, %v2101
    %v2103 = vpop.f32.mrb[0].mxu0
    %v2104 = vadd.f32 %v1720, %v2103
    %v2105 = vpop.f32.mrb[0].mxu0
    %v2106 = vadd.f32 %v1724, %v2105
    %2107 = vdwg.mxu0
    %2108 = vmatprep.subr.bf16.mxu0 %v1878
    %2109 = vmatpush1.bf16.msra.mxu0 %v1877
    %2110 = vmatprep.subr.bf16.mxu0 %v1894
    %2111 = vmatpush1.bf16.msra.mxu0 %v1893
    %2112 = vmatprep.subr.bf16.mxu0 0
    %2113 = vmatpush1.bf16.msra.mxu0 0
    %2114 = vmatprep.subr.bf16.mxu0 0
    %2115 = vmatpush1.bf16.msra.mxu0 0
    %2116 = vmatprep.subr.bf16.mxu0 0
    %2117 = vmatpush1.bf16.msra.mxu0 0
    %2118 = vmatprep.subr.bf16.mxu0 0
    %2119 = vmatpush1.bf16.msra.mxu0 0
    %2120 = vmatprep.subr.bf16.mxu0 0
    %2121 = vmatpush1.bf16.msra.mxu0 0
    %2122 = vmatprep.subr.bf16.mxu0 0
    %2123 = vmatpush1.bf16.msra.mxu0 0
    %2124 = vmatprep.subr.bf16.mxu0 0
    %2125 = vmatpush1.bf16.msra.mxu0 0
    %2126 = vmatprep.subr.bf16.mxu0 0
    %2127 = vmatpush1.bf16.msra.mxu0 0
    %2128 = vmatprep.subr.bf16.mxu0 0
    %2129 = vmatpush1.bf16.msra.mxu0 0
    %2130 = vmatprep.subr.bf16.mxu0 0
    %2131 = vmatpush1.bf16.msra.mxu0 0
    %2132 = vmatprep.subr.bf16.mxu0 0
    %2133 = vmatpush1.bf16.msra.mxu0 0
    %2134 = vmatprep.subr.bf16.mxu0 0
    %2135 = vmatpush1.bf16.msra.mxu0 0
    %2136 = vmatprep.subr.bf16.mxu0 0
    %2137 = vmatpush1.bf16.msra.mxu0 0
    %2138 = vmatprep.subr.bf16.mxu0 0
    %2139 = vmatpush1.bf16.msra.mxu0 0
    %2140 = vmatprep.mubr.bf16.mxu0 0
    %2141 = vmatmul.mubr.bf16.gmra.mrb[0].mxu0 %v1934
    %v2142 = vpop.f32.mrb[0].mxu0
    %v2143 = vadd.f32 %v1728, %v2142
    %v2144 = vpop.f32.mrb[0].mxu0
    %v2145 = vadd.f32 %v1732, %v2144
    %v2146 = vpop.f32.mrb[0].mxu0
    %v2147 = vadd.f32 %v1728, %v2146
    %v2148 = vpop.f32.mrb[0].mxu0
    %v2149 = vadd.f32 %v1732, %v2148
    %2150 = vdwg.mxu0
    %2151 = vmatprep.subr.bf16.mxu0 %v1880
    %2152 = vmatpush1.bf16.msra.mxu0 %v1879
    %2153 = vmatprep.subr.bf16.mxu0 %v1896
    %2154 = vmatpush1.bf16.msra.mxu0 %v1895
    %2155 = vmatprep.subr.bf16.mxu0 0
    %2156 = vmatpush1.bf16.msra.mxu0 0
    %2157 = vmatprep.subr.bf16.mxu0 0
    %2158 = vmatpush1.bf16.msra.mxu0 0
    %2159 = vmatprep.subr.bf16.mxu0 0
    %2160 = vmatpush1.bf16.msra.mxu0 0
    %2161 = vmatprep.subr.bf16.mxu0 0
    %2162 = vmatpush1.bf16.msra.mxu0 0
    %2163 = vmatprep.subr.bf16.mxu0 0
    %2164 = vmatpush1.bf16.msra.mxu0 0
    %2165 = vmatprep.subr.bf16.mxu0 0
    %2166 = vmatpush1.bf16.msra.mxu0 0
    %2167 = vmatprep.subr.bf16.mxu0 0
    %2168 = vmatpush1.bf16.msra.mxu0 0
    %2169 = vmatprep.subr.bf16.mxu0 0
    %2170 = vmatpush1.bf16.msra.mxu0 0
    %2171 = vmatprep.subr.bf16.mxu0 0
    %2172 = vmatpush1.bf16.msra.mxu0 0
    %2173 = vmatprep.subr.bf16.mxu0 0
    %2174 = vmatpush1.bf16.msra.mxu0 0
    %2175 = vmatprep.subr.bf16.mxu0 0
    %2176 = vmatpush1.bf16.msra.mxu0 0
    %2177 = vmatprep.subr.bf16.mxu0 0
    %2178 = vmatpush1.bf16.msra.mxu0 0
    %2179 = vmatprep.subr.bf16.mxu0 0
    %2180 = vmatpush1.bf16.msra.mxu0 0
    %2181 = vmatprep.subr.bf16.mxu0 0
    %2182 = vmatpush1.bf16.msra.mxu0 0
    %2183 = vmatprep.mubr.bf16.mxu0 0
    %2184 = vmatmul.mubr.bf16.gmra.mrb[0].mxu0 %v1934
    %v2185 = vpop.f32.mrb[0].mxu0
    %v2186 = vadd.f32 %v1736, %v2185
    %v2187 = vpop.f32.mrb[0].mxu0
    %v2188 = vadd.f32 %v1740, %v2187
    %v2189 = vpop.f32.mrb[0].mxu0
    %v2190 = vadd.f32 %v1736, %v2189
    %v2191 = vpop.f32.mrb[0].mxu0
    %v2192 = vadd.f32 %v1740, %v2191
    %2193 = vdwg.mxu0
    %2194 = vmatprep.subr.bf16.mxu0 %v1882
    %2195 = vmatpush1.bf16.msra.mxu0 %v1881
    %2196 = vmatprep.subr.bf16.mxu0 %v1898
    %2197 = vmatpush1.bf16.msra.mxu0 %v1897
    %2198 = vmatprep.subr.bf16.mxu0 0
    %2199 = vmatpush1.bf16.msra.mxu0 0
    %2200 = vmatprep.subr.bf16.mxu0 0
    %2201 = vmatpush1.bf16.msra.mxu0 0
    %2202 = vmatprep.subr.bf16.mxu0 0
    %2203 = vmatpush1.bf16.msra.mxu0 0
    %2204 = vmatprep.subr.bf16.mxu0 0
    %2205 = vmatpush1.bf16.msra.mxu0 0
    %2206 = vmatprep.subr.bf16.mxu0 0
    %2207 = vmatpush1.bf16.msra.mxu0 0
    %2208 = vmatprep.subr.bf16.mxu0 0
    %2209 = vmatpush1.bf16.msra.mxu0 0
    %2210 = vmatprep.subr.bf16.mxu0 0
    %2211 = vmatpush1.bf16.msra.mxu0 0
    %2212 = vmatprep.subr.bf16.mxu0 0
    %2213 = vmatpush1.bf16.msra.mxu0 0
    %2214 = vmatprep.subr.bf16.mxu0 0
    %2215 = vmatpush1.bf16.msra.mxu0 0
    %2216 = vmatprep.subr.bf16.mxu0 0
    %2217 = vmatpush1.bf16.msra.mxu0 0
    %2218 = vmatprep.subr.bf16.mxu0 0
    %2219 = vmatpush1.bf16.msra.mxu0 0
    %2220 = vmatprep.subr.bf16.mxu0 0
    %2221 = vmatpush1.bf16.msra.mxu0 0
    %2222 = vmatprep.subr.bf16.mxu0 0
    %2223 = vmatpush1.bf16.msra.mxu0 0
    %2224 = vmatprep.subr.bf16.mxu0 0
    %2225 = vmatpush1.bf16.msra.mxu0 0
    %2226 = vmatprep.mubr.bf16.mxu0 0
    %2227 = vmatmul.mubr.bf16.gmra.mrb[0].mxu0 %v1934
    %v2228 = vpop.f32.mrb[0].mxu0
    %v2229 = vadd.f32 %v1744, %v2228
    %v2230 = vpop.f32.mrb[0].mxu0
    %v2231 = vadd.f32 %v1748, %v2230
    %v2232 = vpop.f32.mrb[0].mxu0
    %v2233 = vadd.f32 %v1744, %v2232
    %v2234 = vpop.f32.mrb[0].mxu0
    %v2235 = vadd.f32 %v1748, %v2234
    %2236 = vdwg.mxu0
    %2237 = vmatprep.subr.bf16.mxu0 %v1884
    %2238 = vmatpush1.bf16.msra.mxu0 %v1883
    %2239 = vmatprep.subr.bf16.mxu0 %v1900
    %2240 = vmatpush1.bf16.msra.mxu0 %v1899
    %2241 = vmatprep.subr.bf16.mxu0 0
    %2242 = vmatpush1.bf16.msra.mxu0 0
    %2243 = vmatprep.subr.bf16.mxu0 0
    %2244 = vmatpush1.bf16.msra.mxu0 0
    %2245 = vmatprep.subr.bf16.mxu0 0
    %2246 = vmatpush1.bf16.msra.mxu0 0
    %2247 = vmatprep.subr.bf16.mxu0 0
    %2248 = vmatpush1.bf16.msra.mxu0 0
    %2249 = vmatprep.subr.bf16.mxu0 0
    %2250 = vmatpush1.bf16.msra.mxu0 0
    %2251 = vmatprep.subr.bf16.mxu0 0
    %2252 = vmatpush1.bf16.msra.mxu0 0
    %2253 = vmatprep.subr.bf16.mxu0 0
    %2254 = vmatpush1.bf16.msra.mxu0 0
    %2255 = vmatprep.subr.bf16.mxu0 0
    %2256 = vmatpush1.bf16.msra.mxu0 0
    %2257 = vmatprep.subr.bf16.mxu0 0
    %2258 = vmatpush1.bf16.msra.mxu0 0
    %2259 = vmatprep.subr.bf16.mxu0 0
    %2260 = vmatpush1.bf16.msra.mxu0 0
    %2261 = vmatprep.subr.bf16.mxu0 0
    %2262 = vmatpush1.bf16.msra.mxu0 0
    %2263 = vmatprep.subr.bf16.mxu0 0
    %2264 = vmatpush1.bf16.msra.mxu0 0
    %2265 = vmatprep.subr.bf16.mxu0 0
    %2266 = vmatpush1.bf16.msra.mxu0 0
    %2267 = vmatprep.subr.bf16.mxu0 0
    %2268 = vmatpush1.bf16.msra.mxu0 0
    %2269 = vmatprep.mubr.bf16.mxu0 0
    %2270 = vmatmul.mubr.bf16.gmra.mrb[0].mxu0 %v1934
    %v2271 = vpop.f32.mrb[0].mxu0
    %v2272 = vadd.f32 %v1752, %v2271
    %v2273 = vpop.f32.mrb[0].mxu0
    %v2274 = vadd.f32 %v1756, %v2273
    %v2275 = vpop.f32.mrb[0].mxu0
    %v2276 = vadd.f32 %v1752, %v2275
    %v2277 = vpop.f32.mrb[0].mxu0
    %v2278 = vadd.f32 %v1756, %v2277
    %2279 = vdwg.mxu0
    %v2280 = vmax.f32 %v1971, 0.0
    %v2281 = vmax.f32 %v1973, 0.0
    %v2282 = vmax.f32 %v2014, 0.0
    %v2283 = vmax.f32 %v2016, 0.0
    %v2284 = vmax.f32 %v2057, 0.0
    %v2285 = vmax.f32 %v2059, 0.0
    %v2286 = vmax.f32 %v2100, 0.0
    %v2287 = vmax.f32 %v2102, 0.0
    %v2288 = vmax.f32 %v2143, 0.0
    %v2289 = vmax.f32 %v2145, 0.0
    %v2290 = vmax.f32 %v2186, 0.0
    %v2291 = vmax.f32 %v2188, 0.0
    %v2292 = vmax.f32 %v2229, 0.0
    %v2293 = vmax.f32 %v2231, 0.0
    %v2294 = vmax.f32 %v2272, 0.0
    %v2295 = vmax.f32 %v2274, 0.0
    %v2296 = vmax.f32 %v1975, 0.0
    %v2297 = vmax.f32 %v1977, 0.0
    %v2298 = vmax.f32 %v2018, 0.0
    %v2299 = vmax.f32 %v2020, 0.0
    %v2300 = vmax.f32 %v2061, 0.0
    %v2301 = vmax.f32 %v2063, 0.0
    %v2302 = vmax.f32 %v2104, 0.0
    %v2303 = vmax.f32 %v2106, 0.0
    %v2304 = vmax.f32 %v2147, 0.0
    %v2305 = vmax.f32 %v2149, 0.0
    %v2306 = vmax.f32 %v2190, 0.0
    %v2307 = vmax.f32 %v2192, 0.0
    %v2308 = vmax.f32 %v2233, 0.0
    %v2309 = vmax.f32 %v2235, 0.0
    %v2310 = vmax.f32 %v2276, 0.0
    %v2311 = vmax.f32 %v2278, 0.0
    %v2312 = vpack.c.bf16 %v2296, %v2280
    %v2313 = vpack.c.bf16 %v2297, %v2281
    %v2314 = vpack.c.bf16 %v2298, %v2282
    %v2315 = vpack.c.bf16 %v2299, %v2283
    %v2316 = vpack.c.bf16 %v2300, %v2284
    %v2317 = vpack.c.bf16 %v2301, %v2285
    %v2318 = vpack.c.bf16 %v2302, %v2286
    %v2319 = vpack.c.bf16 %v2303, %v2287
    %v2320 = vpack.c.bf16 %v2304, %v2288
    %v2321 = vpack.c.bf16 %v2305, %v2289
    %v2322 = vpack.c.bf16 %v2306, %v2290
    %v2323 = vpack.c.bf16 %v2307, %v2291
    %v2324 = vpack.c.bf16 %v2308, %v2292
    %v2325 = vpack.c.bf16 %v2309, %v2293
    %v2326 = vpack.c.bf16 %v2310, %v2294
    %v2327 = vpack.c.bf16 %v2311, %v2295
    %v2328 = vld [vmem:[%s8] sm:$0xff]
    %v2329 = vld [vmem:[%s8 + $0x8] sm:$0xff]
    %v2330 = vld [vmem:[%s8 + $0x10] sm:$0xff]
    %v2331 = vld [vmem:[%s8 + $0x18] sm:$0xff]
    %v2332 = vld [vmem:[%s8 + $0x20] sm:$0xff]
    %v2333 = vld [vmem:[%s8 + $0x28] sm:$0xff]
    %v2334 = vld [vmem:[%s8 + $0x30] sm:$0xff]
    %v2335 = vld [vmem:[%s8 + $0x38] sm:$0xff]
    %v2336 = vld [vmem:[%s8 + $0x40] sm:$0xff]
    %v2337 = vld [vmem:[%s8 + $0x48] sm:$0xff]
    %v2338 = vld [vmem:[%s8 + $0x50] sm:$0xff]
    %v2339 = vld [vmem:[%s8 + $0x58] sm:$0xff]
    %v2340 = vld [vmem:[%s8 + $0x60] sm:$0xff]
    %v2341 = vld [vmem:[%s8 + $0x68] sm:$0xff]
    %v2342 = vld [vmem:[%s8 + $0x70] sm:$0xff]
    %v2343 = vld [vmem:[%s8 + $0x78] sm:$0xff]
    %v2344 = vld [vmem:[%s8 + $0x80] sm:$0xff]
    %v2345 = vld [vmem:[%s8 + $0x88] sm:$0xff]
    %v2346 = vld [vmem:[%s8 + $0x90] sm:$0xff]
    %v2347 = vld [vmem:[%s8 + $0x98] sm:$0xff]
    %v2348 = vld [vmem:[%s8 + $0xa0] sm:$0xff]
    %v2349 = vld [vmem:[%s8 + $0xa8] sm:$0xff]
    %v2350 = vld [vmem:[%s8 + $0xb0] sm:$0xff]
    %v2351 = vld [vmem:[%s8 + $0xb8] sm:$0xff]
    %v2352 = vld [vmem:[%s8 + $0xc0] sm:$0xff]
    %v2353 = vld [vmem:[%s8 + $0xc8] sm:$0xff]
    %v2354 = vld [vmem:[%s8 + $0xd0] sm:$0xff]
    %v2355 = vld [vmem:[%s8 + $0xd8] sm:$0xff]
    %v2356 = vld [vmem:[%s8 + $0xe0] sm:$0xff]
    %v2357 = vld [vmem:[%s8 + $0xe8] sm:$0xff]
    %v2358 = vld [vmem:[%s8 + $0xf0] sm:$0xff]
    %v2359 = vld [vmem:[%s8 + $0xf8] sm:$0xff]
    %s2360 = scalar_lea.vmem %s9, 1
    %v2361 = vld [vmem:[%s2360] sm:$0x1]
    %v2363 = vlaneseq
    %v2364 = vshrl.u32 %v2363, 7
    %v2365 = vsub.s32 0, %v2364
    %v2366 = vrot.slane %v2361, %v2365
    %v2400 = vunpack.c.l.b16 %v2328
    %v2401 = vunpack.c.h.b16 %v2328
    %v2402 = vunpack.c.l.b16 %v2329
    %v2403 = vunpack.c.h.b16 %v2329
    %v2404 = vunpack.c.l.b16 %v2330
    %v2405 = vunpack.c.h.b16 %v2330
    %v2406 = vunpack.c.l.b16 %v2331
    %v2407 = vunpack.c.h.b16 %v2331
    %v2408 = vunpack.c.l.b16 %v2332
    %v2409 = vunpack.c.h.b16 %v2332
    %v2410 = vunpack.c.l.b16 %v2333
    %v2411 = vunpack.c.h.b16 %v2333
    %v2412 = vunpack.c.l.b16 %v2334
    %v2413 = vunpack.c.h.b16 %v2334
    %v2414 = vunpack.c.l.b16 %v2335
    %v2415 = vunpack.c.h.b16 %v2335
    %v2416 = vunpack.c.l.b16 %v2336
    %v2417 = vunpack.c.h.b16 %v2336
    %v2418 = vunpack.c.l.b16 %v2337
    %v2419 = vunpack.c.h.b16 %v2337
    %v2420 = vunpack.c.l.b16 %v2338
    %v2421 = vunpack.c.h.b16 %v2338
    %v2422 = vunpack.c.l.b16 %v2339
    %v2423 = vunpack.c.h.b16 %v2339
    %v2424 = vunpack.c.l.b16 %v2340
    %v2425 = vunpack.c.h.b16 %v2340
    %v2426 = vunpack.c.l.b16 %v2341
    %v2427 = vunpack.c.h.b16 %v2341
    %v2428 = vunpack.c.l.b16 %v2342
    %v2429 = vunpack.c.h.b16 %v2342
    %v2430 = vunpack.c.l.b16 %v2343
    %v2431 = vunpack.c.h.b16 %v2343
    %v2432 = vunpack.c.l.b16 %v2344
    %v2433 = vunpack.c.h.b16 %v2344
    %v2434 = vunpack.c.l.b16 %v2345
    %v2435 = vunpack.c.h.b16 %v2345
    %v2436 = vunpack.c.l.b16 %v2346
    %v2437 = vunpack.c.h.b16 %v2346
    %v2438 = vunpack.c.l.b16 %v2347
    %v2439 = vunpack.c.h.b16 %v2347
    %v2440 = vunpack.c.l.b16 %v2348
    %v2441 = vunpack.c.h.b16 %v2348
    %v2442 = vunpack.c.l.b16 %v2349
    %v2443 = vunpack.c.h.b16 %v2349
    %v2444 = vunpack.c.l.b16 %v2350
    %v2445 = vunpack.c.h.b16 %v2350
    %v2446 = vunpack.c.l.b16 %v2351
    %v2447 = vunpack.c.h.b16 %v2351
    %v2448 = vunpack.c.l.b16 %v2352
    %v2449 = vunpack.c.h.b16 %v2352
    %v2450 = vunpack.c.l.b16 %v2353
    %v2451 = vunpack.c.h.b16 %v2353
    %v2452 = vunpack.c.l.b16 %v2354
    %v2453 = vunpack.c.h.b16 %v2354
    %v2454 = vunpack.c.l.b16 %v2355
    %v2455 = vunpack.c.h.b16 %v2355
    %v2456 = vunpack.c.l.b16 %v2356
    %v2457 = vunpack.c.h.b16 %v2356
    %v2458 = vunpack.c.l.b16 %v2357
    %v2459 = vunpack.c.h.b16 %v2357
    %v2460 = vunpack.c.l.b16 %v2358
    %v2461 = vunpack.c.h.b16 %v2358
    %v2462 = vunpack.c.l.b16 %v2359
    %v2463 = vunpack.c.h.b16 %v2359
    %v2464 = vpack.c.b16 %v2416, %v2400
    %v2465 = vpack.c.b16 %v2417, %v2401
    %v2466 = vpack.c.b16 %v2418, %v2402
    %v2467 = vpack.c.b16 %v2419, %v2403
    %v2468 = vpack.c.b16 %v2420, %v2404
    %v2469 = vpack.c.b16 %v2421, %v2405
    %v2470 = vpack.c.b16 %v2422, %v2406
    %v2471 = vpack.c.b16 %v2423, %v2407
    %v2472 = vpack.c.b16 %v2424, %v2408
    %v2473 = vpack.c.b16 %v2425, %v2409
    %v2474 = vpack.c.b16 %v2426, %v2410
    %v2475 = vpack.c.b16 %v2427, %v2411
    %v2476 = vpack.c.b16 %v2428, %v2412
    %v2477 = vpack.c.b16 %v2429, %v2413
    %v2478 = vpack.c.b16 %v2430, %v2414
    %v2479 = vpack.c.b16 %v2431, %v2415
    %v2480 = vpack.c.b16 %v2448, %v2432
    %v2481 = vpack.c.b16 %v2449, %v2433
    %v2482 = vpack.c.b16 %v2450, %v2434
    %v2483 = vpack.c.b16 %v2451, %v2435
    %v2484 = vpack.c.b16 %v2452, %v2436
    %v2485 = vpack.c.b16 %v2453, %v2437
    %v2486 = vpack.c.b16 %v2454, %v2438
    %v2487 = vpack.c.b16 %v2455, %v2439
    %v2488 = vpack.c.b16 %v2456, %v2440
    %v2489 = vpack.c.b16 %v2457, %v2441
    %v2490 = vpack.c.b16 %v2458, %v2442
    %v2491 = vpack.c.b16 %v2459, %v2443
    %v2492 = vpack.c.b16 %v2460, %v2444
    %v2493 = vpack.c.b16 %v2461, %v2445
    %v2494 = vpack.c.b16 %v2462, %v2446
    %v2495 = vpack.c.b16 %v2463, %v2447
    %2528 = vmatprep.subr.bf16.mxu0 %v2465
    %2529 = vmatpush1.bf16.xpose.msra.mxu0 %v2464
    %2530 = vmatprep.subr.bf16.mxu0 %v2481
    %2531 = vmatpush1.bf16.xpose.msra.mxu0 %v2480
    %2532 = vmatprep.subr.bf16.mxu0 0
    %2533 = vmatpush1.bf16.xpose.msra.mxu0 0
    %2534 = vmatprep.subr.bf16.mxu0 0
    %2535 = vmatpush1.bf16.xpose.msra.mxu0 0
    %2536 = vmatprep.subr.bf16.mxu0 0
    %2537 = vmatpush1.bf16.xpose.msra.mxu0 0
    %2538 = vmatprep.subr.bf16.mxu0 0
    %2539 = vmatpush1.bf16.xpose.msra.mxu0 0
    %2540 = vmatprep.subr.bf16.mxu0 0
    %2541 = vmatpush1.bf16.xpose.msra.mxu0 0
    %2542 = vmatprep.subr.bf16.mxu0 0
    %2543 = vmatpush1.bf16.xpose.msra.mxu0 0
    %2544 = vmatprep.subr.bf16.mxu0 0
    %2545 = vmatpush1.bf16.xpose.msra.mxu0 0
    %2546 = vmatprep.subr.bf16.mxu0 0
    %2547 = vmatpush1.bf16.xpose.msra.mxu0 0
    %2548 = vmatprep.subr.bf16.mxu0 0
    %2549 = vmatpush1.bf16.xpose.msra.mxu0 0
    %2550 = vmatprep.subr.bf16.mxu0 0
    %2551 = vmatpush1.bf16.xpose.msra.mxu0 0
    %2552 = vmatprep.subr.bf16.mxu0 0
    %2553 = vmatpush1.bf16.xpose.msra.mxu0 0
    %2554 = vmatprep.subr.bf16.mxu0 0
    %2555 = vmatpush1.bf16.xpose.msra.mxu0 0
    %2556 = vmatprep.subr.bf16.mxu0 0
    %2557 = vmatpush1.bf16.xpose.msra.mxu0 0
    %2558 = vmatprep.subr.bf16.mxu0 0
    %2559 = vmatpush1.bf16.xpose.msra.mxu0 0
    %2560 = vmatprep.mubr.bf16.mxu0 %v2313
    %2561 = vmatmul.mubr.bf16.gmra.mrb[0].mxu0 %v2312
    %v2562 = vpop.f32.mrb[0].mxu0
    %v2563 = vadd.f32 %v2366, %v2562
    %v2564 = vpop.f32.mrb[0].mxu0
    %v2565 = vpop.f32.mrb[0].mxu0
    %v2566 = vadd.f32 %v2366, %v2565
    %v2567 = vpop.f32.mrb[0].mxu0
    %2568 = vdwg.mxu0
    %2569 = vmatprep.subr.bf16.mxu0 %v2467
    %2570 = vmatpush1.bf16.xpose.msra.mxu0 %v2466
    %2571 = vmatprep.subr.bf16.mxu0 %v2483
    %2572 = vmatpush1.bf16.xpose.msra.mxu0 %v2482
    %2573 = vmatprep.subr.bf16.mxu0 0
    %2574 = vmatpush1.bf16.xpose.msra.mxu0 0
    %2575 = vmatprep.subr.bf16.mxu0 0
    %2576 = vmatpush1.bf16.xpose.msra.mxu0 0
    %2577 = vmatprep.subr.bf16.mxu0 0
    %2578 = vmatpush1.bf16.xpose.msra.mxu0 0
    %2579 = vmatprep.subr.bf16.mxu0 0
    %2580 = vmatpush1.bf16.xpose.msra.mxu0 0
    %2581 = vmatprep.subr.bf16.mxu0 0
    %2582 = vmatpush1.bf16.xpose.msra.mxu0 0
    %2583 = vmatprep.subr.bf16.mxu0 0
    %2584 = vmatpush1.bf16.xpose.msra.mxu0 0
    %2585 = vmatprep.subr.bf16.mxu0 0
    %2586 = vmatpush1.bf16.xpose.msra.mxu0 0
    %2587 = vmatprep.subr.bf16.mxu0 0
    %2588 = vmatpush1.bf16.xpose.msra.mxu0 0
    %2589 = vmatprep.subr.bf16.mxu0 0
    %2590 = vmatpush1.bf16.xpose.msra.mxu0 0
    %2591 = vmatprep.subr.bf16.mxu0 0
    %2592 = vmatpush1.bf16.xpose.msra.mxu0 0
    %2593 = vmatprep.subr.bf16.mxu0 0
    %2594 = vmatpush1.bf16.xpose.msra.mxu0 0
    %2595 = vmatprep.subr.bf16.mxu0 0
    %2596 = vmatpush1.bf16.xpose.msra.mxu0 0
    %2597 = vmatprep.subr.bf16.mxu0 0
    %2598 = vmatpush1.bf16.xpose.msra.mxu0 0
    %2599 = vmatprep.subr.bf16.mxu0 0
    %2600 = vmatpush1.bf16.xpose.msra.mxu0 0
    %2601 = vmatprep.mubr.bf16.mxu0 %v2315
    %2602 = vmatmul.mubr.bf16.gmra.mrb[0].mxu0 %v2314
    %v2603 = vpop.f32.mrb[0].mxu0
    %v2604 = vadd.f32 %v2563, %v2603
    %v2605 = vpop.f32.mrb[0].mxu0
    %v2606 = vpop.f32.mrb[0].mxu0
    %v2607 = vadd.f32 %v2566, %v2606
    %v2608 = vpop.f32.mrb[0].mxu0
    %2609 = vdwg.mxu0
    %2610 = vmatprep.subr.bf16.mxu0 %v2469
    %2611 = vmatpush1.bf16.xpose.msra.mxu0 %v2468
    %2612 = vmatprep.subr.bf16.mxu0 %v2485
    %2613 = vmatpush1.bf16.xpose.msra.mxu0 %v2484
    %2614 = vmatprep.subr.bf16.mxu0 0
    %2615 = vmatpush1.bf16.xpose.msra.mxu0 0
    %2616 = vmatprep.subr.bf16.mxu0 0
    %2617 = vmatpush1.bf16.xpose.msra.mxu0 0
    %2618 = vmatprep.subr.bf16.mxu0 0
    %2619 = vmatpush1.bf16.xpose.msra.mxu0 0
    %2620 = vmatprep.subr.bf16.mxu0 0
    %2621 = vmatpush1.bf16.xpose.msra.mxu0 0
    %2622 = vmatprep.subr.bf16.mxu0 0
    %2623 = vmatpush1.bf16.xpose.msra.mxu0 0
    %2624 = vmatprep.subr.bf16.mxu0 0
    %2625 = vmatpush1.bf16.xpose.msra.mxu0 0
    %2626 = vmatprep.subr.bf16.mxu0 0
    %2627 = vmatpush1.bf16.xpose.msra.mxu0 0
    %2628 = vmatprep.subr.bf16.mxu0 0
    %2629 = vmatpush1.bf16.xpose.msra.mxu0 0
    %2630 = vmatprep.subr.bf16.mxu0 0
    %2631 = vmatpush1.bf16.xpose.msra.mxu0 0
    %2632 = vmatprep.subr.bf16.mxu0 0
    %2633 = vmatpush1.bf16.xpose.msra.mxu0 0
    %2634 = vmatprep.subr.bf16.mxu0 0
    %2635 = vmatpush1.bf16.xpose.msra.mxu0 0
    %2636 = vmatprep.subr.bf16.mxu0 0
    %2637 = vmatpush1.bf16.xpose.msra.mxu0 0
    %2638 = vmatprep.subr.bf16.mxu0 0
    %2639 = vmatpush1.bf16.xpose.msra.mxu0 0
    %2640 = vmatprep.subr.bf16.mxu0 0
    %2641 = vmatpush1.bf16.xpose.msra.mxu0 0
    %2642 = vmatprep.mubr.bf16.mxu0 %v2317
    %2643 = vmatmul.mubr.bf16.gmra.mrb[0].mxu0 %v2316
    %v2644 = vpop.f32.mrb[0].mxu0
    %v2645 = vadd.f32 %v2604, %v2644
    %v2646 = vpop.f32.mrb[0].mxu0
    %v2647 = vpop.f32.mrb[0].mxu0
    %v2648 = vadd.f32 %v2607, %v2647
    %v2649 = vpop.f32.mrb[0].mxu0
    %2650 = vdwg.mxu0
    %2651 = vmatprep.subr.bf16.mxu0 %v2471
    %2652 = vmatpush1.bf16.xpose.msra.mxu0 %v2470
    %2653 = vmatprep.subr.bf16.mxu0 %v2487
    %2654 = vmatpush1.bf16.xpose.msra.mxu0 %v2486
    %2655 = vmatprep.subr.bf16.mxu0 0
    %2656 = vmatpush1.bf16.xpose.msra.mxu0 0
    %2657 = vmatprep.subr.bf16.mxu0 0
    %2658 = vmatpush1.bf16.xpose.msra.mxu0 0
    %2659 = vmatprep.subr.bf16.mxu0 0
    %2660 = vmatpush1.bf16.xpose.msra.mxu0 0
    %2661 = vmatprep.subr.bf16.mxu0 0
    %2662 = vmatpush1.bf16.xpose.msra.mxu0 0
    %2663 = vmatprep.subr.bf16.mxu0 0
    %2664 = vmatpush1.bf16.xpose.msra.mxu0 0
    %2665 = vmatprep.subr.bf16.mxu0 0
    %2666 = vmatpush1.bf16.xpose.msra.mxu0 0
    %2667 = vmatprep.subr.bf16.mxu0 0
    %2668 = vmatpush1.bf16.xpose.msra.mxu0 0
    %2669 = vmatprep.subr.bf16.mxu0 0
    %2670 = vmatpush1.bf16.xpose.msra.mxu0 0
    %2671 = vmatprep.subr.bf16.mxu0 0
    %2672 = vmatpush1.bf16.xpose.msra.mxu0 0
    %2673 = vmatprep.subr.bf16.mxu0 0
    %2674 = vmatpush1.bf16.xpose.msra.mxu0 0
    %2675 = vmatprep.subr.bf16.mxu0 0
    %2676 = vmatpush1.bf16.xpose.msra.mxu0 0
    %2677 = vmatprep.subr.bf16.mxu0 0
    %2678 = vmatpush1.bf16.xpose.msra.mxu0 0
    %2679 = vmatprep.subr.bf16.mxu0 0
    %2680 = vmatpush1.bf16.xpose.msra.mxu0 0
    %2681 = vmatprep.subr.bf16.mxu0 0
    %2682 = vmatpush1.bf16.xpose.msra.mxu0 0
    %2683 = vmatprep.mubr.bf16.mxu0 %v2319
    %2684 = vmatmul.mubr.bf16.gmra.mrb[0].mxu0 %v2318
    %v2685 = vpop.f32.mrb[0].mxu0
    %v2686 = vadd.f32 %v2645, %v2685
    %v2687 = vpop.f32.mrb[0].mxu0
    %v2688 = vpop.f32.mrb[0].mxu0
    %v2689 = vadd.f32 %v2648, %v2688
    %v2690 = vpop.f32.mrb[0].mxu0
    %2691 = vdwg.mxu0
    %2692 = vmatprep.subr.bf16.mxu0 %v2473
    %2693 = vmatpush1.bf16.xpose.msra.mxu0 %v2472
    %2694 = vmatprep.subr.bf16.mxu0 %v2489
    %2695 = vmatpush1.bf16.xpose.msra.mxu0 %v2488
    %2696 = vmatprep.subr.bf16.mxu0 0
    %2697 = vmatpush1.bf16.xpose.msra.mxu0 0
    %2698 = vmatprep.subr.bf16.mxu0 0
    %2699 = vmatpush1.bf16.xpose.msra.mxu0 0
    %2700 = vmatprep.subr.bf16.mxu0 0
    %2701 = vmatpush1.bf16.xpose.msra.mxu0 0
    %2702 = vmatprep.subr.bf16.mxu0 0
    %2703 = vmatpush1.bf16.xpose.msra.mxu0 0
    %2704 = vmatprep.subr.bf16.mxu0 0
    %2705 = vmatpush1.bf16.xpose.msra.mxu0 0
    %2706 = vmatprep.subr.bf16.mxu0 0
    %2707 = vmatpush1.bf16.xpose.msra.mxu0 0
    %2708 = vmatprep.subr.bf16.mxu0 0
    %2709 = vmatpush1.bf16.xpose.msra.mxu0 0
    %2710 = vmatprep.subr.bf16.mxu0 0
    %2711 = vmatpush1.bf16.xpose.msra.mxu0 0
    %2712 = vmatprep.subr.bf16.mxu0 0
    %2713 = vmatpush1.bf16.xpose.msra.mxu0 0
    %2714 = vmatprep.subr.bf16.mxu0 0
    %2715 = vmatpush1.bf16.xpose.msra.mxu0 0
    %2716 = vmatprep.subr.bf16.mxu0 0
    %2717 = vmatpush1.bf16.xpose.msra.mxu0 0
    %2718 = vmatprep.subr.bf16.mxu0 0
    %2719 = vmatpush1.bf16.xpose.msra.mxu0 0
    %2720 = vmatprep.subr.bf16.mxu0 0
    %2721 = vmatpush1.bf16.xpose.msra.mxu0 0
    %2722 = vmatprep.subr.bf16.mxu0 0
    %2723 = vmatpush1.bf16.xpose.msra.mxu0 0
    %2724 = vmatprep.mubr.bf16.mxu0 %v2321
    %2725 = vmatmul.mubr.bf16.gmra.mrb[0].mxu0 %v2320
    %v2726 = vpop.f32.mrb[0].mxu0
    %v2727 = vadd.f32 %v2686, %v2726
    %v2728 = vpop.f32.mrb[0].mxu0
    %v2729 = vpop.f32.mrb[0].mxu0
    %v2730 = vadd.f32 %v2689, %v2729
    %v2731 = vpop.f32.mrb[0].mxu0
    %2732 = vdwg.mxu0
    %2733 = vmatprep.subr.bf16.mxu0 %v2475
    %2734 = vmatpush1.bf16.xpose.msra.mxu0 %v2474
    %2735 = vmatprep.subr.bf16.mxu0 %v2491
    %2736 = vmatpush1.bf16.xpose.msra.mxu0 %v2490
    %2737 = vmatprep.subr.bf16.mxu0 0
    %2738 = vmatpush1.bf16.xpose.msra.mxu0 0
    %2739 = vmatprep.subr.bf16.mxu0 0
    %2740 = vmatpush1.bf16.xpose.msra.mxu0 0
    %2741 = vmatprep.subr.bf16.mxu0 0
    %2742 = vmatpush1.bf16.xpose.msra.mxu0 0
    %2743 = vmatprep.subr.bf16.mxu0 0
    %2744 = vmatpush1.bf16.xpose.msra.mxu0 0
    %2745 = vmatprep.subr.bf16.mxu0 0
    %2746 = vmatpush1.bf16.xpose.msra.mxu0 0
    %2747 = vmatprep.subr.bf16.mxu0 0
    %2748 = vmatpush1.bf16.xpose.msra.mxu0 0
    %2749 = vmatprep.subr.bf16.mxu0 0
    %2750 = vmatpush1.bf16.xpose.msra.mxu0 0
    %2751 = vmatprep.subr.bf16.mxu0 0
    %2752 = vmatpush1.bf16.xpose.msra.mxu0 0
    %2753 = vmatprep.subr.bf16.mxu0 0
    %2754 = vmatpush1.bf16.xpose.msra.mxu0 0
    %2755 = vmatprep.subr.bf16.mxu0 0
    %2756 = vmatpush1.bf16.xpose.msra.mxu0 0
    %2757 = vmatprep.subr.bf16.mxu0 0
    %2758 = vmatpush1.bf16.xpose.msra.mxu0 0
    %2759 = vmatprep.subr.bf16.mxu0 0
    %2760 = vmatpush1.bf16.xpose.msra.mxu0 0
    %2761 = vmatprep.subr.bf16.mxu0 0
    %2762 = vmatpush1.bf16.xpose.msra.mxu0 0
    %2763 = vmatprep.subr.bf16.mxu0 0
    %2764 = vmatpush1.bf16.xpose.msra.mxu0 0
    %2765 = vmatprep.mubr.bf16.mxu0 %v2323
    %2766 = vmatmul.mubr.bf16.gmra.mrb[0].mxu0 %v2322
    %v2767 = vpop.f32.mrb[0].mxu0
    %v2768 = vadd.f32 %v2727, %v2767
    %v2769 = vpop.f32.mrb[0].mxu0
    %v2770 = vpop.f32.mrb[0].mxu0
    %v2771 = vadd.f32 %v2730, %v2770
    %v2772 = vpop.f32.mrb[0].mxu0
    %2773 = vdwg.mxu0
    %2774 = vmatprep.subr.bf16.mxu0 %v2477
    %2775 = vmatpush1.bf16.xpose.msra.mxu0 %v2476
    %2776 = vmatprep.subr.bf16.mxu0 %v2493
    %2777 = vmatpush1.bf16.xpose.msra.mxu0 %v2492
    %2778 = vmatprep.subr.bf16.mxu0 0
    %2779 = vmatpush1.bf16.xpose.msra.mxu0 0
    %2780 = vmatprep.subr.bf16.mxu0 0
    %2781 = vmatpush1.bf16.xpose.msra.mxu0 0
    %2782 = vmatprep.subr.bf16.mxu0 0
    %2783 = vmatpush1.bf16.xpose.msra.mxu0 0
    %2784 = vmatprep.subr.bf16.mxu0 0
    %2785 = vmatpush1.bf16.xpose.msra.mxu0 0
    %2786 = vmatprep.subr.bf16.mxu0 0
    %2787 = vmatpush1.bf16.xpose.msra.mxu0 0
    %2788 = vmatprep.subr.bf16.mxu0 0
    %2789 = vmatpush1.bf16.xpose.msra.mxu0 0
    %2790 = vmatprep.subr.bf16.mxu0 0
    %2791 = vmatpush1.bf16.xpose.msra.mxu0 0
    %2792 = vmatprep.subr.bf16.mxu0 0
    %2793 = vmatpush1.bf16.xpose.msra.mxu0 0
    %2794 = vmatprep.subr.bf16.mxu0 0
    %2795 = vmatpush1.bf16.xpose.msra.mxu0 0
    %2796 = vmatprep.subr.bf16.mxu0 0
    %2797 = vmatpush1.bf16.xpose.msra.mxu0 0
    %2798 = vmatprep.subr.bf16.mxu0 0
    %2799 = vmatpush1.bf16.xpose.msra.mxu0 0
    %2800 = vmatprep.subr.bf16.mxu0 0
    %2801 = vmatpush1.bf16.xpose.msra.mxu0 0
    %2802 = vmatprep.subr.bf16.mxu0 0
    %2803 = vmatpush1.bf16.xpose.msra.mxu0 0
    %2804 = vmatprep.subr.bf16.mxu0 0
    %2805 = vmatpush1.bf16.xpose.msra.mxu0 0
    %2806 = vmatprep.mubr.bf16.mxu0 %v2325
    %2807 = vmatmul.mubr.bf16.gmra.mrb[0].mxu0 %v2324
    %v2808 = vpop.f32.mrb[0].mxu0
    %v2809 = vadd.f32 %v2768, %v2808
    %v2810 = vpop.f32.mrb[0].mxu0
    %v2811 = vpop.f32.mrb[0].mxu0
    %v2812 = vadd.f32 %v2771, %v2811
    %v2813 = vpop.f32.mrb[0].mxu0
    %2814 = vdwg.mxu0
    %2815 = vmatprep.subr.bf16.mxu0 %v2479
    %2816 = vmatpush1.bf16.xpose.msra.mxu0 %v2478
    %2817 = vmatprep.subr.bf16.mxu0 %v2495
    %2818 = vmatpush1.bf16.xpose.msra.mxu0 %v2494
    %2819 = vmatprep.subr.bf16.mxu0 0
    %2820 = vmatpush1.bf16.xpose.msra.mxu0 0
    %2821 = vmatprep.subr.bf16.mxu0 0
    %2822 = vmatpush1.bf16.xpose.msra.mxu0 0
    %2823 = vmatprep.subr.bf16.mxu0 0
    %2824 = vmatpush1.bf16.xpose.msra.mxu0 0
    %2825 = vmatprep.subr.bf16.mxu0 0
    %2826 = vmatpush1.bf16.xpose.msra.mxu0 0
    %2827 = vmatprep.subr.bf16.mxu0 0
    %2828 = vmatpush1.bf16.xpose.msra.mxu0 0
    %2829 = vmatprep.subr.bf16.mxu0 0
    %2830 = vmatpush1.bf16.xpose.msra.mxu0 0
    %2831 = vmatprep.subr.bf16.mxu0 0
    %2832 = vmatpush1.bf16.xpose.msra.mxu0 0
    %2833 = vmatprep.subr.bf16.mxu0 0
    %2834 = vmatpush1.bf16.xpose.msra.mxu0 0
    %2835 = vmatprep.subr.bf16.mxu0 0
    %2836 = vmatpush1.bf16.xpose.msra.mxu0 0
    %2837 = vmatprep.subr.bf16.mxu0 0
    %2838 = vmatpush1.bf16.xpose.msra.mxu0 0
    %2839 = vmatprep.subr.bf16.mxu0 0
    %2840 = vmatpush1.bf16.xpose.msra.mxu0 0
    %2841 = vmatprep.subr.bf16.mxu0 0
    %2842 = vmatpush1.bf16.xpose.msra.mxu0 0
    %2843 = vmatprep.subr.bf16.mxu0 0
    %2844 = vmatpush1.bf16.xpose.msra.mxu0 0
    %2845 = vmatprep.subr.bf16.mxu0 0
    %2846 = vmatpush1.bf16.xpose.msra.mxu0 0
    %2847 = vmatprep.mubr.bf16.mxu0 %v2327
    %2848 = vmatmul.mubr.bf16.gmra.mrb[0].mxu0 %v2326
    %v2849 = vpop.f32.mrb[0].mxu0
    %v2850 = vadd.f32 %v2809, %v2849
    %v2851 = vpop.f32.mrb[0].mxu0
    %v2852 = vpop.f32.mrb[0].mxu0
    %v2853 = vadd.f32 %v2812, %v2852
    %v2854 = vpop.f32.mrb[0].mxu0
    %2855 = vdwg.mxu0
    %v2856 = vadd.f32 %v1654, %v2850
    %v2857 = vadd.f32 %v1655, %v2853
    %s2858 = scalar_lea.vmem %s9, 4
    %v2859 = vld [vmem:[%s2858] sm:$0x1]
    %s2860 = scalar_lea.vmem %s9, 5
    %v2861 = vld [vmem:[%s2860] sm:$0x1]
    %v2862 = vsel %vm143, %v2856, 0.0
    %2863 = vadd.xlane.f32.xlu0 %v2862
    %v2864 = vpop.xlane.xlu0 %2863
    %v2865 = vsel %vm143, %v2857, 0.0
    %2866 = vadd.xlane.f32.xlu0 %v2865
    %v2867 = vpop.xlane.xlu0 %2866
    %v2868 = vmul.f32 %v2864, %v1619
    %v2869 = vmul.f32 %v2867, %v1619
    %v2870 = vsub.f32 %v2856, %v2868
    %v2871 = vsub.f32 %v2857, %v2869
    %v2872 = vmul.f32 %v2870, %v2870
    %v2873 = vmul.f32 %v2871, %v2871
    %v2874 = vsel %vm143, %v2872, 0.0
    %2875 = vadd.xlane.f32.xlu0 %v2874
    %v2876 = vpop.xlane.xlu0 %2875
    %v2877 = vsel %vm143, %v2873, 0.0
    %2878 = vadd.xlane.f32.xlu0 %v2877
    %v2879 = vpop.xlane.xlu0 %2878
    %v2880 = vmul.f32 %v2876, %v1619
    %v2881 = vmul.f32 %v2879, %v1619
    %v2882 = vadd.f32 %v2880, 1e-05
    %v2883 = vadd.f32 %v2881, 1e-05
    %v2884 = vrsqrt.pop %v2882
    %v2885 = vrsqrt.pop %v2883
    %v2886 = vmul.f32 %v2870, %v2884
    %v2887 = vmul.f32 %v2871, %v2885
    %v2889 = vlaneseq
    %v2890 = vshrl.u32 %v2889, 7
    %v2891 = vsub.s32 0, %v2890
    %v2892 = vrot.slane %v2859, %v2891
    %v2894 = vmul.f32 %v2886, %v2892
    %v2895 = vmul.f32 %v2887, %v2892
    %v2897 = vlaneseq
    %v2898 = vshrl.u32 %v2897, 7
    %v2899 = vsub.s32 0, %v2898
    %v2900 = vrot.slane %v2861, %v2899
    %v2902 = vadd.f32 %v2894, %v2900
    %v2903 = vadd.f32 %v2895, %v2900
    %v2904 = vpack.c.bf16 %v2903, %v2902
    %s2905 = scalar_lea.vmem %s3, 16
    %v2906 = vld [vmem:[%s2905] sm:$0xf]
    %v2907 = vld [vmem:[%s2905 + $0x4] sm:$0xf]
    %v2908 = vld [vmem:[%s2905 + $0x8] sm:$0xf]
    %v2909 = vld [vmem:[%s2905 + $0xc] sm:$0xf]
    %s2910 = scalar_lea.vmem %s4, 1
    %v2911 = vld [vmem:[%s2910] sm:$0x1]
    %v2913 = vlaneseq
    %v2914 = vshrl.u32 %v2913, 7
    %v2915 = vsub.s32 0, %v2914
    %v2916 = vrot.slane %v2911, %v2915
    %v2922 = vunpack.c.l.b16 %v2906
    %v2923 = vunpack.c.l.b16 %v2907
    %v2924 = vunpack.c.l.b16 %v2908
    %v2925 = vunpack.c.l.b16 %v2909
    %v2926 = vpack.c.b16 %v2923, %v2922
    %v2927 = vpack.c.b16 %v2925, %v2924
    %v2931 = vsel %vm143, %v2904, 0
    %2933 = vmatprep.subr.bf16.mxu0 0
    %2934 = vmatpush1.bf16.msra.mxu0 %v2926
    %2935 = vmatprep.subr.bf16.mxu0 0
    %2936 = vmatpush1.bf16.msra.mxu0 %v2927
    %2937 = vmatprep.subr.bf16.mxu0 0
    %2938 = vmatpush1.bf16.msra.mxu0 0
    %2939 = vmatprep.subr.bf16.mxu0 0
    %2940 = vmatpush1.bf16.msra.mxu0 0
    %2941 = vmatprep.subr.bf16.mxu0 0
    %2942 = vmatpush1.bf16.msra.mxu0 0
    %2943 = vmatprep.subr.bf16.mxu0 0
    %2944 = vmatpush1.bf16.msra.mxu0 0
    %2945 = vmatprep.subr.bf16.mxu0 0
    %2946 = vmatpush1.bf16.msra.mxu0 0
    %2947 = vmatprep.subr.bf16.mxu0 0
    %2948 = vmatpush1.bf16.msra.mxu0 0
    %2949 = vmatprep.subr.bf16.mxu0 0
    %2950 = vmatpush1.bf16.msra.mxu0 0
    %2951 = vmatprep.subr.bf16.mxu0 0
    %2952 = vmatpush1.bf16.msra.mxu0 0
    %2953 = vmatprep.subr.bf16.mxu0 0
    %2954 = vmatpush1.bf16.msra.mxu0 0
    %2955 = vmatprep.subr.bf16.mxu0 0
    %2956 = vmatpush1.bf16.msra.mxu0 0
    %2957 = vmatprep.subr.bf16.mxu0 0
    %2958 = vmatpush1.bf16.msra.mxu0 0
    %2959 = vmatprep.subr.bf16.mxu0 0
    %2960 = vmatpush1.bf16.msra.mxu0 0
    %2961 = vmatprep.subr.bf16.mxu0 0
    %2962 = vmatpush1.bf16.msra.mxu0 0
    %2963 = vmatprep.subr.bf16.mxu0 0
    %2964 = vmatpush1.bf16.msra.mxu0 0
    %2965 = vmatprep.mubr.bf16.mxu0 0
    %2966 = vmatmul.mubr.bf16.gmra.mrb[0].mxu0 %v2931
    %v2967 = vpop.f32.mrb[0].mxu0
    %v2968 = vadd.f32 %v2916, %v2967
    %v2969 = vpop.f32.mrb[0].mxu0
    %v2970 = vpop.f32.mrb[0].mxu0
    %v2971 = vadd.f32 %v2916, %v2970
    %v2972 = vpop.f32.mrb[0].mxu0
    %2973 = vdwg.mxu0
    %2975 = vrot.lane.b32.xlu0 %v2968, 96
    %v2976 = vpop.permute.xlu0 %2975
    %v2977 = vsel %vm191, %v2968, 0
    %v2979 = vsel %vm191, %v2976, 0
    %2981 = vmatprep.subr.mxu0 0.0
    %2982 = vmatpush1.xpose.msra.mxu0 %v2979
    %2983 = vmatprep.subr.mxu0 0.0
    %2984 = vmatpush1.xpose.msra.mxu0 0.0
    %2985 = vmatprep.subr.mxu0 0.0
    %2986 = vmatpush1.xpose.msra.mxu0 0.0
    %2987 = vmatprep.subr.mxu0 0.0
    %2988 = vmatpush1.xpose.msra.mxu0 0.0
    %2989 = vmatprep.subr.mxu0 0.0
    %2990 = vmatpush1.xpose.msra.mxu0 0.0
    %2991 = vmatprep.subr.mxu0 0.0
    %2992 = vmatpush1.xpose.msra.mxu0 0.0
    %2993 = vmatprep.subr.mxu0 0.0
    %2994 = vmatpush1.xpose.msra.mxu0 0.0
    %2995 = vmatprep.subr.mxu0 0.0
    %2996 = vmatpush1.xpose.msra.mxu0 0.0
    %2997 = vmatprep.subr.mxu0 0.0
    %2998 = vmatpush1.xpose.msra.mxu0 0.0
    %2999 = vmatprep.subr.mxu0 0.0
    %3000 = vmatpush1.xpose.msra.mxu0 0.0
    %3001 = vmatprep.subr.mxu0 0.0
    %3002 = vmatpush1.xpose.msra.mxu0 0.0
    %3003 = vmatprep.subr.mxu0 0.0
    %3004 = vmatpush1.xpose.msra.mxu0 0.0
    %3005 = vmatprep.subr.mxu0 0.0
    %3006 = vmatpush1.xpose.msra.mxu0 0.0
    %3007 = vmatprep.subr.mxu0 0.0
    %3008 = vmatpush1.xpose.msra.mxu0 0.0
    %3009 = vmatprep.subr.mxu0 0.0
    %3010 = vmatpush1.xpose.msra.mxu0 0.0
    %3011 = vmatprep.subr.mxu0 0.0
    %3012 = vmatpush1.xpose.msra.mxu0 0.0
    %3013 = vmatprep.subr.mxu0 0.0
    %3014 = vmatpush1.xpose.msra.mxu0 0.0
    %3015 = vmatprep.subr.mxu0 0.0
    %3016 = vmatpush1.xpose.msra.mxu0 0.0
    %3017 = vmatprep.subr.mxu0 0.0
    %3018 = vmatpush1.xpose.msra.mxu0 0.0
    %3019 = vmatprep.subr.mxu0 0.0
    %3020 = vmatpush1.xpose.msra.mxu0 0.0
    %3021 = vmatprep.subr.mxu0 0.0
    %3022 = vmatpush1.xpose.msra.mxu0 0.0
    %3023 = vmatprep.subr.mxu0 0.0
    %3024 = vmatpush1.xpose.msra.mxu0 0.0
    %3025 = vmatprep.subr.mxu0 0.0
    %3026 = vmatpush1.xpose.msra.mxu0 0.0
    %3027 = vmatprep.subr.mxu0 0.0
    %3028 = vmatpush1.xpose.msra.mxu0 0.0
    %3029 = vmatprep.subr.mxu0 0.0
    %3030 = vmatpush1.xpose.msra.mxu0 0.0
    %3031 = vmatprep.subr.mxu0 0.0
    %3032 = vmatpush1.xpose.msra.mxu0 0.0
    %3033 = vmatprep.subr.mxu0 0.0
    %3034 = vmatpush1.xpose.msra.mxu0 0.0
    %3035 = vmatprep.subr.mxu0 0.0
    %3036 = vmatpush1.xpose.msra.mxu0 0.0
    %3037 = vmatprep.subr.mxu0 0.0
    %3038 = vmatpush1.xpose.msra.mxu0 0.0
    %3039 = vmatprep.subr.mxu0 0.0
    %3040 = vmatpush1.xpose.msra.mxu0 0.0
    %3041 = vmatprep.subr.mxu0 0.0
    %3042 = vmatpush1.xpose.msra.mxu0 0.0
    %3043 = vmatprep.subr.mxu0 0.0
    %3044 = vmatpush1.xpose.msra.mxu0 0.0
    %3045 = vmatprep.mubr.f32.mxu0 0.0
    %3046 = vmatmul.mubr.f32.gmra.mrb[0].mxu0 %v2977
    %v3047 = vpop.f32.mrb[0].mxu0
    %v3048 = vadd.f32 0.0, %v3047
    %v3049 = vpop.f32.mrb[0].mxu0
    %3050 = vdwg.mxu0
    %v3051 = vsel %vm191, %v3048, -inf
    %3052 = vmax.xlane.f32.xlu0 %v3051
    %v3053 = vpop.xlane.xlu0 %3052
    %v3054 = vsub.f32 %v3048, %v3053
    %v3055 = vmul.f32 %v3054, 1.442695
    %v3056 = vpow.pop %v3055
    %v3057 = vsel %vm191, %v3056, 0.0
    %3058 = vadd.xlane.f32.xlu0 %v3057
    %v3059 = vpop.xlane.xlu0 %3058
    %v3060 = vrcp.pop %v3059
    %v3061 = vmul.f32 %v3056, %v3060
    %3062 = vrot.lane.b32.xlu0 %v2968, 64
    %v3063 = vpop.permute.xlu0 %3062
    %v3066 = vsel %vm191, %v3061, 0
    %3068 = vmatprep.subr.mxu0 0.0
    %3069 = vmatpush1.msra.mxu0 %v3063
    %3070 = vmatprep.subr.mxu0 0.0
    %3071 = vmatpush1.msra.mxu0 0.0
    %3072 = vmatprep.subr.mxu0 0.0
    %3073 = vmatpush1.msra.mxu0 0.0
    %3074 = vmatprep.subr.mxu0 0.0
    %3075 = vmatpush1.msra.mxu0 0.0
    %3076 = vmatprep.subr.mxu0 0.0
    %3077 = vmatpush1.msra.mxu0 0.0
    %3078 = vmatprep.subr.mxu0 0.0
    %3079 = vmatpush1.msra.mxu0 0.0
    %3080 = vmatprep.subr.mxu0 0.0
    %3081 = vmatpush1.msra.mxu0 0.0
    %3082 = vmatprep.subr.mxu0 0.0
    %3083 = vmatpush1.msra.mxu0 0.0
    %3084 = vmatprep.subr.mxu0 0.0
    %3085 = vmatpush1.msra.mxu0 0.0
    %3086 = vmatprep.subr.mxu0 0.0
    %3087 = vmatpush1.msra.mxu0 0.0
    %3088 = vmatprep.subr.mxu0 0.0
    %3089 = vmatpush1.msra.mxu0 0.0
    %3090 = vmatprep.subr.mxu0 0.0
    %3091 = vmatpush1.msra.mxu0 0.0
    %3092 = vmatprep.subr.mxu0 0.0
    %3093 = vmatpush1.msra.mxu0 0.0
    %3094 = vmatprep.subr.mxu0 0.0
    %3095 = vmatpush1.msra.mxu0 0.0
    %3096 = vmatprep.subr.mxu0 0.0
    %3097 = vmatpush1.msra.mxu0 0.0
    %3098 = vmatprep.subr.mxu0 0.0
    %3099 = vmatpush1.msra.mxu0 0.0
    %3100 = vmatprep.subr.mxu0 0.0
    %3101 = vmatpush1.msra.mxu0 0.0
    %3102 = vmatprep.subr.mxu0 0.0
    %3103 = vmatpush1.msra.mxu0 0.0
    %3104 = vmatprep.subr.mxu0 0.0
    %3105 = vmatpush1.msra.mxu0 0.0
    %3106 = vmatprep.subr.mxu0 0.0
    %3107 = vmatpush1.msra.mxu0 0.0
    %3108 = vmatprep.subr.mxu0 0.0
    %3109 = vmatpush1.msra.mxu0 0.0
    %3110 = vmatprep.subr.mxu0 0.0
    %3111 = vmatpush1.msra.mxu0 0.0
    %3112 = vmatprep.subr.mxu0 0.0
    %3113 = vmatpush1.msra.mxu0 0.0
    %3114 = vmatprep.subr.mxu0 0.0
    %3115 = vmatpush1.msra.mxu0 0.0
    %3116 = vmatprep.subr.mxu0 0.0
    %3117 = vmatpush1.msra.mxu0 0.0
    %3118 = vmatprep.subr.mxu0 0.0
    %3119 = vmatpush1.msra.mxu0 0.0
    %3120 = vmatprep.subr.mxu0 0.0
    %3121 = vmatpush1.msra.mxu0 0.0
    %3122 = vmatprep.subr.mxu0 0.0
    %3123 = vmatpush1.msra.mxu0 0.0
    %3124 = vmatprep.subr.mxu0 0.0
    %3125 = vmatpush1.msra.mxu0 0.0
    %3126 = vmatprep.subr.mxu0 0.0
    %3127 = vmatpush1.msra.mxu0 0.0
    %3128 = vmatprep.subr.mxu0 0.0
    %3129 = vmatpush1.msra.mxu0 0.0
    %3130 = vmatprep.subr.mxu0 0.0
    %3131 = vmatpush1.msra.mxu0 0.0
    %3132 = vmatprep.mubr.f32.mxu0 0.0
    %3133 = vmatmul.mubr.f32.gmra.mrb[0].mxu0 %v3066
    %v3134 = vpop.f32.mrb[0].mxu0
    %v3135 = vadd.f32 0.0, %v3134
    %v3136 = vpop.f32.mrb[0].mxu0
    %3137 = vdwg.mxu0
    %3138 = vrot.lane.b32.xlu0 %v2968, 120
    %v3139 = vpop.permute.xlu0 %3138
    %3140 = vrot.lane.b32.xlu0 %v2968, 88
    %v3141 = vpop.permute.xlu0 %3140
    %v3142 = vsel %vm191, %v3139, 0
    %v3144 = vsel %vm191, %v3141, 0
    %3146 = vmatprep.subr.mxu0 0.0
    %3147 = vmatpush1.xpose.msra.mxu0 %v3144
    %3148 = vmatprep.subr.mxu0 0.0
    %3149 = vmatpush1.xpose.msra.mxu0 0.0
    %3150 = vmatprep.subr.mxu0 0.0
    %3151 = vmatpush1.xpose.msra.mxu0 0.0
    %3152 = vmatprep.subr.mxu0 0.0
    %3153 = vmatpush1.xpose.msra.mxu0 0.0
    %3154 = vmatprep.subr.mxu0 0.0
    %3155 = vmatpush1.xpose.msra.mxu0 0.0
    %3156 = vmatprep.subr.mxu0 0.0
    %3157 = vmatpush1.xpose.msra.mxu0 0.0
    %3158 = vmatprep.subr.mxu0 0.0
    %3159 = vmatpush1.xpose.msra.mxu0 0.0
    %3160 = vmatprep.subr.mxu0 0.0
    %3161 = vmatpush1.xpose.msra.mxu0 0.0
    %3162 = vmatprep.subr.mxu0 0.0
    %3163 = vmatpush1.xpose.msra.mxu0 0.0
    %3164 = vmatprep.subr.mxu0 0.0
    %3165 = vmatpush1.xpose.msra.mxu0 0.0
    %3166 = vmatprep.subr.mxu0 0.0
    %3167 = vmatpush1.xpose.msra.mxu0 0.0
    %3168 = vmatprep.subr.mxu0 0.0
    %3169 = vmatpush1.xpose.msra.mxu0 0.0
    %3170 = vmatprep.subr.mxu0 0.0
    %3171 = vmatpush1.xpose.msra.mxu0 0.0
    %3172 = vmatprep.subr.mxu0 0.0
    %3173 = vmatpush1.xpose.msra.mxu0 0.0
    %3174 = vmatprep.subr.mxu0 0.0
    %3175 = vmatpush1.xpose.msra.mxu0 0.0
    %3176 = vmatprep.subr.mxu0 0.0
    %3177 = vmatpush1.xpose.msra.mxu0 0.0
    %3178 = vmatprep.subr.mxu0 0.0
    %3179 = vmatpush1.xpose.msra.mxu0 0.0
    %3180 = vmatprep.subr.mxu0 0.0
    %3181 = vmatpush1.xpose.msra.mxu0 0.0
    %3182 = vmatprep.subr.mxu0 0.0
    %3183 = vmatpush1.xpose.msra.mxu0 0.0
    %3184 = vmatprep.subr.mxu0 0.0
    %3185 = vmatpush1.xpose.msra.mxu0 0.0
    %3186 = vmatprep.subr.mxu0 0.0
    %3187 = vmatpush1.xpose.msra.mxu0 0.0
    %3188 = vmatprep.subr.mxu0 0.0
    %3189 = vmatpush1.xpose.msra.mxu0 0.0
    %3190 = vmatprep.subr.mxu0 0.0
    %3191 = vmatpush1.xpose.msra.mxu0 0.0
    %3192 = vmatprep.subr.mxu0 0.0
    %3193 = vmatpush1.xpose.msra.mxu0 0.0
    %3194 = vmatprep.subr.mxu0 0.0
    %3195 = vmatpush1.xpose.msra.mxu0 0.0
    %3196 = vmatprep.subr.mxu0 0.0
    %3197 = vmatpush1.xpose.msra.mxu0 0.0
    %3198 = vmatprep.subr.mxu0 0.0
    %3199 = vmatpush1.xpose.msra.mxu0 0.0
    %3200 = vmatprep.subr.mxu0 0.0
    %3201 = vmatpush1.xpose.msra.mxu0 0.0
    %3202 = vmatprep.subr.mxu0 0.0
    %3203 = vmatpush1.xpose.msra.mxu0 0.0
    %3204 = vmatprep.subr.mxu0 0.0
    %3205 = vmatpush1.xpose.msra.mxu0 0.0
    %3206 = vmatprep.subr.mxu0 0.0
    %3207 = vmatpush1.xpose.msra.mxu0 0.0
    %3208 = vmatprep.subr.mxu0 0.0
    %3209 = vmatpush1.xpose.msra.mxu0 0.0
    %3210 = vmatprep.mubr.f32.mxu0 0.0
    %3211 = vmatmul.mubr.f32.gmra.mrb[0].mxu0 %v3142
    %v3212 = vpop.f32.mrb[0].mxu0
    %v3213 = vadd.f32 0.0, %v3212
    %v3214 = vpop.f32.mrb[0].mxu0
    %3215 = vdwg.mxu0
    %v3216 = vsel %vm191, %v3213, -inf
    %3217 = vmax.xlane.f32.xlu0 %v3216
    %v3218 = vpop.xlane.xlu0 %3217
    %v3219 = vsub.f32 %v3213, %v3218
    %v3220 = vmul.f32 %v3219, 1.442695
    %v3221 = vpow.pop %v3220
    %v3222 = vsel %vm191, %v3221, 0.0
    %3223 = vadd.xlane.f32.xlu0 %v3222
    %v3224 = vpop.xlane.xlu0 %3223
    %v3225 = vrcp.pop %v3224
    %v3226 = vmul.f32 %v3221, %v3225
    %3227 = vrot.lane.b32.xlu0 %v2968, 56
    %v3228 = vpop.permute.xlu0 %3227
    %v3231 = vsel %vm191, %v3226, 0
    %3233 = vmatprep.subr.mxu0 0.0
    %3234 = vmatpush1.msra.mxu0 %v3228
    %3235 = vmatprep.subr.mxu0 0.0
    %3236 = vmatpush1.msra.mxu0 0.0
    %3237 = vmatprep.subr.mxu0 0.0
    %3238 = vmatpush1.msra.mxu0 0.0
    %3239 = vmatprep.subr.mxu0 0.0
    %3240 = vmatpush1.msra.mxu0 0.0
    %3241 = vmatprep.subr.mxu0 0.0
    %3242 = vmatpush1.msra.mxu0 0.0
    %3243 = vmatprep.subr.mxu0 0.0
    %3244 = vmatpush1.msra.mxu0 0.0
    %3245 = vmatprep.subr.mxu0 0.0
    %3246 = vmatpush1.msra.mxu0 0.0
    %3247 = vmatprep.subr.mxu0 0.0
    %3248 = vmatpush1.msra.mxu0 0.0
    %3249 = vmatprep.subr.mxu0 0.0
    %3250 = vmatpush1.msra.mxu0 0.0
    %3251 = vmatprep.subr.mxu0 0.0
    %3252 = vmatpush1.msra.mxu0 0.0
    %3253 = vmatprep.subr.mxu0 0.0
    %3254 = vmatpush1.msra.mxu0 0.0
    %3255 = vmatprep.subr.mxu0 0.0
    %3256 = vmatpush1.msra.mxu0 0.0
    %3257 = vmatprep.subr.mxu0 0.0
    %3258 = vmatpush1.msra.mxu0 0.0
    %3259 = vmatprep.subr.mxu0 0.0
    %3260 = vmatpush1.msra.mxu0 0.0
    %3261 = vmatprep.subr.mxu0 0.0
    %3262 = vmatpush1.msra.mxu0 0.0
    %3263 = vmatprep.subr.mxu0 0.0
    %3264 = vmatpush1.msra.mxu0 0.0
    %3265 = vmatprep.subr.mxu0 0.0
    %3266 = vmatpush1.msra.mxu0 0.0
    %3267 = vmatprep.subr.mxu0 0.0
    %3268 = vmatpush1.msra.mxu0 0.0
    %3269 = vmatprep.subr.mxu0 0.0
    %3270 = vmatpush1.msra.mxu0 0.0
    %3271 = vmatprep.subr.mxu0 0.0
    %3272 = vmatpush1.msra.mxu0 0.0
    %3273 = vmatprep.subr.mxu0 0.0
    %3274 = vmatpush1.msra.mxu0 0.0
    %3275 = vmatprep.subr.mxu0 0.0
    %3276 = vmatpush1.msra.mxu0 0.0
    %3277 = vmatprep.subr.mxu0 0.0
    %3278 = vmatpush1.msra.mxu0 0.0
    %3279 = vmatprep.subr.mxu0 0.0
    %3280 = vmatpush1.msra.mxu0 0.0
    %3281 = vmatprep.subr.mxu0 0.0
    %3282 = vmatpush1.msra.mxu0 0.0
    %3283 = vmatprep.subr.mxu0 0.0
    %3284 = vmatpush1.msra.mxu0 0.0
    %3285 = vmatprep.subr.mxu0 0.0
    %3286 = vmatpush1.msra.mxu0 0.0
    %3287 = vmatprep.subr.mxu0 0.0
    %3288 = vmatpush1.msra.mxu0 0.0
    %3289 = vmatprep.subr.mxu0 0.0
    %3290 = vmatpush1.msra.mxu0 0.0
    %3291 = vmatprep.subr.mxu0 0.0
    %3292 = vmatpush1.msra.mxu0 0.0
    %3293 = vmatprep.subr.mxu0 0.0
    %3294 = vmatpush1.msra.mxu0 0.0
    %3295 = vmatprep.subr.mxu0 0.0
    %3296 = vmatpush1.msra.mxu0 0.0
    %3297 = vmatprep.mubr.f32.mxu0 0.0
    %3298 = vmatmul.mubr.f32.gmra.mrb[0].mxu0 %v3231
    %v3299 = vpop.f32.mrb[0].mxu0
    %v3300 = vadd.f32 0.0, %v3299
    %v3301 = vpop.f32.mrb[0].mxu0
    %3302 = vdwg.mxu0
    %3303 = vrot.lane.b32.xlu0 %v2968, 112
    %v3304 = vpop.permute.xlu0 %3303
    %3305 = vrot.lane.b32.xlu0 %v2968, 80
    %v3306 = vpop.permute.xlu0 %3305
    %v3307 = vsel %vm191, %v3304, 0
    %v3309 = vsel %vm191, %v3306, 0
    %3311 = vmatprep.subr.mxu0 0.0
    %3312 = vmatpush1.xpose.msra.mxu0 %v3309
    %3313 = vmatprep.subr.mxu0 0.0
    %3314 = vmatpush1.xpose.msra.mxu0 0.0
    %3315 = vmatprep.subr.mxu0 0.0
    %3316 = vmatpush1.xpose.msra.mxu0 0.0
    %3317 = vmatprep.subr.mxu0 0.0
    %3318 = vmatpush1.xpose.msra.mxu0 0.0
    %3319 = vmatprep.subr.mxu0 0.0
    %3320 = vmatpush1.xpose.msra.mxu0 0.0
    %3321 = vmatprep.subr.mxu0 0.0
    %3322 = vmatpush1.xpose.msra.mxu0 0.0
    %3323 = vmatprep.subr.mxu0 0.0
    %3324 = vmatpush1.xpose.msra.mxu0 0.0
    %3325 = vmatprep.subr.mxu0 0.0
    %3326 = vmatpush1.xpose.msra.mxu0 0.0
    %3327 = vmatprep.subr.mxu0 0.0
    %3328 = vmatpush1.xpose.msra.mxu0 0.0
    %3329 = vmatprep.subr.mxu0 0.0
    %3330 = vmatpush1.xpose.msra.mxu0 0.0
    %3331 = vmatprep.subr.mxu0 0.0
    %3332 = vmatpush1.xpose.msra.mxu0 0.0
    %3333 = vmatprep.subr.mxu0 0.0
    %3334 = vmatpush1.xpose.msra.mxu0 0.0
    %3335 = vmatprep.subr.mxu0 0.0
    %3336 = vmatpush1.xpose.msra.mxu0 0.0
    %3337 = vmatprep.subr.mxu0 0.0
    %3338 = vmatpush1.xpose.msra.mxu0 0.0
    %3339 = vmatprep.subr.mxu0 0.0
    %3340 = vmatpush1.xpose.msra.mxu0 0.0
    %3341 = vmatprep.subr.mxu0 0.0
    %3342 = vmatpush1.xpose.msra.mxu0 0.0
    %3343 = vmatprep.subr.mxu0 0.0
    %3344 = vmatpush1.xpose.msra.mxu0 0.0
    %3345 = vmatprep.subr.mxu0 0.0
    %3346 = vmatpush1.xpose.msra.mxu0 0.0
    %3347 = vmatprep.subr.mxu0 0.0
    %3348 = vmatpush1.xpose.msra.mxu0 0.0
    %3349 = vmatprep.subr.mxu0 0.0
    %3350 = vmatpush1.xpose.msra.mxu0 0.0
    %3351 = vmatprep.subr.mxu0 0.0
    %3352 = vmatpush1.xpose.msra.mxu0 0.0
    %3353 = vmatprep.subr.mxu0 0.0
    %3354 = vmatpush1.xpose.msra.mxu0 0.0
    %3355 = vmatprep.subr.mxu0 0.0
    %3356 = vmatpush1.xpose.msra.mxu0 0.0
    %3357 = vmatprep.subr.mxu0 0.0
    %3358 = vmatpush1.xpose.msra.mxu0 0.0
    %3359 = vmatprep.subr.mxu0 0.0
    %3360 = vmatpush1.xpose.msra.mxu0 0.0
    %3361 = vmatprep.subr.mxu0 0.0
    %3362 = vmatpush1.xpose.msra.mxu0 0.0
    %3363 = vmatprep.subr.mxu0 0.0
    %3364 = vmatpush1.xpose.msra.mxu0 0.0
    %3365 = vmatprep.subr.mxu0 0.0
    %3366 = vmatpush1.xpose.msra.mxu0 0.0
    %3367 = vmatprep.subr.mxu0 0.0
    %3368 = vmatpush1.xpose.msra.mxu0 0.0
    %3369 = vmatprep.subr.mxu0 0.0
    %3370 = vmatpush1.xpose.msra.mxu0 0.0
    %3371 = vmatprep.subr.mxu0 0.0
    %3372 = vmatpush1.xpose.msra.mxu0 0.0
    %3373 = vmatprep.subr.mxu0 0.0
    %3374 = vmatpush1.xpose.msra.mxu0 0.0
    %3375 = vmatprep.mubr.f32.mxu0 0.0
    %3376 = vmatmul.mubr.f32.gmra.mrb[0].mxu0 %v3307
    %v3377 = vpop.f32.mrb[0].mxu0
    %v3378 = vadd.f32 0.0, %v3377
    %v3379 = vpop.f32.mrb[0].mxu0
    %3380 = vdwg.mxu0
    %v3381 = vsel %vm191, %v3378, -inf
    %3382 = vmax.xlane.f32.xlu0 %v3381
    %v3383 = vpop.xlane.xlu0 %3382
    %v3384 = vsub.f32 %v3378, %v3383
    %v3385 = vmul.f32 %v3384, 1.442695
    %v3386 = vpow.pop %v3385
    %v3387 = vsel %vm191, %v3386, 0.0
    %3388 = vadd.xlane.f32.xlu0 %v3387
    %v3389 = vpop.xlane.xlu0 %3388
    %v3390 = vrcp.pop %v3389
    %v3391 = vmul.f32 %v3386, %v3390
    %3392 = vrot.lane.b32.xlu0 %v2968, 48
    %v3393 = vpop.permute.xlu0 %3392
    %v3396 = vsel %vm191, %v3391, 0
    %3398 = vmatprep.subr.mxu0 0.0
    %3399 = vmatpush1.msra.mxu0 %v3393
    %3400 = vmatprep.subr.mxu0 0.0
    %3401 = vmatpush1.msra.mxu0 0.0
    %3402 = vmatprep.subr.mxu0 0.0
    %3403 = vmatpush1.msra.mxu0 0.0
    %3404 = vmatprep.subr.mxu0 0.0
    %3405 = vmatpush1.msra.mxu0 0.0
    %3406 = vmatprep.subr.mxu0 0.0
    %3407 = vmatpush1.msra.mxu0 0.0
    %3408 = vmatprep.subr.mxu0 0.0
    %3409 = vmatpush1.msra.mxu0 0.0
    %3410 = vmatprep.subr.mxu0 0.0
    %3411 = vmatpush1.msra.mxu0 0.0
    %3412 = vmatprep.subr.mxu0 0.0
    %3413 = vmatpush1.msra.mxu0 0.0
    %3414 = vmatprep.subr.mxu0 0.0
    %3415 = vmatpush1.msra.mxu0 0.0
    %3416 = vmatprep.subr.mxu0 0.0
    %3417 = vmatpush1.msra.mxu0 0.0
    %3418 = vmatprep.subr.mxu0 0.0
    %3419 = vmatpush1.msra.mxu0 0.0
    %3420 = vmatprep.subr.mxu0 0.0
    %3421 = vmatpush1.msra.mxu0 0.0
    %3422 = vmatprep.subr.mxu0 0.0
    %3423 = vmatpush1.msra.mxu0 0.0
    %3424 = vmatprep.subr.mxu0 0.0
    %3425 = vmatpush1.msra.mxu0 0.0
    %3426 = vmatprep.subr.mxu0 0.0
    %3427 = vmatpush1.msra.mxu0 0.0
    %3428 = vmatprep.subr.mxu0 0.0
    %3429 = vmatpush1.msra.mxu0 0.0
    %3430 = vmatprep.subr.mxu0 0.0
    %3431 = vmatpush1.msra.mxu0 0.0
    %3432 = vmatprep.subr.mxu0 0.0
    %3433 = vmatpush1.msra.mxu0 0.0
    %3434 = vmatprep.subr.mxu0 0.0
    %3435 = vmatpush1.msra.mxu0 0.0
    %3436 = vmatprep.subr.mxu0 0.0
    %3437 = vmatpush1.msra.mxu0 0.0
    %3438 = vmatprep.subr.mxu0 0.0
    %3439 = vmatpush1.msra.mxu0 0.0
    %3440 = vmatprep.subr.mxu0 0.0
    %3441 = vmatpush1.msra.mxu0 0.0
    %3442 = vmatprep.subr.mxu0 0.0
    %3443 = vmatpush1.msra.mxu0 0.0
    %3444 = vmatprep.subr.mxu0 0.0
    %3445 = vmatpush1.msra.mxu0 0.0
    %3446 = vmatprep.subr.mxu0 0.0
    %3447 = vmatpush1.msra.mxu0 0.0
    %3448 = vmatprep.subr.mxu0 0.0
    %3449 = vmatpush1.msra.mxu0 0.0
    %3450 = vmatprep.subr.mxu0 0.0
    %3451 = vmatpush1.msra.mxu0 0.0
    %3452 = vmatprep.subr.mxu0 0.0
    %3453 = vmatpush1.msra.mxu0 0.0
    %3454 = vmatprep.subr.mxu0 0.0
    %3455 = vmatpush1.msra.mxu0 0.0
    %3456 = vmatprep.subr.mxu0 0.0
    %3457 = vmatpush1.msra.mxu0 0.0
    %3458 = vmatprep.subr.mxu0 0.0
    %3459 = vmatpush1.msra.mxu0 0.0
    %3460 = vmatprep.subr.mxu0 0.0
    %3461 = vmatpush1.msra.mxu0 0.0
    %3462 = vmatprep.mubr.f32.mxu0 0.0
    %3463 = vmatmul.mubr.f32.gmra.mrb[0].mxu0 %v3396
    %v3464 = vpop.f32.mrb[0].mxu0
    %v3465 = vadd.f32 0.0, %v3464
    %v3466 = vpop.f32.mrb[0].mxu0
    %3467 = vdwg.mxu0
    %3468 = vrot.lane.b32.xlu0 %v2968, 104
    %v3469 = vpop.permute.xlu0 %3468
    %3470 = vrot.lane.b32.xlu0 %v2968, 72
    %v3471 = vpop.permute.xlu0 %3470
    %v3472 = vsel %vm191, %v3469, 0
    %v3474 = vsel %vm191, %v3471, 0
    %3476 = vmatprep.subr.mxu0 0.0
    %3477 = vmatpush1.xpose.msra.mxu0 %v3474
    %3478 = vmatprep.subr.mxu0 0.0
    %3479 = vmatpush1.xpose.msra.mxu0 0.0
    %3480 = vmatprep.subr.mxu0 0.0
    %3481 = vmatpush1.xpose.msra.mxu0 0.0
    %3482 = vmatprep.subr.mxu0 0.0
    %3483 = vmatpush1.xpose.msra.mxu0 0.0
    %3484 = vmatprep.subr.mxu0 0.0
    %3485 = vmatpush1.xpose.msra.mxu0 0.0
    %3486 = vmatprep.subr.mxu0 0.0
    %3487 = vmatpush1.xpose.msra.mxu0 0.0
    %3488 = vmatprep.subr.mxu0 0.0
    %3489 = vmatpush1.xpose.msra.mxu0 0.0
    %3490 = vmatprep.subr.mxu0 0.0
    %3491 = vmatpush1.xpose.msra.mxu0 0.0
    %3492 = vmatprep.subr.mxu0 0.0
    %3493 = vmatpush1.xpose.msra.mxu0 0.0
    %3494 = vmatprep.subr.mxu0 0.0
    %3495 = vmatpush1.xpose.msra.mxu0 0.0
    %3496 = vmatprep.subr.mxu0 0.0
    %3497 = vmatpush1.xpose.msra.mxu0 0.0
    %3498 = vmatprep.subr.mxu0 0.0
    %3499 = vmatpush1.xpose.msra.mxu0 0.0
    %3500 = vmatprep.subr.mxu0 0.0
    %3501 = vmatpush1.xpose.msra.mxu0 0.0
    %3502 = vmatprep.subr.mxu0 0.0
    %3503 = vmatpush1.xpose.msra.mxu0 0.0
    %3504 = vmatprep.subr.mxu0 0.0
    %3505 = vmatpush1.xpose.msra.mxu0 0.0
    %3506 = vmatprep.subr.mxu0 0.0
    %3507 = vmatpush1.xpose.msra.mxu0 0.0
    %3508 = vmatprep.subr.mxu0 0.0
    %3509 = vmatpush1.xpose.msra.mxu0 0.0
    %3510 = vmatprep.subr.mxu0 0.0
    %3511 = vmatpush1.xpose.msra.mxu0 0.0
    %3512 = vmatprep.subr.mxu0 0.0
    %3513 = vmatpush1.xpose.msra.mxu0 0.0
    %3514 = vmatprep.subr.mxu0 0.0
    %3515 = vmatpush1.xpose.msra.mxu0 0.0
    %3516 = vmatprep.subr.mxu0 0.0
    %3517 = vmatpush1.xpose.msra.mxu0 0.0
    %3518 = vmatprep.subr.mxu0 0.0
    %3519 = vmatpush1.xpose.msra.mxu0 0.0
    %3520 = vmatprep.subr.mxu0 0.0
    %3521 = vmatpush1.xpose.msra.mxu0 0.0
    %3522 = vmatprep.subr.mxu0 0.0
    %3523 = vmatpush1.xpose.msra.mxu0 0.0
    %3524 = vmatprep.subr.mxu0 0.0
    %3525 = vmatpush1.xpose.msra.mxu0 0.0
    %3526 = vmatprep.subr.mxu0 0.0
    %3527 = vmatpush1.xpose.msra.mxu0 0.0
    %3528 = vmatprep.subr.mxu0 0.0
    %3529 = vmatpush1.xpose.msra.mxu0 0.0
    %3530 = vmatprep.subr.mxu0 0.0
    %3531 = vmatpush1.xpose.msra.mxu0 0.0
    %3532 = vmatprep.subr.mxu0 0.0
    %3533 = vmatpush1.xpose.msra.mxu0 0.0
    %3534 = vmatprep.subr.mxu0 0.0
    %3535 = vmatpush1.xpose.msra.mxu0 0.0
    %3536 = vmatprep.subr.mxu0 0.0
    %3537 = vmatpush1.xpose.msra.mxu0 0.0
    %3538 = vmatprep.subr.mxu0 0.0
    %3539 = vmatpush1.xpose.msra.mxu0 0.0
    %3540 = vmatprep.mubr.f32.mxu0 0.0
    %3541 = vmatmul.mubr.f32.gmra.mrb[0].mxu0 %v3472
    %v3542 = vpop.f32.mrb[0].mxu0
    %v3543 = vadd.f32 0.0, %v3542
    %v3544 = vpop.f32.mrb[0].mxu0
    %3545 = vdwg.mxu0
    %v3546 = vsel %vm191, %v3543, -inf
    %3547 = vmax.xlane.f32.xlu0 %v3546
    %v3548 = vpop.xlane.xlu0 %3547
    %v3549 = vsub.f32 %v3543, %v3548
    %v3550 = vmul.f32 %v3549, 1.442695
    %v3551 = vpow.pop %v3550
    %v3552 = vsel %vm191, %v3551, 0.0
    %3553 = vadd.xlane.f32.xlu0 %v3552
    %v3554 = vpop.xlane.xlu0 %3553
    %v3555 = vrcp.pop %v3554
    %v3556 = vmul.f32 %v3551, %v3555
    %3557 = vrot.lane.b32.xlu0 %v2968, 40
    %v3558 = vpop.permute.xlu0 %3557
    %v3561 = vsel %vm191, %v3556, 0
    %3563 = vmatprep.subr.mxu0 0.0
    %3564 = vmatpush1.msra.mxu0 %v3558
    %3565 = vmatprep.subr.mxu0 0.0
    %3566 = vmatpush1.msra.mxu0 0.0
    %3567 = vmatprep.subr.mxu0 0.0
    %3568 = vmatpush1.msra.mxu0 0.0
    %3569 = vmatprep.subr.mxu0 0.0
    %3570 = vmatpush1.msra.mxu0 0.0
    %3571 = vmatprep.subr.mxu0 0.0
    %3572 = vmatpush1.msra.mxu0 0.0
    %3573 = vmatprep.subr.mxu0 0.0
    %3574 = vmatpush1.msra.mxu0 0.0
    %3575 = vmatprep.subr.mxu0 0.0
    %3576 = vmatpush1.msra.mxu0 0.0
    %3577 = vmatprep.subr.mxu0 0.0
    %3578 = vmatpush1.msra.mxu0 0.0
    %3579 = vmatprep.subr.mxu0 0.0
    %3580 = vmatpush1.msra.mxu0 0.0
    %3581 = vmatprep.subr.mxu0 0.0
    %3582 = vmatpush1.msra.mxu0 0.0
    %3583 = vmatprep.subr.mxu0 0.0
    %3584 = vmatpush1.msra.mxu0 0.0
    %3585 = vmatprep.subr.mxu0 0.0
    %3586 = vmatpush1.msra.mxu0 0.0
    %3587 = vmatprep.subr.mxu0 0.0
    %3588 = vmatpush1.msra.mxu0 0.0
    %3589 = vmatprep.subr.mxu0 0.0
    %3590 = vmatpush1.msra.mxu0 0.0
    %3591 = vmatprep.subr.mxu0 0.0
    %3592 = vmatpush1.msra.mxu0 0.0
    %3593 = vmatprep.subr.mxu0 0.0
    %3594 = vmatpush1.msra.mxu0 0.0
    %3595 = vmatprep.subr.mxu0 0.0
    %3596 = vmatpush1.msra.mxu0 0.0
    %3597 = vmatprep.subr.mxu0 0.0
    %3598 = vmatpush1.msra.mxu0 0.0
    %3599 = vmatprep.subr.mxu0 0.0
    %3600 = vmatpush1.msra.mxu0 0.0
    %3601 = vmatprep.subr.mxu0 0.0
    %3602 = vmatpush1.msra.mxu0 0.0
    %3603 = vmatprep.subr.mxu0 0.0
    %3604 = vmatpush1.msra.mxu0 0.0
    %3605 = vmatprep.subr.mxu0 0.0
    %3606 = vmatpush1.msra.mxu0 0.0
    %3607 = vmatprep.subr.mxu0 0.0
    %3608 = vmatpush1.msra.mxu0 0.0
    %3609 = vmatprep.subr.mxu0 0.0
    %3610 = vmatpush1.msra.mxu0 0.0
    %3611 = vmatprep.subr.mxu0 0.0
    %3612 = vmatpush1.msra.mxu0 0.0
    %3613 = vmatprep.subr.mxu0 0.0
    %3614 = vmatpush1.msra.mxu0 0.0
    %3615 = vmatprep.subr.mxu0 0.0
    %3616 = vmatpush1.msra.mxu0 0.0
    %3617 = vmatprep.subr.mxu0 0.0
    %3618 = vmatpush1.msra.mxu0 0.0
    %3619 = vmatprep.subr.mxu0 0.0
    %3620 = vmatpush1.msra.mxu0 0.0
    %3621 = vmatprep.subr.mxu0 0.0
    %3622 = vmatpush1.msra.mxu0 0.0
    %3623 = vmatprep.subr.mxu0 0.0
    %3624 = vmatpush1.msra.mxu0 0.0
    %3625 = vmatprep.subr.mxu0 0.0
    %3626 = vmatpush1.msra.mxu0 0.0
    %3627 = vmatprep.mubr.f32.mxu0 0.0
    %3628 = vmatmul.mubr.f32.gmra.mrb[0].mxu0 %v3561
    %v3629 = vpop.f32.mrb[0].mxu0
    %v3630 = vadd.f32 0.0, %v3629
    %v3631 = vpop.f32.mrb[0].mxu0
    %3632 = vdwg.mxu0
    %3634 = vrot.lane.b32.xlu0 %v3300, 8
    %v3635 = vpop.permute.xlu0 %3634
    %3638 = vrot.lane.b32.xlu0 %v3465, 16
    %v3639 = vpop.permute.xlu0 %3638
    %3642 = vrot.lane.b32.xlu0 %v3630, 24
    %v3643 = vpop.permute.xlu0 %3642
    %v3645 = vsel %vm191, %v3135, %v3635
    %v3646 = vsel %vm861, %v3645, %v3639
    %v3647 = vsel %vm863, %v3646, %v3643
    %3649 = vrot.lane.b32.xlu0 %v2971, 96
    %v3650 = vpop.permute.xlu0 %3649
    %v3651 = vsel %vm191, %v2971, 0
    %v3653 = vsel %vm191, %v3650, 0
    %3655 = vmatprep.subr.mxu0 0.0
    %3656 = vmatpush1.xpose.msra.mxu0 %v3653
    %3657 = vmatprep.subr.mxu0 0.0
    %3658 = vmatpush1.xpose.msra.mxu0 0.0
    %3659 = vmatprep.subr.mxu0 0.0
    %3660 = vmatpush1.xpose.msra.mxu0 0.0
    %3661 = vmatprep.subr.mxu0 0.0
    %3662 = vmatpush1.xpose.msra.mxu0 0.0
    %3663 = vmatprep.subr.mxu0 0.0
    %3664 = vmatpush1.xpose.msra.mxu0 0.0
    %3665 = vmatprep.subr.mxu0 0.0
    %3666 = vmatpush1.xpose.msra.mxu0 0.0
    %3667 = vmatprep.subr.mxu0 0.0
    %3668 = vmatpush1.xpose.msra.mxu0 0.0
    %3669 = vmatprep.subr.mxu0 0.0
    %3670 = vmatpush1.xpose.msra.mxu0 0.0
    %3671 = vmatprep.subr.mxu0 0.0
    %3672 = vmatpush1.xpose.msra.mxu0 0.0
    %3673 = vmatprep.subr.mxu0 0.0
    %3674 = vmatpush1.xpose.msra.mxu0 0.0
    %3675 = vmatprep.subr.mxu0 0.0
    %3676 = vmatpush1.xpose.msra.mxu0 0.0
    %3677 = vmatprep.subr.mxu0 0.0
    %3678 = vmatpush1.xpose.msra.mxu0 0.0
    %3679 = vmatprep.subr.mxu0 0.0
    %3680 = vmatpush1.xpose.msra.mxu0 0.0
    %3681 = vmatprep.subr.mxu0 0.0
    %3682 = vmatpush1.xpose.msra.mxu0 0.0
    %3683 = vmatprep.subr.mxu0 0.0
    %3684 = vmatpush1.xpose.msra.mxu0 0.0
    %3685 = vmatprep.subr.mxu0 0.0
    %3686 = vmatpush1.xpose.msra.mxu0 0.0
    %3687 = vmatprep.subr.mxu0 0.0
    %3688 = vmatpush1.xpose.msra.mxu0 0.0
    %3689 = vmatprep.subr.mxu0 0.0
    %3690 = vmatpush1.xpose.msra.mxu0 0.0
    %3691 = vmatprep.subr.mxu0 0.0
    %3692 = vmatpush1.xpose.msra.mxu0 0.0
    %3693 = vmatprep.subr.mxu0 0.0
    %3694 = vmatpush1.xpose.msra.mxu0 0.0
    %3695 = vmatprep.subr.mxu0 0.0
    %3696 = vmatpush1.xpose.msra.mxu0 0.0
    %3697 = vmatprep.subr.mxu0 0.0
    %3698 = vmatpush1.xpose.msra.mxu0 0.0
    %3699 = vmatprep.subr.mxu0 0.0
    %3700 = vmatpush1.xpose.msra.mxu0 0.0
    %3701 = vmatprep.subr.mxu0 0.0
    %3702 = vmatpush1.xpose.msra.mxu0 0.0
    %3703 = vmatprep.subr.mxu0 0.0
    %3704 = vmatpush1.xpose.msra.mxu0 0.0
    %3705 = vmatprep.subr.mxu0 0.0
    %3706 = vmatpush1.xpose.msra.mxu0 0.0
    %3707 = vmatprep.subr.mxu0 0.0
    %3708 = vmatpush1.xpose.msra.mxu0 0.0
    %3709 = vmatprep.subr.mxu0 0.0
    %3710 = vmatpush1.xpose.msra.mxu0 0.0
    %3711 = vmatprep.subr.mxu0 0.0
    %3712 = vmatpush1.xpose.msra.mxu0 0.0
    %3713 = vmatprep.subr.mxu0 0.0
    %3714 = vmatpush1.xpose.msra.mxu0 0.0
    %3715 = vmatprep.subr.mxu0 0.0
    %3716 = vmatpush1.xpose.msra.mxu0 0.0
    %3717 = vmatprep.subr.mxu0 0.0
    %3718 = vmatpush1.xpose.msra.mxu0 0.0
    %3719 = vmatprep.mubr.f32.mxu0 0.0
    %3720 = vmatmul.mubr.f32.gmra.mrb[0].mxu0 %v3651
    %v3721 = vpop.f32.mrb[0].mxu0
    %v3722 = vadd.f32 0.0, %v3721
    %v3723 = vpop.f32.mrb[0].mxu0
    %3724 = vdwg.mxu0
    %v3725 = vsel %vm191, %v3722, -inf
    %3726 = vmax.xlane.f32.xlu0 %v3725
    %v3727 = vpop.xlane.xlu0 %3726
    %v3728 = vsub.f32 %v3722, %v3727
    %v3729 = vmul.f32 %v3728, 1.442695
    %v3730 = vpow.pop %v3729
    %v3731 = vsel %vm191, %v3730, 0.0
    %3732 = vadd.xlane.f32.xlu0 %v3731
    %v3733 = vpop.xlane.xlu0 %3732
    %v3734 = vrcp.pop %v3733
    %v3735 = vmul.f32 %v3730, %v3734
    %3736 = vrot.lane.b32.xlu0 %v2971, 64
    %v3737 = vpop.permute.xlu0 %3736
    %v3740 = vsel %vm191, %v3735, 0
    %3742 = vmatprep.subr.mxu0 0.0
    %3743 = vmatpush1.msra.mxu0 %v3737
    %3744 = vmatprep.subr.mxu0 0.0
    %3745 = vmatpush1.msra.mxu0 0.0
    %3746 = vmatprep.subr.mxu0 0.0
    %3747 = vmatpush1.msra.mxu0 0.0
    %3748 = vmatprep.subr.mxu0 0.0
    %3749 = vmatpush1.msra.mxu0 0.0
    %3750 = vmatprep.subr.mxu0 0.0
    %3751 = vmatpush1.msra.mxu0 0.0
    %3752 = vmatprep.subr.mxu0 0.0
    %3753 = vmatpush1.msra.mxu0 0.0
    %3754 = vmatprep.subr.mxu0 0.0
    %3755 = vmatpush1.msra.mxu0 0.0
    %3756 = vmatprep.subr.mxu0 0.0
    %3757 = vmatpush1.msra.mxu0 0.0
    %3758 = vmatprep.subr.mxu0 0.0
    %3759 = vmatpush1.msra.mxu0 0.0
    %3760 = vmatprep.subr.mxu0 0.0
    %3761 = vmatpush1.msra.mxu0 0.0
    %3762 = vmatprep.subr.mxu0 0.0
    %3763 = vmatpush1.msra.mxu0 0.0
    %3764 = vmatprep.subr.mxu0 0.0
    %3765 = vmatpush1.msra.mxu0 0.0
    %3766 = vmatprep.subr.mxu0 0.0
    %3767 = vmatpush1.msra.mxu0 0.0
    %3768 = vmatprep.subr.mxu0 0.0
    %3769 = vmatpush1.msra.mxu0 0.0
    %3770 = vmatprep.subr.mxu0 0.0
    %3771 = vmatpush1.msra.mxu0 0.0
    %3772 = vmatprep.subr.mxu0 0.0
    %3773 = vmatpush1.msra.mxu0 0.0
    %3774 = vmatprep.subr.mxu0 0.0
    %3775 = vmatpush1.msra.mxu0 0.0
    %3776 = vmatprep.subr.mxu0 0.0
    %3777 = vmatpush1.msra.mxu0 0.0
    %3778 = vmatprep.subr.mxu0 0.0
    %3779 = vmatpush1.msra.mxu0 0.0
    %3780 = vmatprep.subr.mxu0 0.0
    %3781 = vmatpush1.msra.mxu0 0.0
    %3782 = vmatprep.subr.mxu0 0.0
    %3783 = vmatpush1.msra.mxu0 0.0
    %3784 = vmatprep.subr.mxu0 0.0
    %3785 = vmatpush1.msra.mxu0 0.0
    %3786 = vmatprep.subr.mxu0 0.0
    %3787 = vmatpush1.msra.mxu0 0.0
    %3788 = vmatprep.subr.mxu0 0.0
    %3789 = vmatpush1.msra.mxu0 0.0
    %3790 = vmatprep.subr.mxu0 0.0
    %3791 = vmatpush1.msra.mxu0 0.0
    %3792 = vmatprep.subr.mxu0 0.0
    %3793 = vmatpush1.msra.mxu0 0.0
    %3794 = vmatprep.subr.mxu0 0.0
    %3795 = vmatpush1.msra.mxu0 0.0
    %3796 = vmatprep.subr.mxu0 0.0
    %3797 = vmatpush1.msra.mxu0 0.0
    %3798 = vmatprep.subr.mxu0 0.0
    %3799 = vmatpush1.msra.mxu0 0.0
    %3800 = vmatprep.subr.mxu0 0.0
    %3801 = vmatpush1.msra.mxu0 0.0
    %3802 = vmatprep.subr.mxu0 0.0
    %3803 = vmatpush1.msra.mxu0 0.0
    %3804 = vmatprep.subr.mxu0 0.0
    %3805 = vmatpush1.msra.mxu0 0.0
    %3806 = vmatprep.mubr.f32.mxu0 0.0
    %3807 = vmatmul.mubr.f32.gmra.mrb[0].mxu0 %v3740
    %v3808 = vpop.f32.mrb[0].mxu0
    %v3809 = vadd.f32 0.0, %v3808
    %v3810 = vpop.f32.mrb[0].mxu0
    %3811 = vdwg.mxu0
    %3812 = vrot.lane.b32.xlu0 %v2971, 120
    %v3813 = vpop.permute.xlu0 %3812
    %3814 = vrot.lane.b32.xlu0 %v2971, 88
    %v3815 = vpop.permute.xlu0 %3814
    %v3816 = vsel %vm191, %v3813, 0
    %v3818 = vsel %vm191, %v3815, 0
    %3820 = vmatprep.subr.mxu0 0.0
    %3821 = vmatpush1.xpose.msra.mxu0 %v3818
    %3822 = vmatprep.subr.mxu0 0.0
    %3823 = vmatpush1.xpose.msra.mxu0 0.0
    %3824 = vmatprep.subr.mxu0 0.0
    %3825 = vmatpush1.xpose.msra.mxu0 0.0
    %3826 = vmatprep.subr.mxu0 0.0
    %3827 = vmatpush1.xpose.msra.mxu0 0.0
    %3828 = vmatprep.subr.mxu0 0.0
    %3829 = vmatpush1.xpose.msra.mxu0 0.0
    %3830 = vmatprep.subr.mxu0 0.0
    %3831 = vmatpush1.xpose.msra.mxu0 0.0
    %3832 = vmatprep.subr.mxu0 0.0
    %3833 = vmatpush1.xpose.msra.mxu0 0.0
    %3834 = vmatprep.subr.mxu0 0.0
    %3835 = vmatpush1.xpose.msra.mxu0 0.0
    %3836 = vmatprep.subr.mxu0 0.0
    %3837 = vmatpush1.xpose.msra.mxu0 0.0
    %3838 = vmatprep.subr.mxu0 0.0
    %3839 = vmatpush1.xpose.msra.mxu0 0.0
    %3840 = vmatprep.subr.mxu0 0.0
    %3841 = vmatpush1.xpose.msra.mxu0 0.0
    %3842 = vmatprep.subr.mxu0 0.0
    %3843 = vmatpush1.xpose.msra.mxu0 0.0
    %3844 = vmatprep.subr.mxu0 0.0
    %3845 = vmatpush1.xpose.msra.mxu0 0.0
    %3846 = vmatprep.subr.mxu0 0.0
    %3847 = vmatpush1.xpose.msra.mxu0 0.0
    %3848 = vmatprep.subr.mxu0 0.0
    %3849 = vmatpush1.xpose.msra.mxu0 0.0
    %3850 = vmatprep.subr.mxu0 0.0
    %3851 = vmatpush1.xpose.msra.mxu0 0.0
    %3852 = vmatprep.subr.mxu0 0.0
    %3853 = vmatpush1.xpose.msra.mxu0 0.0
    %3854 = vmatprep.subr.mxu0 0.0
    %3855 = vmatpush1.xpose.msra.mxu0 0.0
    %3856 = vmatprep.subr.mxu0 0.0
    %3857 = vmatpush1.xpose.msra.mxu0 0.0
    %3858 = vmatprep.subr.mxu0 0.0
    %3859 = vmatpush1.xpose.msra.mxu0 0.0
    %3860 = vmatprep.subr.mxu0 0.0
    %3861 = vmatpush1.xpose.msra.mxu0 0.0
    %3862 = vmatprep.subr.mxu0 0.0
    %3863 = vmatpush1.xpose.msra.mxu0 0.0
    %3864 = vmatprep.subr.mxu0 0.0
    %3865 = vmatpush1.xpose.msra.mxu0 0.0
    %3866 = vmatprep.subr.mxu0 0.0
    %3867 = vmatpush1.xpose.msra.mxu0 0.0
    %3868 = vmatprep.subr.mxu0 0.0
    %3869 = vmatpush1.xpose.msra.mxu0 0.0
    %3870 = vmatprep.subr.mxu0 0.0
    %3871 = vmatpush1.xpose.msra.mxu0 0.0
    %3872 = vmatprep.subr.mxu0 0.0
    %3873 = vmatpush1.xpose.msra.mxu0 0.0
    %3874 = vmatprep.subr.mxu0 0.0
    %3875 = vmatpush1.xpose.msra.mxu0 0.0
    %3876 = vmatprep.subr.mxu0 0.0
    %3877 = vmatpush1.xpose.msra.mxu0 0.0
    %3878 = vmatprep.subr.mxu0 0.0
    %3879 = vmatpush1.xpose.msra.mxu0 0.0
    %3880 = vmatprep.subr.mxu0 0.0
    %3881 = vmatpush1.xpose.msra.mxu0 0.0
    %3882 = vmatprep.subr.mxu0 0.0
    %3883 = vmatpush1.xpose.msra.mxu0 0.0
    %3884 = vmatprep.mubr.f32.mxu0 0.0
    %3885 = vmatmul.mubr.f32.gmra.mrb[0].mxu0 %v3816
    %v3886 = vpop.f32.mrb[0].mxu0
    %v3887 = vadd.f32 0.0, %v3886
    %v3888 = vpop.f32.mrb[0].mxu0
    %3889 = vdwg.mxu0
    %v3890 = vsel %vm191, %v3887, -inf
    %3891 = vmax.xlane.f32.xlu0 %v3890
    %v3892 = vpop.xlane.xlu0 %3891
    %v3893 = vsub.f32 %v3887, %v3892
    %v3894 = vmul.f32 %v3893, 1.442695
    %v3895 = vpow.pop %v3894
    %v3896 = vsel %vm191, %v3895, 0.0
    %3897 = vadd.xlane.f32.xlu0 %v3896
    %v3898 = vpop.xlane.xlu0 %3897
    %v3899 = vrcp.pop %v3898
    %v3900 = vmul.f32 %v3895, %v3899
    %3901 = vrot.lane.b32.xlu0 %v2971, 56
    %v3902 = vpop.permute.xlu0 %3901
    %v3905 = vsel %vm191, %v3900, 0
    %3907 = vmatprep.subr.mxu0 0.0
    %3908 = vmatpush1.msra.mxu0 %v3902
    %3909 = vmatprep.subr.mxu0 0.0
    %3910 = vmatpush1.msra.mxu0 0.0
    %3911 = vmatprep.subr.mxu0 0.0
    %3912 = vmatpush1.msra.mxu0 0.0
    %3913 = vmatprep.subr.mxu0 0.0
    %3914 = vmatpush1.msra.mxu0 0.0
    %3915 = vmatprep.subr.mxu0 0.0
    %3916 = vmatpush1.msra.mxu0 0.0
    %3917 = vmatprep.subr.mxu0 0.0
    %3918 = vmatpush1.msra.mxu0 0.0
    %3919 = vmatprep.subr.mxu0 0.0
    %3920 = vmatpush1.msra.mxu0 0.0
    %3921 = vmatprep.subr.mxu0 0.0
    %3922 = vmatpush1.msra.mxu0 0.0
    %3923 = vmatprep.subr.mxu0 0.0
    %3924 = vmatpush1.msra.mxu0 0.0
    %3925 = vmatprep.subr.mxu0 0.0
    %3926 = vmatpush1.msra.mxu0 0.0
    %3927 = vmatprep.subr.mxu0 0.0
    %3928 = vmatpush1.msra.mxu0 0.0
    %3929 = vmatprep.subr.mxu0 0.0
    %3930 = vmatpush1.msra.mxu0 0.0
    %3931 = vmatprep.subr.mxu0 0.0
    %3932 = vmatpush1.msra.mxu0 0.0
    %3933 = vmatprep.subr.mxu0 0.0
    %3934 = vmatpush1.msra.mxu0 0.0
    %3935 = vmatprep.subr.mxu0 0.0
    %3936 = vmatpush1.msra.mxu0 0.0
    %3937 = vmatprep.subr.mxu0 0.0
    %3938 = vmatpush1.msra.mxu0 0.0
    %3939 = vmatprep.subr.mxu0 0.0
    %3940 = vmatpush1.msra.mxu0 0.0
    %3941 = vmatprep.subr.mxu0 0.0
    %3942 = vmatpush1.msra.mxu0 0.0
    %3943 = vmatprep.subr.mxu0 0.0
    %3944 = vmatpush1.msra.mxu0 0.0
    %3945 = vmatprep.subr.mxu0 0.0
    %3946 = vmatpush1.msra.mxu0 0.0
    %3947 = vmatprep.subr.mxu0 0.0
    %3948 = vmatpush1.msra.mxu0 0.0
    %3949 = vmatprep.subr.mxu0 0.0
    %3950 = vmatpush1.msra.mxu0 0.0
    %3951 = vmatprep.subr.mxu0 0.0
    %3952 = vmatpush1.msra.mxu0 0.0
    %3953 = vmatprep.subr.mxu0 0.0
    %3954 = vmatpush1.msra.mxu0 0.0
    %3955 = vmatprep.subr.mxu0 0.0
    %3956 = vmatpush1.msra.mxu0 0.0
    %3957 = vmatprep.subr.mxu0 0.0
    %3958 = vmatpush1.msra.mxu0 0.0
    %3959 = vmatprep.subr.mxu0 0.0
    %3960 = vmatpush1.msra.mxu0 0.0
    %3961 = vmatprep.subr.mxu0 0.0
    %3962 = vmatpush1.msra.mxu0 0.0
    %3963 = vmatprep.subr.mxu0 0.0
    %3964 = vmatpush1.msra.mxu0 0.0
    %3965 = vmatprep.subr.mxu0 0.0
    %3966 = vmatpush1.msra.mxu0 0.0
    %3967 = vmatprep.subr.mxu0 0.0
    %3968 = vmatpush1.msra.mxu0 0.0
    %3969 = vmatprep.subr.mxu0 0.0
    %3970 = vmatpush1.msra.mxu0 0.0
    %3971 = vmatprep.mubr.f32.mxu0 0.0
    %3972 = vmatmul.mubr.f32.gmra.mrb[0].mxu0 %v3905
    %v3973 = vpop.f32.mrb[0].mxu0
    %v3974 = vadd.f32 0.0, %v3973
    %v3975 = vpop.f32.mrb[0].mxu0
    %3976 = vdwg.mxu0
    %3977 = vrot.lane.b32.xlu0 %v2971, 112
    %v3978 = vpop.permute.xlu0 %3977
    %3979 = vrot.lane.b32.xlu0 %v2971, 80
    %v3980 = vpop.permute.xlu0 %3979
    %v3981 = vsel %vm191, %v3978, 0
    %v3983 = vsel %vm191, %v3980, 0
    %3985 = vmatprep.subr.mxu0 0.0
    %3986 = vmatpush1.xpose.msra.mxu0 %v3983
    %3987 = vmatprep.subr.mxu0 0.0
    %3988 = vmatpush1.xpose.msra.mxu0 0.0
    %3989 = vmatprep.subr.mxu0 0.0
    %3990 = vmatpush1.xpose.msra.mxu0 0.0
    %3991 = vmatprep.subr.mxu0 0.0
    %3992 = vmatpush1.xpose.msra.mxu0 0.0
    %3993 = vmatprep.subr.mxu0 0.0
    %3994 = vmatpush1.xpose.msra.mxu0 0.0
    %3995 = vmatprep.subr.mxu0 0.0
    %3996 = vmatpush1.xpose.msra.mxu0 0.0
    %3997 = vmatprep.subr.mxu0 0.0
    %3998 = vmatpush1.xpose.msra.mxu0 0.0
    %3999 = vmatprep.subr.mxu0 0.0
    %4000 = vmatpush1.xpose.msra.mxu0 0.0
    %4001 = vmatprep.subr.mxu0 0.0
    %4002 = vmatpush1.xpose.msra.mxu0 0.0
    %4003 = vmatprep.subr.mxu0 0.0
    %4004 = vmatpush1.xpose.msra.mxu0 0.0
    %4005 = vmatprep.subr.mxu0 0.0
    %4006 = vmatpush1.xpose.msra.mxu0 0.0
    %4007 = vmatprep.subr.mxu0 0.0
    %4008 = vmatpush1.xpose.msra.mxu0 0.0
    %4009 = vmatprep.subr.mxu0 0.0
    %4010 = vmatpush1.xpose.msra.mxu0 0.0
    %4011 = vmatprep.subr.mxu0 0.0
    %4012 = vmatpush1.xpose.msra.mxu0 0.0
    %4013 = vmatprep.subr.mxu0 0.0
    %4014 = vmatpush1.xpose.msra.mxu0 0.0
    %4015 = vmatprep.subr.mxu0 0.0
    %4016 = vmatpush1.xpose.msra.mxu0 0.0
    %4017 = vmatprep.subr.mxu0 0.0
    %4018 = vmatpush1.xpose.msra.mxu0 0.0
    %4019 = vmatprep.subr.mxu0 0.0
    %4020 = vmatpush1.xpose.msra.mxu0 0.0
    %4021 = vmatprep.subr.mxu0 0.0
    %4022 = vmatpush1.xpose.msra.mxu0 0.0
    %4023 = vmatprep.subr.mxu0 0.0
    %4024 = vmatpush1.xpose.msra.mxu0 0.0
    %4025 = vmatprep.subr.mxu0 0.0
    %4026 = vmatpush1.xpose.msra.mxu0 0.0
    %4027 = vmatprep.subr.mxu0 0.0
    %4028 = vmatpush1.xpose.msra.mxu0 0.0
    %4029 = vmatprep.subr.mxu0 0.0
    %4030 = vmatpush1.xpose.msra.mxu0 0.0
    %4031 = vmatprep.subr.mxu0 0.0
    %4032 = vmatpush1.xpose.msra.mxu0 0.0
    %4033 = vmatprep.subr.mxu0 0.0
    %4034 = vmatpush1.xpose.msra.mxu0 0.0
    %4035 = vmatprep.subr.mxu0 0.0
    %4036 = vmatpush1.xpose.msra.mxu0 0.0
    %4037 = vmatprep.subr.mxu0 0.0
    %4038 = vmatpush1.xpose.msra.mxu0 0.0
    %4039 = vmatprep.subr.mxu0 0.0
    %4040 = vmatpush1.xpose.msra.mxu0 0.0
    %4041 = vmatprep.subr.mxu0 0.0
    %4042 = vmatpush1.xpose.msra.mxu0 0.0
    %4043 = vmatprep.subr.mxu0 0.0
    %4044 = vmatpush1.xpose.msra.mxu0 0.0
    %4045 = vmatprep.subr.mxu0 0.0
    %4046 = vmatpush1.xpose.msra.mxu0 0.0
    %4047 = vmatprep.subr.mxu0 0.0
    %4048 = vmatpush1.xpose.msra.mxu0 0.0
    %4049 = vmatprep.mubr.f32.mxu0 0.0
    %4050 = vmatmul.mubr.f32.gmra.mrb[0].mxu0 %v3981
    %v4051 = vpop.f32.mrb[0].mxu0
    %v4052 = vadd.f32 0.0, %v4051
    %v4053 = vpop.f32.mrb[0].mxu0
    %4054 = vdwg.mxu0
    %v4055 = vsel %vm191, %v4052, -inf
    %4056 = vmax.xlane.f32.xlu0 %v4055
    %v4057 = vpop.xlane.xlu0 %4056
    %v4058 = vsub.f32 %v4052, %v4057
    %v4059 = vmul.f32 %v4058, 1.442695
    %v4060 = vpow.pop %v4059
    %v4061 = vsel %vm191, %v4060, 0.0
    %4062 = vadd.xlane.f32.xlu0 %v4061
    %v4063 = vpop.xlane.xlu0 %4062
    %v4064 = vrcp.pop %v4063
    %v4065 = vmul.f32 %v4060, %v4064
    %4066 = vrot.lane.b32.xlu0 %v2971, 48
    %v4067 = vpop.permute.xlu0 %4066
    %v4070 = vsel %vm191, %v4065, 0
    %4072 = vmatprep.subr.mxu0 0.0
    %4073 = vmatpush1.msra.mxu0 %v4067
    %4074 = vmatprep.subr.mxu0 0.0
    %4075 = vmatpush1.msra.mxu0 0.0
    %4076 = vmatprep.subr.mxu0 0.0
    %4077 = vmatpush1.msra.mxu0 0.0
    %4078 = vmatprep.subr.mxu0 0.0
    %4079 = vmatpush1.msra.mxu0 0.0
    %4080 = vmatprep.subr.mxu0 0.0
    %4081 = vmatpush1.msra.mxu0 0.0
    %4082 = vmatprep.subr.mxu0 0.0
    %4083 = vmatpush1.msra.mxu0 0.0
    %4084 = vmatprep.subr.mxu0 0.0
    %4085 = vmatpush1.msra.mxu0 0.0
    %4086 = vmatprep.subr.mxu0 0.0
    %4087 = vmatpush1.msra.mxu0 0.0
    %4088 = vmatprep.subr.mxu0 0.0
    %4089 = vmatpush1.msra.mxu0 0.0
    %4090 = vmatprep.subr.mxu0 0.0
    %4091 = vmatpush1.msra.mxu0 0.0
    %4092 = vmatprep.subr.mxu0 0.0
    %4093 = vmatpush1.msra.mxu0 0.0
    %4094 = vmatprep.subr.mxu0 0.0
    %4095 = vmatpush1.msra.mxu0 0.0
    %4096 = vmatprep.subr.mxu0 0.0
    %4097 = vmatpush1.msra.mxu0 0.0
    %4098 = vmatprep.subr.mxu0 0.0
    %4099 = vmatpush1.msra.mxu0 0.0
    %4100 = vmatprep.subr.mxu0 0.0
    %4101 = vmatpush1.msra.mxu0 0.0
    %4102 = vmatprep.subr.mxu0 0.0
    %4103 = vmatpush1.msra.mxu0 0.0
    %4104 = vmatprep.subr.mxu0 0.0
    %4105 = vmatpush1.msra.mxu0 0.0
    %4106 = vmatprep.subr.mxu0 0.0
    %4107 = vmatpush1.msra.mxu0 0.0
    %4108 = vmatprep.subr.mxu0 0.0
    %4109 = vmatpush1.msra.mxu0 0.0
    %4110 = vmatprep.subr.mxu0 0.0
    %4111 = vmatpush1.msra.mxu0 0.0
    %4112 = vmatprep.subr.mxu0 0.0
    %4113 = vmatpush1.msra.mxu0 0.0
    %4114 = vmatprep.subr.mxu0 0.0
    %4115 = vmatpush1.msra.mxu0 0.0
    %4116 = vmatprep.subr.mxu0 0.0
    %4117 = vmatpush1.msra.mxu0 0.0
    %4118 = vmatprep.subr.mxu0 0.0
    %4119 = vmatpush1.msra.mxu0 0.0
    %4120 = vmatprep.subr.mxu0 0.0
    %4121 = vmatpush1.msra.mxu0 0.0
    %4122 = vmatprep.subr.mxu0 0.0
    %4123 = vmatpush1.msra.mxu0 0.0
    %4124 = vmatprep.subr.mxu0 0.0
    %4125 = vmatpush1.msra.mxu0 0.0
    %4126 = vmatprep.subr.mxu0 0.0
    %4127 = vmatpush1.msra.mxu0 0.0
    %4128 = vmatprep.subr.mxu0 0.0
    %4129 = vmatpush1.msra.mxu0 0.0
    %4130 = vmatprep.subr.mxu0 0.0
    %4131 = vmatpush1.msra.mxu0 0.0
    %4132 = vmatprep.subr.mxu0 0.0
    %4133 = vmatpush1.msra.mxu0 0.0
    %4134 = vmatprep.subr.mxu0 0.0
    %4135 = vmatpush1.msra.mxu0 0.0
    %4136 = vmatprep.mubr.f32.mxu0 0.0
    %4137 = vmatmul.mubr.f32.gmra.mrb[0].mxu0 %v4070
    %v4138 = vpop.f32.mrb[0].mxu0
    %v4139 = vadd.f32 0.0, %v4138
    %v4140 = vpop.f32.mrb[0].mxu0
    %4141 = vdwg.mxu0
    %4142 = vrot.lane.b32.xlu0 %v2971, 104
    %v4143 = vpop.permute.xlu0 %4142
    %4144 = vrot.lane.b32.xlu0 %v2971, 72
    %v4145 = vpop.permute.xlu0 %4144
    %v4146 = vsel %vm191, %v4143, 0
    %v4148 = vsel %vm191, %v4145, 0
    %4150 = vmatprep.subr.mxu0 0.0
    %4151 = vmatpush1.xpose.msra.mxu0 %v4148
    %4152 = vmatprep.subr.mxu0 0.0
    %4153 = vmatpush1.xpose.msra.mxu0 0.0
    %4154 = vmatprep.subr.mxu0 0.0
    %4155 = vmatpush1.xpose.msra.mxu0 0.0
    %4156 = vmatprep.subr.mxu0 0.0
    %4157 = vmatpush1.xpose.msra.mxu0 0.0
    %4158 = vmatprep.subr.mxu0 0.0
    %4159 = vmatpush1.xpose.msra.mxu0 0.0
    %4160 = vmatprep.subr.mxu0 0.0
    %4161 = vmatpush1.xpose.msra.mxu0 0.0
    %4162 = vmatprep.subr.mxu0 0.0
    %4163 = vmatpush1.xpose.msra.mxu0 0.0
    %4164 = vmatprep.subr.mxu0 0.0
    %4165 = vmatpush1.xpose.msra.mxu0 0.0
    %4166 = vmatprep.subr.mxu0 0.0
    %4167 = vmatpush1.xpose.msra.mxu0 0.0
    %4168 = vmatprep.subr.mxu0 0.0
    %4169 = vmatpush1.xpose.msra.mxu0 0.0
    %4170 = vmatprep.subr.mxu0 0.0
    %4171 = vmatpush1.xpose.msra.mxu0 0.0
    %4172 = vmatprep.subr.mxu0 0.0
    %4173 = vmatpush1.xpose.msra.mxu0 0.0
    %4174 = vmatprep.subr.mxu0 0.0
    %4175 = vmatpush1.xpose.msra.mxu0 0.0
    %4176 = vmatprep.subr.mxu0 0.0
    %4177 = vmatpush1.xpose.msra.mxu0 0.0
    %4178 = vmatprep.subr.mxu0 0.0
    %4179 = vmatpush1.xpose.msra.mxu0 0.0
    %4180 = vmatprep.subr.mxu0 0.0
    %4181 = vmatpush1.xpose.msra.mxu0 0.0
    %4182 = vmatprep.subr.mxu0 0.0
    %4183 = vmatpush1.xpose.msra.mxu0 0.0
    %4184 = vmatprep.subr.mxu0 0.0
    %4185 = vmatpush1.xpose.msra.mxu0 0.0
    %4186 = vmatprep.subr.mxu0 0.0
    %4187 = vmatpush1.xpose.msra.mxu0 0.0
    %4188 = vmatprep.subr.mxu0 0.0
    %4189 = vmatpush1.xpose.msra.mxu0 0.0
    %4190 = vmatprep.subr.mxu0 0.0
    %4191 = vmatpush1.xpose.msra.mxu0 0.0
    %4192 = vmatprep.subr.mxu0 0.0
    %4193 = vmatpush1.xpose.msra.mxu0 0.0
    %4194 = vmatprep.subr.mxu0 0.0
    %4195 = vmatpush1.xpose.msra.mxu0 0.0
    %4196 = vmatprep.subr.mxu0 0.0
    %4197 = vmatpush1.xpose.msra.mxu0 0.0
    %4198 = vmatprep.subr.mxu0 0.0
    %4199 = vmatpush1.xpose.msra.mxu0 0.0
    %4200 = vmatprep.subr.mxu0 0.0
    %4201 = vmatpush1.xpose.msra.mxu0 0.0
    %4202 = vmatprep.subr.mxu0 0.0
    %4203 = vmatpush1.xpose.msra.mxu0 0.0
    %4204 = vmatprep.subr.mxu0 0.0
    %4205 = vmatpush1.xpose.msra.mxu0 0.0
    %4206 = vmatprep.subr.mxu0 0.0
    %4207 = vmatpush1.xpose.msra.mxu0 0.0
    %4208 = vmatprep.subr.mxu0 0.0
    %4209 = vmatpush1.xpose.msra.mxu0 0.0
    %4210 = vmatprep.subr.mxu0 0.0
    %4211 = vmatpush1.xpose.msra.mxu0 0.0
    %4212 = vmatprep.subr.mxu0 0.0
    %4213 = vmatpush1.xpose.msra.mxu0 0.0
    %4214 = vmatprep.mubr.f32.mxu0 0.0
    %4215 = vmatmul.mubr.f32.gmra.mrb[0].mxu0 %v4146
    %v4216 = vpop.f32.mrb[0].mxu0
    %v4217 = vadd.f32 0.0, %v4216
    %v4218 = vpop.f32.mrb[0].mxu0
    %4219 = vdwg.mxu0
    %v4220 = vsel %vm191, %v4217, -inf
    %4221 = vmax.xlane.f32.xlu0 %v4220
    %v4222 = vpop.xlane.xlu0 %4221
    %v4223 = vsub.f32 %v4217, %v4222
    %v4224 = vmul.f32 %v4223, 1.442695
    %v4225 = vpow.pop %v4224
    %v4226 = vsel %vm191, %v4225, 0.0
    %4227 = vadd.xlane.f32.xlu0 %v4226
    %v4228 = vpop.xlane.xlu0 %4227
    %v4229 = vrcp.pop %v4228
    %v4230 = vmul.f32 %v4225, %v4229
    %4231 = vrot.lane.b32.xlu0 %v2971, 40
    %v4232 = vpop.permute.xlu0 %4231
    %v4235 = vsel %vm191, %v4230, 0
    %4237 = vmatprep.subr.mxu0 0.0
    %4238 = vmatpush1.msra.mxu0 %v4232
    %4239 = vmatprep.subr.mxu0 0.0
    %4240 = vmatpush1.msra.mxu0 0.0
    %4241 = vmatprep.subr.mxu0 0.0
    %4242 = vmatpush1.msra.mxu0 0.0
    %4243 = vmatprep.subr.mxu0 0.0
    %4244 = vmatpush1.msra.mxu0 0.0
    %4245 = vmatprep.subr.mxu0 0.0
    %4246 = vmatpush1.msra.mxu0 0.0
    %4247 = vmatprep.subr.mxu0 0.0
    %4248 = vmatpush1.msra.mxu0 0.0
    %4249 = vmatprep.subr.mxu0 0.0
    %4250 = vmatpush1.msra.mxu0 0.0
    %4251 = vmatprep.subr.mxu0 0.0
    %4252 = vmatpush1.msra.mxu0 0.0
    %4253 = vmatprep.subr.mxu0 0.0
    %4254 = vmatpush1.msra.mxu0 0.0
    %4255 = vmatprep.subr.mxu0 0.0
    %4256 = vmatpush1.msra.mxu0 0.0
    %4257 = vmatprep.subr.mxu0 0.0
    %4258 = vmatpush1.msra.mxu0 0.0
    %4259 = vmatprep.subr.mxu0 0.0
    %4260 = vmatpush1.msra.mxu0 0.0
    %4261 = vmatprep.subr.mxu0 0.0
    %4262 = vmatpush1.msra.mxu0 0.0
    %4263 = vmatprep.subr.mxu0 0.0
    %4264 = vmatpush1.msra.mxu0 0.0
    %4265 = vmatprep.subr.mxu0 0.0
    %4266 = vmatpush1.msra.mxu0 0.0
    %4267 = vmatprep.subr.mxu0 0.0
    %4268 = vmatpush1.msra.mxu0 0.0
    %4269 = vmatprep.subr.mxu0 0.0
    %4270 = vmatpush1.msra.mxu0 0.0
    %4271 = vmatprep.subr.mxu0 0.0
    %4272 = vmatpush1.msra.mxu0 0.0
    %4273 = vmatprep.subr.mxu0 0.0
    %4274 = vmatpush1.msra.mxu0 0.0
    %4275 = vmatprep.subr.mxu0 0.0
    %4276 = vmatpush1.msra.mxu0 0.0
    %4277 = vmatprep.subr.mxu0 0.0
    %4278 = vmatpush1.msra.mxu0 0.0
    %4279 = vmatprep.subr.mxu0 0.0
    %4280 = vmatpush1.msra.mxu0 0.0
    %4281 = vmatprep.subr.mxu0 0.0
    %4282 = vmatpush1.msra.mxu0 0.0
    %4283 = vmatprep.subr.mxu0 0.0
    %4284 = vmatpush1.msra.mxu0 0.0
    %4285 = vmatprep.subr.mxu0 0.0
    %4286 = vmatpush1.msra.mxu0 0.0
    %4287 = vmatprep.subr.mxu0 0.0
    %4288 = vmatpush1.msra.mxu0 0.0
    %4289 = vmatprep.subr.mxu0 0.0
    %4290 = vmatpush1.msra.mxu0 0.0
    %4291 = vmatprep.subr.mxu0 0.0
    %4292 = vmatpush1.msra.mxu0 0.0
    %4293 = vmatprep.subr.mxu0 0.0
    %4294 = vmatpush1.msra.mxu0 0.0
    %4295 = vmatprep.subr.mxu0 0.0
    %4296 = vmatpush1.msra.mxu0 0.0
    %4297 = vmatprep.subr.mxu0 0.0
    %4298 = vmatpush1.msra.mxu0 0.0
    %4299 = vmatprep.subr.mxu0 0.0
    %4300 = vmatpush1.msra.mxu0 0.0
    %4301 = vmatprep.mubr.f32.mxu0 0.0
    %4302 = vmatmul.mubr.f32.gmra.mrb[0].mxu0 %v4235
    %v4303 = vpop.f32.mrb[0].mxu0
    %v4304 = vadd.f32 0.0, %v4303
    %v4305 = vpop.f32.mrb[0].mxu0
    %4306 = vdwg.mxu0
    %4308 = vrot.lane.b32.xlu0 %v3974, 8
    %v4309 = vpop.permute.xlu0 %4308
    %4312 = vrot.lane.b32.xlu0 %v4139, 16
    %v4313 = vpop.permute.xlu0 %4312
    %4316 = vrot.lane.b32.xlu0 %v4304, 24
    %v4317 = vpop.permute.xlu0 %4316
    %v4319 = vsel %vm191, %v3809, %v4309
    %v4320 = vsel %vm861, %v4319, %v4313
    %v4321 = vsel %vm863, %v4320, %v4317
    %v4322 = vpack.c.bf16 %v4321, %v3647
    %s4323 = scalar_lea.vmem %s5, 16
    %v4324 = vld [vmem:[%s4323] sm:$0xf]
    %v4325 = vld [vmem:[%s4323 + $0x4] sm:$0xf]
    %v4326 = vld [vmem:[%s4323 + $0x8] sm:$0xf]
    %v4327 = vld [vmem:[%s4323 + $0xc] sm:$0xf]
    %s4328 = scalar_lea.vmem %s9, 6
    %v4329 = vld [vmem:[%s4328] sm:$0x1]
    %v4331 = vlaneseq
    %v4332 = vshrl.u32 %v4331, 7
    %v4333 = vsub.s32 0, %v4332
    %v4334 = vrot.slane %v4329, %v4333
    %v4340 = vunpack.c.l.b16 %v4324
    %v4341 = vunpack.c.l.b16 %v4325
    %v4342 = vunpack.c.l.b16 %v4326
    %v4343 = vunpack.c.l.b16 %v4327
    %v4344 = vpack.c.b16 %v4341, %v4340
    %v4345 = vpack.c.b16 %v4343, %v4342
    %v4349 = vsel %vm143, %v4322, 0
    %4351 = vmatprep.subr.bf16.mxu0 0
    %4352 = vmatpush1.bf16.msra.mxu0 %v4344
    %4353 = vmatprep.subr.bf16.mxu0 0
    %4354 = vmatpush1.bf16.msra.mxu0 %v4345
    %4355 = vmatprep.subr.bf16.mxu0 0
    %4356 = vmatpush1.bf16.msra.mxu0 0
    %4357 = vmatprep.subr.bf16.mxu0 0
    %4358 = vmatpush1.bf16.msra.mxu0 0
    %4359 = vmatprep.subr.bf16.mxu0 0
    %4360 = vmatpush1.bf16.msra.mxu0 0
    %4361 = vmatprep.subr.bf16.mxu0 0
    %4362 = vmatpush1.bf16.msra.mxu0 0
    %4363 = vmatprep.subr.bf16.mxu0 0
    %4364 = vmatpush1.bf16.msra.mxu0 0
    %4365 = vmatprep.subr.bf16.mxu0 0
    %4366 = vmatpush1.bf16.msra.mxu0 0
    %4367 = vmatprep.subr.bf16.mxu0 0
    %4368 = vmatpush1.bf16.msra.mxu0 0
    %4369 = vmatprep.subr.bf16.mxu0 0
    %4370 = vmatpush1.bf16.msra.mxu0 0
    %4371 = vmatprep.subr.bf16.mxu0 0
    %4372 = vmatpush1.bf16.msra.mxu0 0
    %4373 = vmatprep.subr.bf16.mxu0 0
    %4374 = vmatpush1.bf16.msra.mxu0 0
    %4375 = vmatprep.subr.bf16.mxu0 0
    %4376 = vmatpush1.bf16.msra.mxu0 0
    %4377 = vmatprep.subr.bf16.mxu0 0
    %4378 = vmatpush1.bf16.msra.mxu0 0
    %4379 = vmatprep.subr.bf16.mxu0 0
    %4380 = vmatpush1.bf16.msra.mxu0 0
    %4381 = vmatprep.subr.bf16.mxu0 0
    %4382 = vmatpush1.bf16.msra.mxu0 0
    %4383 = vmatprep.mubr.bf16.mxu0 0
    %4384 = vmatmul.mubr.bf16.gmra.mrb[0].mxu0 %v4349
    %v4385 = vpop.f32.mrb[0].mxu0
    %v4386 = vadd.f32 %v4334, %v4385
    %v4387 = vpop.f32.mrb[0].mxu0
    %v4388 = vpop.f32.mrb[0].mxu0
    %v4389 = vadd.f32 %v4334, %v4388
    %v4390 = vpop.f32.mrb[0].mxu0
    %4391 = vdwg.mxu0
    %v4392 = vadd.f32 %v2902, %v4386
    %v4393 = vadd.f32 %v2903, %v4389
    %s4394 = scalar_lea.vmem %s9, 8
    %v4395 = vld [vmem:[%s4394] sm:$0x1]
    %s4396 = scalar_lea.vmem %s9, 9
    %v4397 = vld [vmem:[%s4396] sm:$0x1]
    %v4398 = vsel %vm143, %v4392, 0.0
    %4399 = vadd.xlane.f32.xlu0 %v4398
    %v4400 = vpop.xlane.xlu0 %4399
    %v4401 = vsel %vm143, %v4393, 0.0
    %4402 = vadd.xlane.f32.xlu0 %v4401
    %v4403 = vpop.xlane.xlu0 %4402
    %v4404 = vmul.f32 %v4400, %v1619
    %v4405 = vmul.f32 %v4403, %v1619
    %v4406 = vsub.f32 %v4392, %v4404
    %v4407 = vsub.f32 %v4393, %v4405
    %v4408 = vmul.f32 %v4406, %v4406
    %v4409 = vmul.f32 %v4407, %v4407
    %v4410 = vsel %vm143, %v4408, 0.0
    %4411 = vadd.xlane.f32.xlu0 %v4410
    %v4412 = vpop.xlane.xlu0 %4411
    %v4413 = vsel %vm143, %v4409, 0.0
    %4414 = vadd.xlane.f32.xlu0 %v4413
    %v4415 = vpop.xlane.xlu0 %4414
    %v4416 = vmul.f32 %v4412, %v1619
    %v4417 = vmul.f32 %v4415, %v1619
    %v4418 = vadd.f32 %v4416, 1e-05
    %v4419 = vadd.f32 %v4417, 1e-05
    %v4420 = vrsqrt.pop %v4418
    %v4421 = vrsqrt.pop %v4419
    %v4422 = vmul.f32 %v4406, %v4420
    %v4423 = vmul.f32 %v4407, %v4421
    %v4425 = vlaneseq
    %v4426 = vshrl.u32 %v4425, 7
    %v4427 = vsub.s32 0, %v4426
    %v4428 = vrot.slane %v4395, %v4427
    %v4430 = vmul.f32 %v4422, %v4428
    %v4431 = vmul.f32 %v4423, %v4428
    %v4433 = vlaneseq
    %v4434 = vshrl.u32 %v4433, 7
    %v4435 = vsub.s32 0, %v4434
    %v4436 = vrot.slane %v4397, %v4435
    %v4438 = vadd.f32 %v4430, %v4436
    %v4439 = vadd.f32 %v4431, %v4436
    %v4440 = vpack.c.bf16 %v4439, %v4438
    %s4441 = scalar_lea.vmem %s6, 256
    %v4442 = vld [vmem:[%s4441] sm:$0xff]
    %v4443 = vld [vmem:[%s4441 + $0x8] sm:$0xff]
    %v4444 = vld [vmem:[%s4441 + $0x10] sm:$0xff]
    %v4445 = vld [vmem:[%s4441 + $0x18] sm:$0xff]
    %v4446 = vld [vmem:[%s4441 + $0x20] sm:$0xff]
    %v4447 = vld [vmem:[%s4441 + $0x28] sm:$0xff]
    %v4448 = vld [vmem:[%s4441 + $0x30] sm:$0xff]
    %v4449 = vld [vmem:[%s4441 + $0x38] sm:$0xff]
    %v4450 = vld [vmem:[%s4441 + $0x40] sm:$0xff]
    %v4451 = vld [vmem:[%s4441 + $0x48] sm:$0xff]
    %v4452 = vld [vmem:[%s4441 + $0x50] sm:$0xff]
    %v4453 = vld [vmem:[%s4441 + $0x58] sm:$0xff]
    %v4454 = vld [vmem:[%s4441 + $0x60] sm:$0xff]
    %v4455 = vld [vmem:[%s4441 + $0x68] sm:$0xff]
    %v4456 = vld [vmem:[%s4441 + $0x70] sm:$0xff]
    %v4457 = vld [vmem:[%s4441 + $0x78] sm:$0xff]
    %v4458 = vld [vmem:[%s4441 + $0x80] sm:$0xff]
    %v4459 = vld [vmem:[%s4441 + $0x88] sm:$0xff]
    %v4460 = vld [vmem:[%s4441 + $0x90] sm:$0xff]
    %v4461 = vld [vmem:[%s4441 + $0x98] sm:$0xff]
    %v4462 = vld [vmem:[%s4441 + $0xa0] sm:$0xff]
    %v4463 = vld [vmem:[%s4441 + $0xa8] sm:$0xff]
    %v4464 = vld [vmem:[%s4441 + $0xb0] sm:$0xff]
    %v4465 = vld [vmem:[%s4441 + $0xb8] sm:$0xff]
    %v4466 = vld [vmem:[%s4441 + $0xc0] sm:$0xff]
    %v4467 = vld [vmem:[%s4441 + $0xc8] sm:$0xff]
    %v4468 = vld [vmem:[%s4441 + $0xd0] sm:$0xff]
    %v4469 = vld [vmem:[%s4441 + $0xd8] sm:$0xff]
    %v4470 = vld [vmem:[%s4441 + $0xe0] sm:$0xff]
    %v4471 = vld [vmem:[%s4441 + $0xe8] sm:$0xff]
    %v4472 = vld [vmem:[%s4441 + $0xf0] sm:$0xff]
    %v4473 = vld [vmem:[%s4441 + $0xf8] sm:$0xff]
    %s4474 = scalar_lea.vmem %s7, 16
    %v4475 = vld [vmem:[%s4474] sm:$0xff]
    %v4476 = vld [vmem:[%s4474 + $0x8] sm:$0xff]
    %v4479 = vlaneseq
    %v4480 = vshrl.u32 %v4479, 7
    %v4481 = vsub.s32 0, %v4480
    %v4482 = vrot.slane %v4475, %v4481
    %v4483 = vlaneseq
    %v4484 = vshrl.u32 %v4483, 7
    %v4485 = vsub.s32 1, %v4484
    %v4486 = vrot.slane %v4475, %v4485
    %v4487 = vlaneseq
    %v4488 = vshrl.u32 %v4487, 7
    %v4489 = vsub.s32 2, %v4488
    %v4490 = vrot.slane %v4475, %v4489
    %v4491 = vlaneseq
    %v4492 = vshrl.u32 %v4491, 7
    %v4493 = vsub.s32 3, %v4492
    %v4494 = vrot.slane %v4475, %v4493
    %v4495 = vlaneseq
    %v4496 = vshrl.u32 %v4495, 7
    %v4497 = vsub.s32 4, %v4496
    %v4498 = vrot.slane %v4475, %v4497
    %v4499 = vlaneseq
    %v4500 = vshrl.u32 %v4499, 7
    %v4501 = vsub.s32 5, %v4500
    %v4502 = vrot.slane %v4475, %v4501
    %v4503 = vlaneseq
    %v4504 = vshrl.u32 %v4503, 7
    %v4505 = vsub.s32 6, %v4504
    %v4506 = vrot.slane %v4475, %v4505
    %v4507 = vlaneseq
    %v4508 = vshrl.u32 %v4507, 7
    %v4509 = vsub.s32 7, %v4508
    %v4510 = vrot.slane %v4475, %v4509
    %v4511 = vlaneseq
    %v4512 = vshrl.u32 %v4511, 7
    %v4513 = vsub.s32 0, %v4512
    %v4514 = vrot.slane %v4476, %v4513
    %v4515 = vlaneseq
    %v4516 = vshrl.u32 %v4515, 7
    %v4517 = vsub.s32 1, %v4516
    %v4518 = vrot.slane %v4476, %v4517
    %v4519 = vlaneseq
    %v4520 = vshrl.u32 %v4519, 7
    %v4521 = vsub.s32 2, %v4520
    %v4522 = vrot.slane %v4476, %v4521
    %v4523 = vlaneseq
    %v4524 = vshrl.u32 %v4523, 7
    %v4525 = vsub.s32 3, %v4524
    %v4526 = vrot.slane %v4476, %v4525
    %v4527 = vlaneseq
    %v4528 = vshrl.u32 %v4527, 7
    %v4529 = vsub.s32 4, %v4528
    %v4530 = vrot.slane %v4476, %v4529
    %v4531 = vlaneseq
    %v4532 = vshrl.u32 %v4531, 7
    %v4533 = vsub.s32 5, %v4532
    %v4534 = vrot.slane %v4476, %v4533
    %v4535 = vlaneseq
    %v4536 = vshrl.u32 %v4535, 7
    %v4537 = vsub.s32 6, %v4536
    %v4538 = vrot.slane %v4476, %v4537
    %v4539 = vlaneseq
    %v4540 = vshrl.u32 %v4539, 7
    %v4541 = vsub.s32 7, %v4540
    %v4542 = vrot.slane %v4476, %v4541
    %v4591 = vunpack.c.l.b16 %v4442
    %v4592 = vunpack.c.h.b16 %v4442
    %v4593 = vunpack.c.l.b16 %v4443
    %v4594 = vunpack.c.h.b16 %v4443
    %v4595 = vunpack.c.l.b16 %v4444
    %v4596 = vunpack.c.h.b16 %v4444
    %v4597 = vunpack.c.l.b16 %v4445
    %v4598 = vunpack.c.h.b16 %v4445
    %v4599 = vunpack.c.l.b16 %v4446
    %v4600 = vunpack.c.h.b16 %v4446
    %v4601 = vunpack.c.l.b16 %v4447
    %v4602 = vunpack.c.h.b16 %v4447
    %v4603 = vunpack.c.l.b16 %v4448
    %v4604 = vunpack.c.h.b16 %v4448
    %v4605 = vunpack.c.l.b16 %v4449
    %v4606 = vunpack.c.h.b16 %v4449
    %v4607 = vunpack.c.l.b16 %v4450
    %v4608 = vunpack.c.h.b16 %v4450
    %v4609 = vunpack.c.l.b16 %v4451
    %v4610 = vunpack.c.h.b16 %v4451
    %v4611 = vunpack.c.l.b16 %v4452
    %v4612 = vunpack.c.h.b16 %v4452
    %v4613 = vunpack.c.l.b16 %v4453
    %v4614 = vunpack.c.h.b16 %v4453
    %v4615 = vunpack.c.l.b16 %v4454
    %v4616 = vunpack.c.h.b16 %v4454
    %v4617 = vunpack.c.l.b16 %v4455
    %v4618 = vunpack.c.h.b16 %v4455
    %v4619 = vunpack.c.l.b16 %v4456
    %v4620 = vunpack.c.h.b16 %v4456
    %v4621 = vunpack.c.l.b16 %v4457
    %v4622 = vunpack.c.h.b16 %v4457
    %v4623 = vunpack.c.l.b16 %v4458
    %v4624 = vunpack.c.h.b16 %v4458
    %v4625 = vunpack.c.l.b16 %v4459
    %v4626 = vunpack.c.h.b16 %v4459
    %v4627 = vunpack.c.l.b16 %v4460
    %v4628 = vunpack.c.h.b16 %v4460
    %v4629 = vunpack.c.l.b16 %v4461
    %v4630 = vunpack.c.h.b16 %v4461
    %v4631 = vunpack.c.l.b16 %v4462
    %v4632 = vunpack.c.h.b16 %v4462
    %v4633 = vunpack.c.l.b16 %v4463
    %v4634 = vunpack.c.h.b16 %v4463
    %v4635 = vunpack.c.l.b16 %v4464
    %v4636 = vunpack.c.h.b16 %v4464
    %v4637 = vunpack.c.l.b16 %v4465
    %v4638 = vunpack.c.h.b16 %v4465
    %v4639 = vunpack.c.l.b16 %v4466
    %v4640 = vunpack.c.h.b16 %v4466
    %v4641 = vunpack.c.l.b16 %v4467
    %v4642 = vunpack.c.h.b16 %v4467
    %v4643 = vunpack.c.l.b16 %v4468
    %v4644 = vunpack.c.h.b16 %v4468
    %v4645 = vunpack.c.l.b16 %v4469
    %v4646 = vunpack.c.h.b16 %v4469
    %v4647 = vunpack.c.l.b16 %v4470
    %v4648 = vunpack.c.h.b16 %v4470
    %v4649 = vunpack.c.l.b16 %v4471
    %v4650 = vunpack.c.h.b16 %v4471
    %v4651 = vunpack.c.l.b16 %v4472
    %v4652 = vunpack.c.h.b16 %v4472
    %v4653 = vunpack.c.l.b16 %v4473
    %v4654 = vunpack.c.h.b16 %v4473
    %v4655 = vpack.c.b16 %v4607, %v4591
    %v4656 = vpack.c.b16 %v4608, %v4592
    %v4657 = vpack.c.b16 %v4609, %v4593
    %v4658 = vpack.c.b16 %v4610, %v4594
    %v4659 = vpack.c.b16 %v4611, %v4595
    %v4660 = vpack.c.b16 %v4612, %v4596
    %v4661 = vpack.c.b16 %v4613, %v4597
    %v4662 = vpack.c.b16 %v4614, %v4598
    %v4663 = vpack.c.b16 %v4615, %v4599
    %v4664 = vpack.c.b16 %v4616, %v4600
    %v4665 = vpack.c.b16 %v4617, %v4601
    %v4666 = vpack.c.b16 %v4618, %v4602
    %v4667 = vpack.c.b16 %v4619, %v4603
    %v4668 = vpack.c.b16 %v4620, %v4604
    %v4669 = vpack.c.b16 %v4621, %v4605
    %v4670 = vpack.c.b16 %v4622, %v4606
    %v4671 = vpack.c.b16 %v4639, %v4623
    %v4672 = vpack.c.b16 %v4640, %v4624
    %v4673 = vpack.c.b16 %v4641, %v4625
    %v4674 = vpack.c.b16 %v4642, %v4626
    %v4675 = vpack.c.b16 %v4643, %v4627
    %v4676 = vpack.c.b16 %v4644, %v4628
    %v4677 = vpack.c.b16 %v4645, %v4629
    %v4678 = vpack.c.b16 %v4646, %v4630
    %v4679 = vpack.c.b16 %v4647, %v4631
    %v4680 = vpack.c.b16 %v4648, %v4632
    %v4681 = vpack.c.b16 %v4649, %v4633
    %v4682 = vpack.c.b16 %v4650, %v4634
    %v4683 = vpack.c.b16 %v4651, %v4635
    %v4684 = vpack.c.b16 %v4652, %v4636
    %v4685 = vpack.c.b16 %v4653, %v4637
    %v4686 = vpack.c.b16 %v4654, %v4638
    %v4720 = vsel %vm143, %v4440, 0
    %4722 = vmatprep.subr.bf16.mxu0 %v4656
    %4723 = vmatpush1.bf16.msra.mxu0 %v4655
    %4724 = vmatprep.subr.bf16.mxu0 %v4672
    %4725 = vmatpush1.bf16.msra.mxu0 %v4671
    %4726 = vmatprep.subr.bf16.mxu0 0
    %4727 = vmatpush1.bf16.msra.mxu0 0
    %4728 = vmatprep.subr.bf16.mxu0 0
    %4729 = vmatpush1.bf16.msra.mxu0 0
    %4730 = vmatprep.subr.bf16.mxu0 0
    %4731 = vmatpush1.bf16.msra.mxu0 0
    %4732 = vmatprep.subr.bf16.mxu0 0
    %4733 = vmatpush1.bf16.msra.mxu0 0
    %4734 = vmatprep.subr.bf16.mxu0 0
    %4735 = vmatpush1.bf16.msra.mxu0 0
    %4736 = vmatprep.subr.bf16.mxu0 0
    %4737 = vmatpush1.bf16.msra.mxu0 0
    %4738 = vmatprep.subr.bf16.mxu0 0
    %4739 = vmatpush1.bf16.msra.mxu0 0
    %4740 = vmatprep.subr.bf16.mxu0 0
    %4741 = vmatpush1.bf16.msra.mxu0 0
    %4742 = vmatprep.subr.bf16.mxu0 0
    %4743 = vmatpush1.bf16.msra.mxu0 0
    %4744 = vmatprep.subr.bf16.mxu0 0
    %4745 = vmatpush1.bf16.msra.mxu0 0
    %4746 = vmatprep.subr.bf16.mxu0 0
    %4747 = vmatpush1.bf16.msra.mxu0 0
    %4748 = vmatprep.subr.bf16.mxu0 0
    %4749 = vmatpush1.bf16.msra.mxu0 0
    %4750 = vmatprep.subr.bf16.mxu0 0
    %4751 = vmatpush1.bf16.msra.mxu0 0
    %4752 = vmatprep.subr.bf16.mxu0 0
    %4753 = vmatpush1.bf16.msra.mxu0 0
    %4754 = vmatprep.mubr.bf16.mxu0 0
    %4755 = vmatmul.mubr.bf16.gmra.mrb[0].mxu0 %v4720
    %v4756 = vpop.f32.mrb[0].mxu0
    %v4757 = vadd.f32 %v4482, %v4756
    %v4758 = vpop.f32.mrb[0].mxu0
    %v4759 = vadd.f32 %v4486, %v4758
    %v4760 = vpop.f32.mrb[0].mxu0
    %v4761 = vadd.f32 %v4482, %v4760
    %v4762 = vpop.f32.mrb[0].mxu0
    %v4763 = vadd.f32 %v4486, %v4762
    %4764 = vdwg.mxu0
    %4765 = vmatprep.subr.bf16.mxu0 %v4658
    %4766 = vmatpush1.bf16.msra.mxu0 %v4657
    %4767 = vmatprep.subr.bf16.mxu0 %v4674
    %4768 = vmatpush1.bf16.msra.mxu0 %v4673
    %4769 = vmatprep.subr.bf16.mxu0 0
    %4770 = vmatpush1.bf16.msra.mxu0 0
    %4771 = vmatprep.subr.bf16.mxu0 0
    %4772 = vmatpush1.bf16.msra.mxu0 0
    %4773 = vmatprep.subr.bf16.mxu0 0
    %4774 = vmatpush1.bf16.msra.mxu0 0
    %4775 = vmatprep.subr.bf16.mxu0 0
    %4776 = vmatpush1.bf16.msra.mxu0 0
    %4777 = vmatprep.subr.bf16.mxu0 0
    %4778 = vmatpush1.bf16.msra.mxu0 0
    %4779 = vmatprep.subr.bf16.mxu0 0
    %4780 = vmatpush1.bf16.msra.mxu0 0
    %4781 = vmatprep.subr.bf16.mxu0 0
    %4782 = vmatpush1.bf16.msra.mxu0 0
    %4783 = vmatprep.subr.bf16.mxu0 0
    %4784 = vmatpush1.bf16.msra.mxu0 0
    %4785 = vmatprep.subr.bf16.mxu0 0
    %4786 = vmatpush1.bf16.msra.mxu0 0
    %4787 = vmatprep.subr.bf16.mxu0 0
    %4788 = vmatpush1.bf16.msra.mxu0 0
    %4789 = vmatprep.subr.bf16.mxu0 0
    %4790 = vmatpush1.bf16.msra.mxu0 0
    %4791 = vmatprep.subr.bf16.mxu0 0
    %4792 = vmatpush1.bf16.msra.mxu0 0
    %4793 = vmatprep.subr.bf16.mxu0 0
    %4794 = vmatpush1.bf16.msra.mxu0 0
    %4795 = vmatprep.subr.bf16.mxu0 0
    %4796 = vmatpush1.bf16.msra.mxu0 0
    %4797 = vmatprep.mubr.bf16.mxu0 0
    %4798 = vmatmul.mubr.bf16.gmra.mrb[0].mxu0 %v4720
    %v4799 = vpop.f32.mrb[0].mxu0
    %v4800 = vadd.f32 %v4490, %v4799
    %v4801 = vpop.f32.mrb[0].mxu0
    %v4802 = vadd.f32 %v4494, %v4801
    %v4803 = vpop.f32.mrb[0].mxu0
    %v4804 = vadd.f32 %v4490, %v4803
    %v4805 = vpop.f32.mrb[0].mxu0
    %v4806 = vadd.f32 %v4494, %v4805
    %4807 = vdwg.mxu0
    %4808 = vmatprep.subr.bf16.mxu0 %v4660
    %4809 = vmatpush1.bf16.msra.mxu0 %v4659
    %4810 = vmatprep.subr.bf16.mxu0 %v4676
    %4811 = vmatpush1.bf16.msra.mxu0 %v4675
    %4812 = vmatprep.subr.bf16.mxu0 0
    %4813 = vmatpush1.bf16.msra.mxu0 0
    %4814 = vmatprep.subr.bf16.mxu0 0
    %4815 = vmatpush1.bf16.msra.mxu0 0
    %4816 = vmatprep.subr.bf16.mxu0 0
    %4817 = vmatpush1.bf16.msra.mxu0 0
    %4818 = vmatprep.subr.bf16.mxu0 0
    %4819 = vmatpush1.bf16.msra.mxu0 0
    %4820 = vmatprep.subr.bf16.mxu0 0
    %4821 = vmatpush1.bf16.msra.mxu0 0
    %4822 = vmatprep.subr.bf16.mxu0 0
    %4823 = vmatpush1.bf16.msra.mxu0 0
    %4824 = vmatprep.subr.bf16.mxu0 0
    %4825 = vmatpush1.bf16.msra.mxu0 0
    %4826 = vmatprep.subr.bf16.mxu0 0
    %4827 = vmatpush1.bf16.msra.mxu0 0
    %4828 = vmatprep.subr.bf16.mxu0 0
    %4829 = vmatpush1.bf16.msra.mxu0 0
    %4830 = vmatprep.subr.bf16.mxu0 0
    %4831 = vmatpush1.bf16.msra.mxu0 0
    %4832 = vmatprep.subr.bf16.mxu0 0
    %4833 = vmatpush1.bf16.msra.mxu0 0
    %4834 = vmatprep.subr.bf16.mxu0 0
    %4835 = vmatpush1.bf16.msra.mxu0 0
    %4836 = vmatprep.subr.bf16.mxu0 0
    %4837 = vmatpush1.bf16.msra.mxu0 0
    %4838 = vmatprep.subr.bf16.mxu0 0
    %4839 = vmatpush1.bf16.msra.mxu0 0
    %4840 = vmatprep.mubr.bf16.mxu0 0
    %4841 = vmatmul.mubr.bf16.gmra.mrb[0].mxu0 %v4720
    %v4842 = vpop.f32.mrb[0].mxu0
    %v4843 = vadd.f32 %v4498, %v4842
    %v4844 = vpop.f32.mrb[0].mxu0
    %v4845 = vadd.f32 %v4502, %v4844
    %v4846 = vpop.f32.mrb[0].mxu0
    %v4847 = vadd.f32 %v4498, %v4846
    %v4848 = vpop.f32.mrb[0].mxu0
    %v4849 = vadd.f32 %v4502, %v4848
    %4850 = vdwg.mxu0
    %4851 = vmatprep.subr.bf16.mxu0 %v4662
    %4852 = vmatpush1.bf16.msra.mxu0 %v4661
    %4853 = vmatprep.subr.bf16.mxu0 %v4678
    %4854 = vmatpush1.bf16.msra.mxu0 %v4677
    %4855 = vmatprep.subr.bf16.mxu0 0
    %4856 = vmatpush1.bf16.msra.mxu0 0
    %4857 = vmatprep.subr.bf16.mxu0 0
    %4858 = vmatpush1.bf16.msra.mxu0 0
    %4859 = vmatprep.subr.bf16.mxu0 0
    %4860 = vmatpush1.bf16.msra.mxu0 0
    %4861 = vmatprep.subr.bf16.mxu0 0
    %4862 = vmatpush1.bf16.msra.mxu0 0
    %4863 = vmatprep.subr.bf16.mxu0 0
    %4864 = vmatpush1.bf16.msra.mxu0 0
    %4865 = vmatprep.subr.bf16.mxu0 0
    %4866 = vmatpush1.bf16.msra.mxu0 0
    %4867 = vmatprep.subr.bf16.mxu0 0
    %4868 = vmatpush1.bf16.msra.mxu0 0
    %4869 = vmatprep.subr.bf16.mxu0 0
    %4870 = vmatpush1.bf16.msra.mxu0 0
    %4871 = vmatprep.subr.bf16.mxu0 0
    %4872 = vmatpush1.bf16.msra.mxu0 0
    %4873 = vmatprep.subr.bf16.mxu0 0
    %4874 = vmatpush1.bf16.msra.mxu0 0
    %4875 = vmatprep.subr.bf16.mxu0 0
    %4876 = vmatpush1.bf16.msra.mxu0 0
    %4877 = vmatprep.subr.bf16.mxu0 0
    %4878 = vmatpush1.bf16.msra.mxu0 0
    %4879 = vmatprep.subr.bf16.mxu0 0
    %4880 = vmatpush1.bf16.msra.mxu0 0
    %4881 = vmatprep.subr.bf16.mxu0 0
    %4882 = vmatpush1.bf16.msra.mxu0 0
    %4883 = vmatprep.mubr.bf16.mxu0 0
    %4884 = vmatmul.mubr.bf16.gmra.mrb[0].mxu0 %v4720
    %v4885 = vpop.f32.mrb[0].mxu0
    %v4886 = vadd.f32 %v4506, %v4885
    %v4887 = vpop.f32.mrb[0].mxu0
    %v4888 = vadd.f32 %v4510, %v4887
    %v4889 = vpop.f32.mrb[0].mxu0
    %v4890 = vadd.f32 %v4506, %v4889
    %v4891 = vpop.f32.mrb[0].mxu0
    %v4892 = vadd.f32 %v4510, %v4891
    %4893 = vdwg.mxu0
    %4894 = vmatprep.subr.bf16.mxu0 %v4664
    %4895 = vmatpush1.bf16.msra.mxu0 %v4663
    %4896 = vmatprep.subr.bf16.mxu0 %v4680
    %4897 = vmatpush1.bf16.msra.mxu0 %v4679
    %4898 = vmatprep.subr.bf16.mxu0 0
    %4899 = vmatpush1.bf16.msra.mxu0 0
    %4900 = vmatprep.subr.bf16.mxu0 0
    %4901 = vmatpush1.bf16.msra.mxu0 0
    %4902 = vmatprep.subr.bf16.mxu0 0
    %4903 = vmatpush1.bf16.msra.mxu0 0
    %4904 = vmatprep.subr.bf16.mxu0 0
    %4905 = vmatpush1.bf16.msra.mxu0 0
    %4906 = vmatprep.subr.bf16.mxu0 0
    %4907 = vmatpush1.bf16.msra.mxu0 0
    %4908 = vmatprep.subr.bf16.mxu0 0
    %4909 = vmatpush1.bf16.msra.mxu0 0
    %4910 = vmatprep.subr.bf16.mxu0 0
    %4911 = vmatpush1.bf16.msra.mxu0 0
    %4912 = vmatprep.subr.bf16.mxu0 0
    %4913 = vmatpush1.bf16.msra.mxu0 0
    %4914 = vmatprep.subr.bf16.mxu0 0
    %4915 = vmatpush1.bf16.msra.mxu0 0
    %4916 = vmatprep.subr.bf16.mxu0 0
    %4917 = vmatpush1.bf16.msra.mxu0 0
    %4918 = vmatprep.subr.bf16.mxu0 0
    %4919 = vmatpush1.bf16.msra.mxu0 0
    %4920 = vmatprep.subr.bf16.mxu0 0
    %4921 = vmatpush1.bf16.msra.mxu0 0
    %4922 = vmatprep.subr.bf16.mxu0 0
    %4923 = vmatpush1.bf16.msra.mxu0 0
    %4924 = vmatprep.subr.bf16.mxu0 0
    %4925 = vmatpush1.bf16.msra.mxu0 0
    %4926 = vmatprep.mubr.bf16.mxu0 0
    %4927 = vmatmul.mubr.bf16.gmra.mrb[0].mxu0 %v4720
    %v4928 = vpop.f32.mrb[0].mxu0
    %v4929 = vadd.f32 %v4514, %v4928
    %v4930 = vpop.f32.mrb[0].mxu0
    %v4931 = vadd.f32 %v4518, %v4930
    %v4932 = vpop.f32.mrb[0].mxu0
    %v4933 = vadd.f32 %v4514, %v4932
    %v4934 = vpop.f32.mrb[0].mxu0
    %v4935 = vadd.f32 %v4518, %v4934
    %4936 = vdwg.mxu0
    %4937 = vmatprep.subr.bf16.mxu0 %v4666
    %4938 = vmatpush1.bf16.msra.mxu0 %v4665
    %4939 = vmatprep.subr.bf16.mxu0 %v4682
    %4940 = vmatpush1.bf16.msra.mxu0 %v4681
    %4941 = vmatprep.subr.bf16.mxu0 0
    %4942 = vmatpush1.bf16.msra.mxu0 0
    %4943 = vmatprep.subr.bf16.mxu0 0
    %4944 = vmatpush1.bf16.msra.mxu0 0
    %4945 = vmatprep.subr.bf16.mxu0 0
    %4946 = vmatpush1.bf16.msra.mxu0 0
    %4947 = vmatprep.subr.bf16.mxu0 0
    %4948 = vmatpush1.bf16.msra.mxu0 0
    %4949 = vmatprep.subr.bf16.mxu0 0
    %4950 = vmatpush1.bf16.msra.mxu0 0
    %4951 = vmatprep.subr.bf16.mxu0 0
    %4952 = vmatpush1.bf16.msra.mxu0 0
    %4953 = vmatprep.subr.bf16.mxu0 0
    %4954 = vmatpush1.bf16.msra.mxu0 0
    %4955 = vmatprep.subr.bf16.mxu0 0
    %4956 = vmatpush1.bf16.msra.mxu0 0
    %4957 = vmatprep.subr.bf16.mxu0 0
    %4958 = vmatpush1.bf16.msra.mxu0 0
    %4959 = vmatprep.subr.bf16.mxu0 0
    %4960 = vmatpush1.bf16.msra.mxu0 0
    %4961 = vmatprep.subr.bf16.mxu0 0
    %4962 = vmatpush1.bf16.msra.mxu0 0
    %4963 = vmatprep.subr.bf16.mxu0 0
    %4964 = vmatpush1.bf16.msra.mxu0 0
    %4965 = vmatprep.subr.bf16.mxu0 0
    %4966 = vmatpush1.bf16.msra.mxu0 0
    %4967 = vmatprep.subr.bf16.mxu0 0
    %4968 = vmatpush1.bf16.msra.mxu0 0
    %4969 = vmatprep.mubr.bf16.mxu0 0
    %4970 = vmatmul.mubr.bf16.gmra.mrb[0].mxu0 %v4720
    %v4971 = vpop.f32.mrb[0].mxu0
    %v4972 = vadd.f32 %v4522, %v4971
    %v4973 = vpop.f32.mrb[0].mxu0
    %v4974 = vadd.f32 %v4526, %v4973
    %v4975 = vpop.f32.mrb[0].mxu0
    %v4976 = vadd.f32 %v4522, %v4975
    %v4977 = vpop.f32.mrb[0].mxu0
    %v4978 = vadd.f32 %v4526, %v4977
    %4979 = vdwg.mxu0
    %4980 = vmatprep.subr.bf16.mxu0 %v4668
    %4981 = vmatpush1.bf16.msra.mxu0 %v4667
    %4982 = vmatprep.subr.bf16.mxu0 %v4684
    %4983 = vmatpush1.bf16.msra.mxu0 %v4683
    %4984 = vmatprep.subr.bf16.mxu0 0
    %4985 = vmatpush1.bf16.msra.mxu0 0
    %4986 = vmatprep.subr.bf16.mxu0 0
    %4987 = vmatpush1.bf16.msra.mxu0 0
    %4988 = vmatprep.subr.bf16.mxu0 0
    %4989 = vmatpush1.bf16.msra.mxu0 0
    %4990 = vmatprep.subr.bf16.mxu0 0
    %4991 = vmatpush1.bf16.msra.mxu0 0
    %4992 = vmatprep.subr.bf16.mxu0 0
    %4993 = vmatpush1.bf16.msra.mxu0 0
    %4994 = vmatprep.subr.bf16.mxu0 0
    %4995 = vmatpush1.bf16.msra.mxu0 0
    %4996 = vmatprep.subr.bf16.mxu0 0
    %4997 = vmatpush1.bf16.msra.mxu0 0
    %4998 = vmatprep.subr.bf16.mxu0 0
    %4999 = vmatpush1.bf16.msra.mxu0 0
    %5000 = vmatprep.subr.bf16.mxu0 0
    %5001 = vmatpush1.bf16.msra.mxu0 0
    %5002 = vmatprep.subr.bf16.mxu0 0
    %5003 = vmatpush1.bf16.msra.mxu0 0
    %5004 = vmatprep.subr.bf16.mxu0 0
    %5005 = vmatpush1.bf16.msra.mxu0 0
    %5006 = vmatprep.subr.bf16.mxu0 0
    %5007 = vmatpush1.bf16.msra.mxu0 0
    %5008 = vmatprep.subr.bf16.mxu0 0
    %5009 = vmatpush1.bf16.msra.mxu0 0
    %5010 = vmatprep.subr.bf16.mxu0 0
    %5011 = vmatpush1.bf16.msra.mxu0 0
    %5012 = vmatprep.mubr.bf16.mxu0 0
    %5013 = vmatmul.mubr.bf16.gmra.mrb[0].mxu0 %v4720
    %v5014 = vpop.f32.mrb[0].mxu0
    %v5015 = vadd.f32 %v4530, %v5014
    %v5016 = vpop.f32.mrb[0].mxu0
    %v5017 = vadd.f32 %v4534, %v5016
    %v5018 = vpop.f32.mrb[0].mxu0
    %v5019 = vadd.f32 %v4530, %v5018
    %v5020 = vpop.f32.mrb[0].mxu0
    %v5021 = vadd.f32 %v4534, %v5020
    %5022 = vdwg.mxu0
    %5023 = vmatprep.subr.bf16.mxu0 %v4670
    %5024 = vmatpush1.bf16.msra.mxu0 %v4669
    %5025 = vmatprep.subr.bf16.mxu0 %v4686
    %5026 = vmatpush1.bf16.msra.mxu0 %v4685
    %5027 = vmatprep.subr.bf16.mxu0 0
    %5028 = vmatpush1.bf16.msra.mxu0 0
    %5029 = vmatprep.subr.bf16.mxu0 0
    %5030 = vmatpush1.bf16.msra.mxu0 0
    %5031 = vmatprep.subr.bf16.mxu0 0
    %5032 = vmatpush1.bf16.msra.mxu0 0
    %5033 = vmatprep.subr.bf16.mxu0 0
    %5034 = vmatpush1.bf16.msra.mxu0 0
    %5035 = vmatprep.subr.bf16.mxu0 0
    %5036 = vmatpush1.bf16.msra.mxu0 0
    %5037 = vmatprep.subr.bf16.mxu0 0
    %5038 = vmatpush1.bf16.msra.mxu0 0
    %5039 = vmatprep.subr.bf16.mxu0 0
    %5040 = vmatpush1.bf16.msra.mxu0 0
    %5041 = vmatprep.subr.bf16.mxu0 0
    %5042 = vmatpush1.bf16.msra.mxu0 0
    %5043 = vmatprep.subr.bf16.mxu0 0
    %5044 = vmatpush1.bf16.msra.mxu0 0
    %5045 = vmatprep.subr.bf16.mxu0 0
    %5046 = vmatpush1.bf16.msra.mxu0 0
    %5047 = vmatprep.subr.bf16.mxu0 0
    %5048 = vmatpush1.bf16.msra.mxu0 0
    %5049 = vmatprep.subr.bf16.mxu0 0
    %5050 = vmatpush1.bf16.msra.mxu0 0
    %5051 = vmatprep.subr.bf16.mxu0 0
    %5052 = vmatpush1.bf16.msra.mxu0 0
    %5053 = vmatprep.subr.bf16.mxu0 0
    %5054 = vmatpush1.bf16.msra.mxu0 0
    %5055 = vmatprep.mubr.bf16.mxu0 0
    %5056 = vmatmul.mubr.bf16.gmra.mrb[0].mxu0 %v4720
    %v5057 = vpop.f32.mrb[0].mxu0
    %v5058 = vadd.f32 %v4538, %v5057
    %v5059 = vpop.f32.mrb[0].mxu0
    %v5060 = vadd.f32 %v4542, %v5059
    %v5061 = vpop.f32.mrb[0].mxu0
    %v5062 = vadd.f32 %v4538, %v5061
    %v5063 = vpop.f32.mrb[0].mxu0
    %v5064 = vadd.f32 %v4542, %v5063
    %5065 = vdwg.mxu0
    %v5066 = vmax.f32 %v4757, 0.0
    %v5067 = vmax.f32 %v4759, 0.0
    %v5068 = vmax.f32 %v4800, 0.0
    %v5069 = vmax.f32 %v4802, 0.0
    %v5070 = vmax.f32 %v4843, 0.0
    %v5071 = vmax.f32 %v4845, 0.0
    %v5072 = vmax.f32 %v4886, 0.0
    %v5073 = vmax.f32 %v4888, 0.0
    %v5074 = vmax.f32 %v4929, 0.0
    %v5075 = vmax.f32 %v4931, 0.0
    %v5076 = vmax.f32 %v4972, 0.0
    %v5077 = vmax.f32 %v4974, 0.0
    %v5078 = vmax.f32 %v5015, 0.0
    %v5079 = vmax.f32 %v5017, 0.0
    %v5080 = vmax.f32 %v5058, 0.0
    %v5081 = vmax.f32 %v5060, 0.0
    %v5082 = vmax.f32 %v4761, 0.0
    %v5083 = vmax.f32 %v4763, 0.0
    %v5084 = vmax.f32 %v4804, 0.0
    %v5085 = vmax.f32 %v4806, 0.0
    %v5086 = vmax.f32 %v4847, 0.0
    %v5087 = vmax.f32 %v4849, 0.0
    %v5088 = vmax.f32 %v4890, 0.0
    %v5089 = vmax.f32 %v4892, 0.0
    %v5090 = vmax.f32 %v4933, 0.0
    %v5091 = vmax.f32 %v4935, 0.0
    %v5092 = vmax.f32 %v4976, 0.0
    %v5093 = vmax.f32 %v4978, 0.0
    %v5094 = vmax.f32 %v5019, 0.0
    %v5095 = vmax.f32 %v5021, 0.0
    %v5096 = vmax.f32 %v5062, 0.0
    %v5097 = vmax.f32 %v5064, 0.0
    %v5098 = vpack.c.bf16 %v5082, %v5066
    %v5099 = vpack.c.bf16 %v5083, %v5067
    %v5100 = vpack.c.bf16 %v5084, %v5068
    %v5101 = vpack.c.bf16 %v5085, %v5069
    %v5102 = vpack.c.bf16 %v5086, %v5070
    %v5103 = vpack.c.bf16 %v5087, %v5071
    %v5104 = vpack.c.bf16 %v5088, %v5072
    %v5105 = vpack.c.bf16 %v5089, %v5073
    %v5106 = vpack.c.bf16 %v5090, %v5074
    %v5107 = vpack.c.bf16 %v5091, %v5075
    %v5108 = vpack.c.bf16 %v5092, %v5076
    %v5109 = vpack.c.bf16 %v5093, %v5077
    %v5110 = vpack.c.bf16 %v5094, %v5078
    %v5111 = vpack.c.bf16 %v5095, %v5079
    %v5112 = vpack.c.bf16 %v5096, %v5080
    %v5113 = vpack.c.bf16 %v5097, %v5081
    %s5114 = scalar_lea.vmem %s8, 256
    %v5115 = vld [vmem:[%s5114] sm:$0xff]
    %v5116 = vld [vmem:[%s5114 + $0x8] sm:$0xff]
    %v5117 = vld [vmem:[%s5114 + $0x10] sm:$0xff]
    %v5118 = vld [vmem:[%s5114 + $0x18] sm:$0xff]
    %v5119 = vld [vmem:[%s5114 + $0x20] sm:$0xff]
    %v5120 = vld [vmem:[%s5114 + $0x28] sm:$0xff]
    %v5121 = vld [vmem:[%s5114 + $0x30] sm:$0xff]
    %v5122 = vld [vmem:[%s5114 + $0x38] sm:$0xff]
    %v5123 = vld [vmem:[%s5114 + $0x40] sm:$0xff]
    %v5124 = vld [vmem:[%s5114 + $0x48] sm:$0xff]
    %v5125 = vld [vmem:[%s5114 + $0x50] sm:$0xff]
    %v5126 = vld [vmem:[%s5114 + $0x58] sm:$0xff]
    %v5127 = vld [vmem:[%s5114 + $0x60] sm:$0xff]
    %v5128 = vld [vmem:[%s5114 + $0x68] sm:$0xff]
    %v5129 = vld [vmem:[%s5114 + $0x70] sm:$0xff]
    %v5130 = vld [vmem:[%s5114 + $0x78] sm:$0xff]
    %v5131 = vld [vmem:[%s5114 + $0x80] sm:$0xff]
    %v5132 = vld [vmem:[%s5114 + $0x88] sm:$0xff]
    %v5133 = vld [vmem:[%s5114 + $0x90] sm:$0xff]
    %v5134 = vld [vmem:[%s5114 + $0x98] sm:$0xff]
    %v5135 = vld [vmem:[%s5114 + $0xa0] sm:$0xff]
    %v5136 = vld [vmem:[%s5114 + $0xa8] sm:$0xff]
    %v5137 = vld [vmem:[%s5114 + $0xb0] sm:$0xff]
    %v5138 = vld [vmem:[%s5114 + $0xb8] sm:$0xff]
    %v5139 = vld [vmem:[%s5114 + $0xc0] sm:$0xff]
    %v5140 = vld [vmem:[%s5114 + $0xc8] sm:$0xff]
    %v5141 = vld [vmem:[%s5114 + $0xd0] sm:$0xff]
    %v5142 = vld [vmem:[%s5114 + $0xd8] sm:$0xff]
    %v5143 = vld [vmem:[%s5114 + $0xe0] sm:$0xff]
    %v5144 = vld [vmem:[%s5114 + $0xe8] sm:$0xff]
    %v5145 = vld [vmem:[%s5114 + $0xf0] sm:$0xff]
    %v5146 = vld [vmem:[%s5114 + $0xf8] sm:$0xff]
    %s5147 = scalar_lea.vmem %s9, 7
    %v5148 = vld [vmem:[%s5147] sm:$0x1]
    %v5150 = vlaneseq
    %v5151 = vshrl.u32 %v5150, 7
    %v5152 = vsub.s32 0, %v5151
    %v5153 = vrot.slane %v5148, %v5152
    %v5187 = vunpack.c.l.b16 %v5115
    %v5188 = vunpack.c.h.b16 %v5115
    %v5189 = vunpack.c.l.b16 %v5116
    %v5190 = vunpack.c.h.b16 %v5116
    %v5191 = vunpack.c.l.b16 %v5117
    %v5192 = vunpack.c.h.b16 %v5117
    %v5193 = vunpack.c.l.b16 %v5118
    %v5194 = vunpack.c.h.b16 %v5118
    %v5195 = vunpack.c.l.b16 %v5119
    %v5196 = vunpack.c.h.b16 %v5119
    %v5197 = vunpack.c.l.b16 %v5120
    %v5198 = vunpack.c.h.b16 %v5120
    %v5199 = vunpack.c.l.b16 %v5121
    %v5200 = vunpack.c.h.b16 %v5121
    %v5201 = vunpack.c.l.b16 %v5122
    %v5202 = vunpack.c.h.b16 %v5122
    %v5203 = vunpack.c.l.b16 %v5123
    %v5204 = vunpack.c.h.b16 %v5123
    %v5205 = vunpack.c.l.b16 %v5124
    %v5206 = vunpack.c.h.b16 %v5124
    %v5207 = vunpack.c.l.b16 %v5125
    %v5208 = vunpack.c.h.b16 %v5125
    %v5209 = vunpack.c.l.b16 %v5126
    %v5210 = vunpack.c.h.b16 %v5126
    %v5211 = vunpack.c.l.b16 %v5127
    %v5212 = vunpack.c.h.b16 %v5127
    %v5213 = vunpack.c.l.b16 %v5128
    %v5214 = vunpack.c.h.b16 %v5128
    %v5215 = vunpack.c.l.b16 %v5129
    %v5216 = vunpack.c.h.b16 %v5129
    %v5217 = vunpack.c.l.b16 %v5130
    %v5218 = vunpack.c.h.b16 %v5130
    %v5219 = vunpack.c.l.b16 %v5131
    %v5220 = vunpack.c.h.b16 %v5131
    %v5221 = vunpack.c.l.b16 %v5132
    %v5222 = vunpack.c.h.b16 %v5132
    %v5223 = vunpack.c.l.b16 %v5133
    %v5224 = vunpack.c.h.b16 %v5133
    %v5225 = vunpack.c.l.b16 %v5134
    %v5226 = vunpack.c.h.b16 %v5134
    %v5227 = vunpack.c.l.b16 %v5135
    %v5228 = vunpack.c.h.b16 %v5135
    %v5229 = vunpack.c.l.b16 %v5136
    %v5230 = vunpack.c.h.b16 %v5136
    %v5231 = vunpack.c.l.b16 %v5137
    %v5232 = vunpack.c.h.b16 %v5137
    %v5233 = vunpack.c.l.b16 %v5138
    %v5234 = vunpack.c.h.b16 %v5138
    %v5235 = vunpack.c.l.b16 %v5139
    %v5236 = vunpack.c.h.b16 %v5139
    %v5237 = vunpack.c.l.b16 %v5140
    %v5238 = vunpack.c.h.b16 %v5140
    %v5239 = vunpack.c.l.b16 %v5141
    %v5240 = vunpack.c.h.b16 %v5141
    %v5241 = vunpack.c.l.b16 %v5142
    %v5242 = vunpack.c.h.b16 %v5142
    %v5243 = vunpack.c.l.b16 %v5143
    %v5244 = vunpack.c.h.b16 %v5143
    %v5245 = vunpack.c.l.b16 %v5144
    %v5246 = vunpack.c.h.b16 %v5144
    %v5247 = vunpack.c.l.b16 %v5145
    %v5248 = vunpack.c.h.b16 %v5145
    %v5249 = vunpack.c.l.b16 %v5146
    %v5250 = vunpack.c.h.b16 %v5146
    %v5251 = vpack.c.b16 %v5203, %v5187
    %v5252 = vpack.c.b16 %v5204, %v5188
    %v5253 = vpack.c.b16 %v5205, %v5189
    %v5254 = vpack.c.b16 %v5206, %v5190
    %v5255 = vpack.c.b16 %v5207, %v5191
    %v5256 = vpack.c.b16 %v5208, %v5192
    %v5257 = vpack.c.b16 %v5209, %v5193
    %v5258 = vpack.c.b16 %v5210, %v5194
    %v5259 = vpack.c.b16 %v5211, %v5195
    %v5260 = vpack.c.b16 %v5212, %v5196
    %v5261 = vpack.c.b16 %v5213, %v5197
    %v5262 = vpack.c.b16 %v5214, %v5198
    %v5263 = vpack.c.b16 %v5215, %v5199
    %v5264 = vpack.c.b16 %v5216, %v5200
    %v5265 = vpack.c.b16 %v5217, %v5201
    %v5266 = vpack.c.b16 %v5218, %v5202
    %v5267 = vpack.c.b16 %v5235, %v5219
    %v5268 = vpack.c.b16 %v5236, %v5220
    %v5269 = vpack.c.b16 %v5237, %v5221
    %v5270 = vpack.c.b16 %v5238, %v5222
    %v5271 = vpack.c.b16 %v5239, %v5223
    %v5272 = vpack.c.b16 %v5240, %v5224
    %v5273 = vpack.c.b16 %v5241, %v5225
    %v5274 = vpack.c.b16 %v5242, %v5226
    %v5275 = vpack.c.b16 %v5243, %v5227
    %v5276 = vpack.c.b16 %v5244, %v5228
    %v5277 = vpack.c.b16 %v5245, %v5229
    %v5278 = vpack.c.b16 %v5246, %v5230
    %v5279 = vpack.c.b16 %v5247, %v5231
    %v5280 = vpack.c.b16 %v5248, %v5232
    %v5281 = vpack.c.b16 %v5249, %v5233
    %v5282 = vpack.c.b16 %v5250, %v5234
    %5315 = vmatprep.subr.bf16.mxu0 %v5252
    %5316 = vmatpush1.bf16.xpose.msra.mxu0 %v5251
    %5317 = vmatprep.subr.bf16.mxu0 %v5268
    %5318 = vmatpush1.bf16.xpose.msra.mxu0 %v5267
    %5319 = vmatprep.subr.bf16.mxu0 0
    %5320 = vmatpush1.bf16.xpose.msra.mxu0 0
    %5321 = vmatprep.subr.bf16.mxu0 0
    %5322 = vmatpush1.bf16.xpose.msra.mxu0 0
    %5323 = vmatprep.subr.bf16.mxu0 0
    %5324 = vmatpush1.bf16.xpose.msra.mxu0 0
    %5325 = vmatprep.subr.bf16.mxu0 0
    %5326 = vmatpush1.bf16.xpose.msra.mxu0 0
    %5327 = vmatprep.subr.bf16.mxu0 0
    %5328 = vmatpush1.bf16.xpose.msra.mxu0 0
    %5329 = vmatprep.subr.bf16.mxu0 0
    %5330 = vmatpush1.bf16.xpose.msra.mxu0 0
    %5331 = vmatprep.subr.bf16.mxu0 0
    %5332 = vmatpush1.bf16.xpose.msra.mxu0 0
    %5333 = vmatprep.subr.bf16.mxu0 0
    %5334 = vmatpush1.bf16.xpose.msra.mxu0 0
    %5335 = vmatprep.subr.bf16.mxu0 0
    %5336 = vmatpush1.bf16.xpose.msra.mxu0 0
    %5337 = vmatprep.subr.bf16.mxu0 0
    %5338 = vmatpush1.bf16.xpose.msra.mxu0 0
    %5339 = vmatprep.subr.bf16.mxu0 0
    %5340 = vmatpush1.bf16.xpose.msra.mxu0 0
    %5341 = vmatprep.subr.bf16.mxu0 0
    %5342 = vmatpush1.bf16.xpose.msra.mxu0 0
    %5343 = vmatprep.subr.bf16.mxu0 0
    %5344 = vmatpush1.bf16.xpose.msra.mxu0 0
    %5345 = vmatprep.subr.bf16.mxu0 0
    %5346 = vmatpush1.bf16.xpose.msra.mxu0 0
    %5347 = vmatprep.mubr.bf16.mxu0 %v5099
    %5348 = vmatmul.mubr.bf16.gmra.mrb[0].mxu0 %v5098
    %v5349 = vpop.f32.mrb[0].mxu0
    %v5350 = vadd.f32 %v5153, %v5349
    %v5351 = vpop.f32.mrb[0].mxu0
    %v5352 = vpop.f32.mrb[0].mxu0
    %v5353 = vadd.f32 %v5153, %v5352
    %v5354 = vpop.f32.mrb[0].mxu0
    %5355 = vdwg.mxu0
    %5356 = vmatprep.subr.bf16.mxu0 %v5254
    %5357 = vmatpush1.bf16.xpose.msra.mxu0 %v5253
    %5358 = vmatprep.subr.bf16.mxu0 %v5270
    %5359 = vmatpush1.bf16.xpose.msra.mxu0 %v5269
    %5360 = vmatprep.subr.bf16.mxu0 0
    %5361 = vmatpush1.bf16.xpose.msra.mxu0 0
    %5362 = vmatprep.subr.bf16.mxu0 0
    %5363 = vmatpush1.bf16.xpose.msra.mxu0 0
    %5364 = vmatprep.subr.bf16.mxu0 0
    %5365 = vmatpush1.bf16.xpose.msra.mxu0 0
    %5366 = vmatprep.subr.bf16.mxu0 0
    %5367 = vmatpush1.bf16.xpose.msra.mxu0 0
    %5368 = vmatprep.subr.bf16.mxu0 0
    %5369 = vmatpush1.bf16.xpose.msra.mxu0 0
    %5370 = vmatprep.subr.bf16.mxu0 0
    %5371 = vmatpush1.bf16.xpose.msra.mxu0 0
    %5372 = vmatprep.subr.bf16.mxu0 0
    %5373 = vmatpush1.bf16.xpose.msra.mxu0 0
    %5374 = vmatprep.subr.bf16.mxu0 0
    %5375 = vmatpush1.bf16.xpose.msra.mxu0 0
    %5376 = vmatprep.subr.bf16.mxu0 0
    %5377 = vmatpush1.bf16.xpose.msra.mxu0 0
    %5378 = vmatprep.subr.bf16.mxu0 0
    %5379 = vmatpush1.bf16.xpose.msra.mxu0 0
    %5380 = vmatprep.subr.bf16.mxu0 0
    %5381 = vmatpush1.bf16.xpose.msra.mxu0 0
    %5382 = vmatprep.subr.bf16.mxu0 0
    %5383 = vmatpush1.bf16.xpose.msra.mxu0 0
    %5384 = vmatprep.subr.bf16.mxu0 0
    %5385 = vmatpush1.bf16.xpose.msra.mxu0 0
    %5386 = vmatprep.subr.bf16.mxu0 0
    %5387 = vmatpush1.bf16.xpose.msra.mxu0 0
    %5388 = vmatprep.mubr.bf16.mxu0 %v5101
    %5389 = vmatmul.mubr.bf16.gmra.mrb[0].mxu0 %v5100
    %v5390 = vpop.f32.mrb[0].mxu0
    %v5391 = vadd.f32 %v5350, %v5390
    %v5392 = vpop.f32.mrb[0].mxu0
    %v5393 = vpop.f32.mrb[0].mxu0
    %v5394 = vadd.f32 %v5353, %v5393
    %v5395 = vpop.f32.mrb[0].mxu0
    %5396 = vdwg.mxu0
    %5397 = vmatprep.subr.bf16.mxu0 %v5256
    %5398 = vmatpush1.bf16.xpose.msra.mxu0 %v5255
    %5399 = vmatprep.subr.bf16.mxu0 %v5272
    %5400 = vmatpush1.bf16.xpose.msra.mxu0 %v5271
    %5401 = vmatprep.subr.bf16.mxu0 0
    %5402 = vmatpush1.bf16.xpose.msra.mxu0 0
    %5403 = vmatprep.subr.bf16.mxu0 0
    %5404 = vmatpush1.bf16.xpose.msra.mxu0 0
    %5405 = vmatprep.subr.bf16.mxu0 0
    %5406 = vmatpush1.bf16.xpose.msra.mxu0 0
    %5407 = vmatprep.subr.bf16.mxu0 0
    %5408 = vmatpush1.bf16.xpose.msra.mxu0 0
    %5409 = vmatprep.subr.bf16.mxu0 0
    %5410 = vmatpush1.bf16.xpose.msra.mxu0 0
    %5411 = vmatprep.subr.bf16.mxu0 0
    %5412 = vmatpush1.bf16.xpose.msra.mxu0 0
    %5413 = vmatprep.subr.bf16.mxu0 0
    %5414 = vmatpush1.bf16.xpose.msra.mxu0 0
    %5415 = vmatprep.subr.bf16.mxu0 0
    %5416 = vmatpush1.bf16.xpose.msra.mxu0 0
    %5417 = vmatprep.subr.bf16.mxu0 0
    %5418 = vmatpush1.bf16.xpose.msra.mxu0 0
    %5419 = vmatprep.subr.bf16.mxu0 0
    %5420 = vmatpush1.bf16.xpose.msra.mxu0 0
    %5421 = vmatprep.subr.bf16.mxu0 0
    %5422 = vmatpush1.bf16.xpose.msra.mxu0 0
    %5423 = vmatprep.subr.bf16.mxu0 0
    %5424 = vmatpush1.bf16.xpose.msra.mxu0 0
    %5425 = vmatprep.subr.bf16.mxu0 0
    %5426 = vmatpush1.bf16.xpose.msra.mxu0 0
    %5427 = vmatprep.subr.bf16.mxu0 0
    %5428 = vmatpush1.bf16.xpose.msra.mxu0 0
    %5429 = vmatprep.mubr.bf16.mxu0 %v5103
    %5430 = vmatmul.mubr.bf16.gmra.mrb[0].mxu0 %v5102
    %v5431 = vpop.f32.mrb[0].mxu0
    %v5432 = vadd.f32 %v5391, %v5431
    %v5433 = vpop.f32.mrb[0].mxu0
    %v5434 = vpop.f32.mrb[0].mxu0
    %v5435 = vadd.f32 %v5394, %v5434
    %v5436 = vpop.f32.mrb[0].mxu0
    %5437 = vdwg.mxu0
    %5438 = vmatprep.subr.bf16.mxu0 %v5258
    %5439 = vmatpush1.bf16.xpose.msra.mxu0 %v5257
    %5440 = vmatprep.subr.bf16.mxu0 %v5274
    %5441 = vmatpush1.bf16.xpose.msra.mxu0 %v5273
    %5442 = vmatprep.subr.bf16.mxu0 0
    %5443 = vmatpush1.bf16.xpose.msra.mxu0 0
    %5444 = vmatprep.subr.bf16.mxu0 0
    %5445 = vmatpush1.bf16.xpose.msra.mxu0 0
    %5446 = vmatprep.subr.bf16.mxu0 0
    %5447 = vmatpush1.bf16.xpose.msra.mxu0 0
    %5448 = vmatprep.subr.bf16.mxu0 0
    %5449 = vmatpush1.bf16.xpose.msra.mxu0 0
    %5450 = vmatprep.subr.bf16.mxu0 0
    %5451 = vmatpush1.bf16.xpose.msra.mxu0 0
    %5452 = vmatprep.subr.bf16.mxu0 0
    %5453 = vmatpush1.bf16.xpose.msra.mxu0 0
    %5454 = vmatprep.subr.bf16.mxu0 0
    %5455 = vmatpush1.bf16.xpose.msra.mxu0 0
    %5456 = vmatprep.subr.bf16.mxu0 0
    %5457 = vmatpush1.bf16.xpose.msra.mxu0 0
    %5458 = vmatprep.subr.bf16.mxu0 0
    %5459 = vmatpush1.bf16.xpose.msra.mxu0 0
    %5460 = vmatprep.subr.bf16.mxu0 0
    %5461 = vmatpush1.bf16.xpose.msra.mxu0 0
    %5462 = vmatprep.subr.bf16.mxu0 0
    %5463 = vmatpush1.bf16.xpose.msra.mxu0 0
    %5464 = vmatprep.subr.bf16.mxu0 0
    %5465 = vmatpush1.bf16.xpose.msra.mxu0 0
    %5466 = vmatprep.subr.bf16.mxu0 0
    %5467 = vmatpush1.bf16.xpose.msra.mxu0 0
    %5468 = vmatprep.subr.bf16.mxu0 0
    %5469 = vmatpush1.bf16.xpose.msra.mxu0 0
    %5470 = vmatprep.mubr.bf16.mxu0 %v5105
    %5471 = vmatmul.mubr.bf16.gmra.mrb[0].mxu0 %v5104
    %v5472 = vpop.f32.mrb[0].mxu0
    %v5473 = vadd.f32 %v5432, %v5472
    %v5474 = vpop.f32.mrb[0].mxu0
    %v5475 = vpop.f32.mrb[0].mxu0
    %v5476 = vadd.f32 %v5435, %v5475
    %v5477 = vpop.f32.mrb[0].mxu0
    %5478 = vdwg.mxu0
    %5479 = vmatprep.subr.bf16.mxu0 %v5260
    %5480 = vmatpush1.bf16.xpose.msra.mxu0 %v5259
    %5481 = vmatprep.subr.bf16.mxu0 %v5276
    %5482 = vmatpush1.bf16.xpose.msra.mxu0 %v5275
    %5483 = vmatprep.subr.bf16.mxu0 0
    %5484 = vmatpush1.bf16.xpose.msra.mxu0 0
    %5485 = vmatprep.subr.bf16.mxu0 0
    %5486 = vmatpush1.bf16.xpose.msra.mxu0 0
    %5487 = vmatprep.subr.bf16.mxu0 0
    %5488 = vmatpush1.bf16.xpose.msra.mxu0 0
    %5489 = vmatprep.subr.bf16.mxu0 0
    %5490 = vmatpush1.bf16.xpose.msra.mxu0 0
    %5491 = vmatprep.subr.bf16.mxu0 0
    %5492 = vmatpush1.bf16.xpose.msra.mxu0 0
    %5493 = vmatprep.subr.bf16.mxu0 0
    %5494 = vmatpush1.bf16.xpose.msra.mxu0 0
    %5495 = vmatprep.subr.bf16.mxu0 0
    %5496 = vmatpush1.bf16.xpose.msra.mxu0 0
    %5497 = vmatprep.subr.bf16.mxu0 0
    %5498 = vmatpush1.bf16.xpose.msra.mxu0 0
    %5499 = vmatprep.subr.bf16.mxu0 0
    %5500 = vmatpush1.bf16.xpose.msra.mxu0 0
    %5501 = vmatprep.subr.bf16.mxu0 0
    %5502 = vmatpush1.bf16.xpose.msra.mxu0 0
    %5503 = vmatprep.subr.bf16.mxu0 0
    %5504 = vmatpush1.bf16.xpose.msra.mxu0 0
    %5505 = vmatprep.subr.bf16.mxu0 0
    %5506 = vmatpush1.bf16.xpose.msra.mxu0 0
    %5507 = vmatprep.subr.bf16.mxu0 0
    %5508 = vmatpush1.bf16.xpose.msra.mxu0 0
    %5509 = vmatprep.subr.bf16.mxu0 0
    %5510 = vmatpush1.bf16.xpose.msra.mxu0 0
    %5511 = vmatprep.mubr.bf16.mxu0 %v5107
    %5512 = vmatmul.mubr.bf16.gmra.mrb[0].mxu0 %v5106
    %v5513 = vpop.f32.mrb[0].mxu0
    %v5514 = vadd.f32 %v5473, %v5513
    %v5515 = vpop.f32.mrb[0].mxu0
    %v5516 = vpop.f32.mrb[0].mxu0
    %v5517 = vadd.f32 %v5476, %v5516
    %v5518 = vpop.f32.mrb[0].mxu0
    %5519 = vdwg.mxu0
    %5520 = vmatprep.subr.bf16.mxu0 %v5262
    %5521 = vmatpush1.bf16.xpose.msra.mxu0 %v5261
    %5522 = vmatprep.subr.bf16.mxu0 %v5278
    %5523 = vmatpush1.bf16.xpose.msra.mxu0 %v5277
    %5524 = vmatprep.subr.bf16.mxu0 0
    %5525 = vmatpush1.bf16.xpose.msra.mxu0 0
    %5526 = vmatprep.subr.bf16.mxu0 0
    %5527 = vmatpush1.bf16.xpose.msra.mxu0 0
    %5528 = vmatprep.subr.bf16.mxu0 0
    %5529 = vmatpush1.bf16.xpose.msra.mxu0 0
    %5530 = vmatprep.subr.bf16.mxu0 0
    %5531 = vmatpush1.bf16.xpose.msra.mxu0 0
    %5532 = vmatprep.subr.bf16.mxu0 0
    %5533 = vmatpush1.bf16.xpose.msra.mxu0 0
    %5534 = vmatprep.subr.bf16.mxu0 0
    %5535 = vmatpush1.bf16.xpose.msra.mxu0 0
    %5536 = vmatprep.subr.bf16.mxu0 0
    %5537 = vmatpush1.bf16.xpose.msra.mxu0 0
    %5538 = vmatprep.subr.bf16.mxu0 0
    %5539 = vmatpush1.bf16.xpose.msra.mxu0 0
    %5540 = vmatprep.subr.bf16.mxu0 0
    %5541 = vmatpush1.bf16.xpose.msra.mxu0 0
    %5542 = vmatprep.subr.bf16.mxu0 0
    %5543 = vmatpush1.bf16.xpose.msra.mxu0 0
    %5544 = vmatprep.subr.bf16.mxu0 0
    %5545 = vmatpush1.bf16.xpose.msra.mxu0 0
    %5546 = vmatprep.subr.bf16.mxu0 0
    %5547 = vmatpush1.bf16.xpose.msra.mxu0 0
    %5548 = vmatprep.subr.bf16.mxu0 0
    %5549 = vmatpush1.bf16.xpose.msra.mxu0 0
    %5550 = vmatprep.subr.bf16.mxu0 0
    %5551 = vmatpush1.bf16.xpose.msra.mxu0 0
    %5552 = vmatprep.mubr.bf16.mxu0 %v5109
    %5553 = vmatmul.mubr.bf16.gmra.mrb[0].mxu0 %v5108
    %v5554 = vpop.f32.mrb[0].mxu0
    %v5555 = vadd.f32 %v5514, %v5554
    %v5556 = vpop.f32.mrb[0].mxu0
    %v5557 = vpop.f32.mrb[0].mxu0
    %v5558 = vadd.f32 %v5517, %v5557
    %v5559 = vpop.f32.mrb[0].mxu0
    %5560 = vdwg.mxu0
    %5561 = vmatprep.subr.bf16.mxu0 %v5264
    %5562 = vmatpush1.bf16.xpose.msra.mxu0 %v5263
    %5563 = vmatprep.subr.bf16.mxu0 %v5280
    %5564 = vmatpush1.bf16.xpose.msra.mxu0 %v5279
    %5565 = vmatprep.subr.bf16.mxu0 0
    %5566 = vmatpush1.bf16.xpose.msra.mxu0 0
    %5567 = vmatprep.subr.bf16.mxu0 0
    %5568 = vmatpush1.bf16.xpose.msra.mxu0 0
    %5569 = vmatprep.subr.bf16.mxu0 0
    %5570 = vmatpush1.bf16.xpose.msra.mxu0 0
    %5571 = vmatprep.subr.bf16.mxu0 0
    %5572 = vmatpush1.bf16.xpose.msra.mxu0 0
    %5573 = vmatprep.subr.bf16.mxu0 0
    %5574 = vmatpush1.bf16.xpose.msra.mxu0 0
    %5575 = vmatprep.subr.bf16.mxu0 0
    %5576 = vmatpush1.bf16.xpose.msra.mxu0 0
    %5577 = vmatprep.subr.bf16.mxu0 0
    %5578 = vmatpush1.bf16.xpose.msra.mxu0 0
    %5579 = vmatprep.subr.bf16.mxu0 0
    %5580 = vmatpush1.bf16.xpose.msra.mxu0 0
    %5581 = vmatprep.subr.bf16.mxu0 0
    %5582 = vmatpush1.bf16.xpose.msra.mxu0 0
    %5583 = vmatprep.subr.bf16.mxu0 0
    %5584 = vmatpush1.bf16.xpose.msra.mxu0 0
    %5585 = vmatprep.subr.bf16.mxu0 0
    %5586 = vmatpush1.bf16.xpose.msra.mxu0 0
    %5587 = vmatprep.subr.bf16.mxu0 0
    %5588 = vmatpush1.bf16.xpose.msra.mxu0 0
    %5589 = vmatprep.subr.bf16.mxu0 0
    %5590 = vmatpush1.bf16.xpose.msra.mxu0 0
    %5591 = vmatprep.subr.bf16.mxu0 0
    %5592 = vmatpush1.bf16.xpose.msra.mxu0 0
    %5593 = vmatprep.mubr.bf16.mxu0 %v5111
    %5594 = vmatmul.mubr.bf16.gmra.mrb[0].mxu0 %v5110
    %v5595 = vpop.f32.mrb[0].mxu0
    %v5596 = vadd.f32 %v5555, %v5595
    %v5597 = vpop.f32.mrb[0].mxu0
    %v5598 = vpop.f32.mrb[0].mxu0
    %v5599 = vadd.f32 %v5558, %v5598
    %v5600 = vpop.f32.mrb[0].mxu0
    %5601 = vdwg.mxu0
    %5602 = vmatprep.subr.bf16.mxu0 %v5266
    %5603 = vmatpush1.bf16.xpose.msra.mxu0 %v5265
    %5604 = vmatprep.subr.bf16.mxu0 %v5282
    %5605 = vmatpush1.bf16.xpose.msra.mxu0 %v5281
    %5606 = vmatprep.subr.bf16.mxu0 0
    %5607 = vmatpush1.bf16.xpose.msra.mxu0 0
    %5608 = vmatprep.subr.bf16.mxu0 0
    %5609 = vmatpush1.bf16.xpose.msra.mxu0 0
    %5610 = vmatprep.subr.bf16.mxu0 0
    %5611 = vmatpush1.bf16.xpose.msra.mxu0 0
    %5612 = vmatprep.subr.bf16.mxu0 0
    %5613 = vmatpush1.bf16.xpose.msra.mxu0 0
    %5614 = vmatprep.subr.bf16.mxu0 0
    %5615 = vmatpush1.bf16.xpose.msra.mxu0 0
    %5616 = vmatprep.subr.bf16.mxu0 0
    %5617 = vmatpush1.bf16.xpose.msra.mxu0 0
    %5618 = vmatprep.subr.bf16.mxu0 0
    %5619 = vmatpush1.bf16.xpose.msra.mxu0 0
    %5620 = vmatprep.subr.bf16.mxu0 0
    %5621 = vmatpush1.bf16.xpose.msra.mxu0 0
    %5622 = vmatprep.subr.bf16.mxu0 0
    %5623 = vmatpush1.bf16.xpose.msra.mxu0 0
    %5624 = vmatprep.subr.bf16.mxu0 0
    %5625 = vmatpush1.bf16.xpose.msra.mxu0 0
    %5626 = vmatprep.subr.bf16.mxu0 0
    %5627 = vmatpush1.bf16.xpose.msra.mxu0 0
    %5628 = vmatprep.subr.bf16.mxu0 0
    %5629 = vmatpush1.bf16.xpose.msra.mxu0 0
    %5630 = vmatprep.subr.bf16.mxu0 0
    %5631 = vmatpush1.bf16.xpose.msra.mxu0 0
    %5632 = vmatprep.subr.bf16.mxu0 0
    %5633 = vmatpush1.bf16.xpose.msra.mxu0 0
    %5634 = vmatprep.mubr.bf16.mxu0 %v5113
    %5635 = vmatmul.mubr.bf16.gmra.mrb[0].mxu0 %v5112
    %v5636 = vpop.f32.mrb[0].mxu0
    %v5637 = vadd.f32 %v5596, %v5636
    %v5638 = vpop.f32.mrb[0].mxu0
    %v5639 = vpop.f32.mrb[0].mxu0
    %v5640 = vadd.f32 %v5599, %v5639
    %v5641 = vpop.f32.mrb[0].mxu0
    %5642 = vdwg.mxu0
    %v5643 = vadd.f32 %v4438, %v5637
    %v5644 = vadd.f32 %v4439, %v5640
    %s5645 = scalar_lea.vmem %s9, 10
    %v5646 = vld [vmem:[%s5645] sm:$0x1]
    %s5647 = scalar_lea.vmem %s9, 11
    %v5648 = vld [vmem:[%s5647] sm:$0x1]
    %v5649 = vsel %vm143, %v5643, 0.0
    %5650 = vadd.xlane.f32.xlu0 %v5649
    %v5651 = vpop.xlane.xlu0 %5650
    %v5652 = vsel %vm143, %v5644, 0.0
    %5653 = vadd.xlane.f32.xlu0 %v5652
    %v5654 = vpop.xlane.xlu0 %5653
    %v5655 = vmul.f32 %v5651, %v1619
    %v5656 = vmul.f32 %v5654, %v1619
    %v5657 = vsub.f32 %v5643, %v5655
    %v5658 = vsub.f32 %v5644, %v5656
    %v5659 = vmul.f32 %v5657, %v5657
    %v5660 = vmul.f32 %v5658, %v5658
    %v5661 = vsel %vm143, %v5659, 0.0
    %5662 = vadd.xlane.f32.xlu0 %v5661
    %v5663 = vpop.xlane.xlu0 %5662
    %v5664 = vsel %vm143, %v5660, 0.0
    %5665 = vadd.xlane.f32.xlu0 %v5664
    %v5666 = vpop.xlane.xlu0 %5665
    %v5667 = vmul.f32 %v5663, %v1619
    %v5668 = vmul.f32 %v5666, %v1619
    %v5669 = vadd.f32 %v5667, 1e-05
    %v5670 = vadd.f32 %v5668, 1e-05
    %v5671 = vrsqrt.pop %v5669
    %v5672 = vrsqrt.pop %v5670
    %v5673 = vmul.f32 %v5657, %v5671
    %v5674 = vmul.f32 %v5658, %v5672
    %v5676 = vlaneseq
    %v5677 = vshrl.u32 %v5676, 7
    %v5678 = vsub.s32 0, %v5677
    %v5679 = vrot.slane %v5646, %v5678
    %v5681 = vmul.f32 %v5673, %v5679
    %v5682 = vmul.f32 %v5674, %v5679
    %v5684 = vlaneseq
    %v5685 = vshrl.u32 %v5684, 7
    %v5686 = vsub.s32 0, %v5685
    %v5687 = vrot.slane %v5648, %v5686
    %v5689 = vadd.f32 %v5681, %v5687
    %v5690 = vadd.f32 %v5682, %v5687
    %5691 = vst.msk [vmem:[#allocation2] sm:$0xff] %vm143, %v5689
    %5692 = vst.msk [vmem:[#allocation2 + $0x8] sm:$0xff] %vm143, %v5690
    // Predicated region
    $region42: #{global_pose_embedder_forward.1} parent=1 // pred_check
      _
    $region43: #{global_pose_embedder_forward.1} parent=1 // pred_check_branch
      %5694 = sbr.rel (0) target = $region45
    $region44: #{global_pose_embedder_forward.1} parent=1 // pred_region
      %s5696 = ssub.s32 256, 256
      %5697 = vsyncadd [#allocation3], %s5696
      %s5698 = sshll.u32 [#allocation2], 4
      %s5699 = int_to_ptr.vmem [resolvable:$true] %s5698
      %5704 = dma.vmem_to_hbm [thread:$0]  %s5699, 256, %s10, [#allocation3], 128, 128, 8
    $region45: #{global_pose_embedder_forward.1} parent=1 // pred_fallthru
      _
    // Predicated region
    $region46: #{global_pose_embedder_forward.1} parent=1 // pred_check
      _
    $region47: #{global_pose_embedder_forward.1} parent=1 // pred_check_branch
      %5706 = sbr.rel (0) target = $region49
    $region48: #{global_pose_embedder_forward.1} parent=1 // pred_region
      %5707 = dma.done [#allocation3], 256
    $region49: #{global_pose_embedder_forward.1} parent=1 // pred_fallthru
      _
    %5708 = vsyncpa [#allocation3], 1

</llo_original>
